<compile_context>
chip_gen: v7x
topology: tpu7x:2x2x1
jax: 0.10.0
libtpu: 0.0.40
codegen_flags: <defaults>
</compile_context>

<pallas_src>
import jax
import jax.numpy as jnp
import numpy as np
from jax import lax
from jax.experimental import pallas as pl
from jax.experimental.pallas import tpu as pltpu


# ------------------------------ static sizes -------------------------------

_K = 5            # conv kernel size
_H_IN = 32        # input spatial (LeNet's fc1 = 16*5*5 pins this)
_C1, _C2 = 6, 16  # conv1 / conv2 output channels
_HO1, _HP1 = 28, 14   # conv1 output spatial, pool1 output spatial
_HO2, _HP2 = 10, 5    # conv2 output spatial, pool2 output spatial


# ------------------------- init-time weight re-layout ----------------------

def prepare_params(p):
    """Re-layout PyTorch-style parameters into the matrices the fused kernel
    consumes.  Pure init-time numpy work; nothing here runs per forward."""
    w1 = np.asarray(p["conv1_w"], np.float32)   # (6, 1, 5, 5)
    b1 = np.asarray(p["conv1_b"], np.float32)
    w2 = np.asarray(p["conv2_w"], np.float32)   # (16, 6, 5, 5)
    b2 = np.asarray(p["conv2_b"], np.float32)

    # conv1: output rows = (di, ip) with i = 2*ip + di,
    #        output lanes = (dj, jp, co) with j = 2*jp + dj.
    l1 = np.zeros((_K, 2 * _HP1, _H_IN), np.float32)          # (5, 28, 32)
    for kh in range(_K):
        for di in range(2):
            for ip in range(_HP1):
                l1[kh, di * _HP1 + ip, 2 * ip + di + kh] = 1.0
    r1 = np.zeros((_K, _H_IN, 2 * _HP1 * _C1), np.float32)    # (5, 32, 168)
    for kh in range(_K):
        for dj in range(2):
            for jp in range(_HP1):
                j = 2 * jp + dj
                base = dj * _HP1 * _C1 + jp * _C1
                for kw in range(_K):
                    r1[kh, j + kw, base:base + _C1] = w1[:, 0, kh, kw]
    b1row = np.tile(b1, 2 * _HP1).reshape(1, 2 * _HP1 * _C1)  # (1, 168)

    # conv2: output rows = (di, ip2), output lanes = (dj, jp2, co2).
    # Its input p1 has rows = h, lanes = w*6 + c (as produced by pool1).
    l2 = np.zeros((_K, 2 * _HP2, _HP1), np.float32)           # (5, 10, 14)
    for kh in range(_K):
        for di in range(2):
            for ip in range(_HP2):
                l2[kh, di * _HP2 + ip, 2 * ip + di + kh] = 1.0
    r2 = np.zeros((_K, _HP1 * _C1, 2 * _HP2 * _C2), np.float32)   # (5, 84, 160)
    for kh in range(_K):
        for dj in range(2):
            for jp in range(_HP2):
                j = 2 * jp + dj
                base = dj * _HP2 * _C2 + jp * _C2
                for kw in range(_K):
                    for c in range(_C1):
                        r2[kh, (j + kw) * _C1 + c, base:base + _C2] = w2[:, c, kh, kw]
    b2row = np.tile(b2, 2 * _HP2).reshape(1, 2 * _HP2 * _C2)  # (1, 160)

    # fc1: permute the 400 input rows from PyTorch's (c, h, w) flatten order
    # to this kernel's (h, w, c) pooled-slab order -> no runtime transpose.
    fc1_w = np.asarray(p["fc1_w"], np.float32)                # (120, 400)
    wf1 = np.zeros((_HP2 * _HP2 * _C2, fc1_w.shape[0]), np.float32)   # (400, 120)
    for h in range(_HP2):
        for w in range(_HP2):
            for c in range(_C2):
                wf1[h * _HP2 * _C2 + w * _C2 + c, :] = \
                    fc1_w[:, c * _HP2 * _HP2 + h * _HP2 + w]

    prep = dict(
        l1=l1, r1=r1, b1=b1row,
        l2=l2, r2=r2, b2=b2row,
        wf1=wf1,
        bf1=np.asarray(p["fc1_b"], np.float32).reshape(1, -1),
        wf2=np.asarray(p["fc2_w"], np.float32).T.copy(),      # (120, 84)
        bf2=np.asarray(p["fc2_b"], np.float32).reshape(1, -1),
        wf3=np.asarray(p["fc3_w"], np.float32).T.copy(),      # (84, nc)
        bf3=np.asarray(p["fc3_b"], np.float32).reshape(1, -1),
    )
    return {k: jnp.asarray(v) for k, v in prep.items()}


_WEIGHT_KEYS = ("l1", "r1", "b1", "l2", "r2", "b2",
                "wf1", "bf1", "wf2", "bf2", "wf3", "bf3")


# -------------------------------- the kernel -------------------------------

def _sigmoid(z):
    # explicit 1/(1+exp(-z)): exp + divide go to the EUP, which is idle here.
    return 1.0 / (1.0 + jnp.exp(-z))


def _lenet_kernel(x_ref, l1_ref, r1_ref, b1_ref, l2_ref, r2_ref, b2_ref,
                  wf1_ref, bf1_ref, wf2_ref, bf2_ref, wf3_ref, bf3_ref,
                  out_ref):
    f32 = jnp.float32
    x = x_ref[0]                                                # (32, 32)

    # ---- conv1 + bias + sigmoid:  y1 = sum_kh (L1[kh] @ x) @ R1[kh] ----
    acc1 = jnp.zeros((2 * _HP1, 2 * _HP1 * _C1), f32)           # (28, 168)
    for kh in range(_K):
        rows = jnp.dot(l1_ref[kh], x, preferred_element_type=f32)
        acc1 = acc1 + jnp.dot(rows, r1_ref[kh], preferred_element_type=f32)
    a1 = _sigmoid(acc1 + b1_ref[...])                           # (28, 168)

    # ---- maxpool1: rows = (di, ip), lanes = (dj, jp, c) -> contiguous maxes
    h1 = jnp.maximum(a1[:_HP1, :], a1[_HP1:, :])                # (14, 168)
    p1 = jnp.maximum(h1[:, :_HP1 * _C1], h1[:, _HP1 * _C1:])    # (14, 84)

    # ---- conv2 + bias + sigmoid ----
    acc2 = jnp.zeros((2 * _HP2, 2 * _HP2 * _C2), f32)           # (10, 160)
    for kh in range(_K):
        rows = jnp.dot(l2_ref[kh], p1, preferred_element_type=f32)
        acc2 = acc2 + jnp.dot(rows, r2_ref[kh], preferred_element_type=f32)
    a2 = _sigmoid(acc2 + b2_ref[...])                           # (10, 160)

    # ---- maxpool2 ----
    h2 = jnp.maximum(a2[:_HP2, :], a2[_HP2:, :])                # (5, 160)
    p2 = jnp.maximum(h2[:, :_HP2 * _C2], h2[:, _HP2 * _C2:])    # (5, 80)

    # ---- fc1 + sigmoid (flatten folded into the permuted weight rows) ----
    wf1 = wf1_ref[...]                                          # (400, 120)
    row_w = _HP2 * _C2                                          # 80
    z = bf1_ref[...]                                            # (1, 120)
    for h in range(_HP2):
        z = z + jnp.dot(p2[h:h + 1, :], wf1[h * row_w:(h + 1) * row_w, :],
                        preferred_element_type=f32)
    z = _sigmoid(z)

    # ---- fc2 + sigmoid, fc3 ----
    z = _sigmoid(jnp.dot(z, wf2_ref[...], preferred_element_type=f32)
                 + bf2_ref[...])                                # (1, 84)
    out = jnp.dot(z, wf3_ref[...], preferred_element_type=f32) + bf3_ref[...]
    out_ref[0] = out                                            # (1, nc)


def _full_block_spec(arr):
    zeros = (0,) * arr.ndim
    return pl.BlockSpec(arr.shape, lambda n, _z=zeros: _z)


@jax.jit
def lenet_forward(prep, x_nchw):
    n = x_nchw.shape[0]
    x = x_nchw.reshape(n, _H_IN, _H_IN)            # squeeze Cin == 1
    weights = [prep[k] for k in _WEIGHT_KEYS]
    num_classes = prep["wf3"].shape[1]
    out = pl.pallas_call(
        _lenet_kernel,
        out_shape=jax.ShapeDtypeStruct((n, 1, num_classes), jnp.float32),
        grid=(n,),
        in_specs=[pl.BlockSpec((1, _H_IN, _H_IN), lambda i: (i, 0, 0))]
                 + [_full_block_spec(w) for w in weights],
        out_specs=pl.BlockSpec((1, 1, num_classes), lambda i: (i, 0, 0)),
        compiler_params=pltpu.CompilerParams(
            dimension_semantics=("parallel",)),     # v7x: 2 TCs split the batch
    )(x, *weights)
    return out.reshape(n, num_classes)


# ------------------------------ parameter init -----------------------------

def init_params(key, num_classes=10):
    def uniform(key, shape, fan_in):
        bound = 1.0 / np.sqrt(fan_in)
        return jax.random.uniform(key, shape, jnp.float32, -bound, bound)

    keys = jax.random.split(key, 10)
    p = {}
    p["conv1_w"] = uniform(keys[0], (6, 1, 5, 5), 1 * 5 * 5)
    p["conv1_b"] = uniform(keys[1], (6,), 1 * 5 * 5)
    p["conv2_w"] = uniform(keys[2], (16, 6, 5, 5), 6 * 5 * 5)
    p["conv2_b"] = uniform(keys[3], (16,), 6 * 5 * 5)
    p["fc1_w"] = uniform(keys[4], (120, 400), 400)
    p["fc1_b"] = uniform(keys[5], (120,), 400)
    p["fc2_w"] = uniform(keys[6], (84, 120), 120)
    p["fc2_b"] = uniform(keys[7], (84,), 120)
    p["fc3_w"] = uniform(keys[8], (num_classes, 84), 84)
    p["fc3_b"] = uniform(keys[9], (num_classes,), 84)
    return p


# ------------------------- pure-JAX reference check ------------------------

def lenet_reference(params, x):
    def conv(x, w, b):
        y = lax.conv_general_dilated(x, w, (1, 1), "VALID",
                                     dimension_numbers=("NCHW", "OIHW", "NCHW"))
        return y + b[None, :, None, None]

    def pool(x):  # NCHW 2x2/2 maxpool
        return lax.reduce_window(x, -jnp.inf, lax.max,
                                 (1, 1, 2, 2), (1, 1, 2, 2), "VALID")

    y = pool(jax.nn.sigmoid(conv(x, params["conv1_w"], params["conv1_b"])))
    y = pool(jax.nn.sigmoid(conv(y, params["conv2_w"], params["conv2_b"])))
    y = y.reshape(y.shape[0], -1)
    y = jax.nn.sigmoid(y @ params["fc1_w"].T + params["fc1_b"])
    y = jax.nn.sigmoid(y @ params["fc2_w"].T + params["fc2_b"])
    return y @ params["fc3_w"].T + params["fc3_b"]


if __name__ == "__main__":
    key = jax.random.PRNGKey(0)
    k_param, k_x = jax.random.split(key)
    params = init_params(k_param, num_classes=10)
    prep = prepare_params(params)
    # LeNet's fc1 (16*5*5) forces a 32x32 single-channel input.
    x = jax.random.normal(k_x, (2, 1, 32, 32), jnp.float32)

    out = jax.block_until_ready(lenet_forward(prep, x))
    ref = jax.block_until_ready(lenet_reference(params, x))

    assert out.shape == (2, 10), out.shape
    np.testing.assert_allclose(np.asarray(out), np.asarray(ref),
                               rtol=2e-4, atol=2e-4)
    print("KERNEL_OK")
</pallas_src>

<mosaic_0001>
module attributes {stable_mosaic.version = 11 : i64} {
  func.func @_lenet_kernel(%arg0: i32, %arg1: memref<1x32x32xf32, #tpu.memory_space<vmem>>, %arg2: memref<5x28x32xf32, #tpu.memory_space<vmem>>, %arg3: memref<5x32x168xf32, #tpu.memory_space<vmem>>, %arg4: memref<1x168xf32, #tpu.memory_space<vmem>>, %arg5: memref<5x10x14xf32, #tpu.memory_space<vmem>>, %arg6: memref<5x84x160xf32, #tpu.memory_space<vmem>>, %arg7: memref<1x160xf32, #tpu.memory_space<vmem>>, %arg8: memref<400x120xf32, #tpu.memory_space<vmem>>, %arg9: memref<1x120xf32, #tpu.memory_space<vmem>>, %arg10: memref<120x84xf32, #tpu.memory_space<vmem>>, %arg11: memref<1x84xf32, #tpu.memory_space<vmem>>, %arg12: memref<84x10xf32, #tpu.memory_space<vmem>>, %arg13: memref<1x10xf32, #tpu.memory_space<vmem>>, %arg14: memref<1x1x10xf32, #tpu.memory_space<vmem>>) attributes {dimension_semantics = [#tpu.dimension_semantics<parallel>], iteration_bounds = array<i64: 2>, scalar_prefetch = 0 : i64, scratch_operands = 0 : i64, tpu.core_type = #tpu.core_type<tc>, window_params = [{transform_indices = @transform_0, window_bounds = array<i64: 1, 32, 32>}, {pipeline_mode = #tpu.pipeline_mode<synchronous>, transform_indices = @transform_1, window_bounds = array<i64: 5, 28, 32>}, {pipeline_mode = #tpu.pipeline_mode<synchronous>, transform_indices = @transform_2, window_bounds = array<i64: 5, 32, 168>}, {pipeline_mode = #tpu.pipeline_mode<synchronous>, transform_indices = @transform_3, window_bounds = array<i64: 1, 168>}, {pipeline_mode = #tpu.pipeline_mode<synchronous>, transform_indices = @transform_4, window_bounds = array<i64: 5, 10, 14>}, {pipeline_mode = #tpu.pipeline_mode<synchronous>, transform_indices = @transform_5, window_bounds = array<i64: 5, 84, 160>}, {pipeline_mode = #tpu.pipeline_mode<synchronous>, transform_indices = @transform_6, window_bounds = array<i64: 1, 160>}, {pipeline_mode = #tpu.pipeline_mode<synchronous>, transform_indices = @transform_7, window_bounds = array<i64: 400, 120>}, {pipeline_mode = #tpu.pipeline_mode<synchronous>, transform_indices = @transform_8, window_bounds = array<i64: 1, 120>}, {pipeline_mode = #tpu.pipeline_mode<synchronous>, transform_indices = @transform_9, window_bounds = array<i64: 120, 84>}, {pipeline_mode = #tpu.pipeline_mode<synchronous>, transform_indices = @transform_10, window_bounds = array<i64: 1, 84>}, {pipeline_mode = #tpu.pipeline_mode<synchronous>, transform_indices = @transform_11, window_bounds = array<i64: 84, 10>}, {pipeline_mode = #tpu.pipeline_mode<synchronous>, transform_indices = @transform_12, window_bounds = array<i64: 1, 10>}, {transform_indices = @transform_13, window_bounds = array<i64: 1, 1, 10>}]} {
    %c0 = arith.constant 0 : index
    %c0_0 = arith.constant 0 : index
    %c0_1 = arith.constant 0 : index
    %0 = vector.load %arg1[%c0, %c0_0, %c0_1] : memref<1x32x32xf32, #tpu.memory_space<vmem>>, vector<1x32x32xf32>
    %1 = vector.shape_cast %0 : vector<1x32x32xf32> to vector<32x32xf32>
    %cst = arith.constant 0.000000e+00 : f32
    %2 = vector.broadcast %cst : f32 to vector<28x168xf32>
    %c0_2 = arith.constant 0 : index
    %c0_3 = arith.constant 0 : index
    %c0_4 = arith.constant 0 : index
    %3 = vector.load %arg2[%c0_2, %c0_3, %c0_4] : memref<5x28x32xf32, #tpu.memory_space<vmem>>, vector<1x28x32xf32>
    %4 = vector.shape_cast %3 : vector<1x28x32xf32> to vector<28x32xf32>
    %cst_5 = arith.constant dense<0.000000e+00> : vector<28x32xf32>
    %5 = tpu.matmul %4, %1, %cst_5 {dimension_numbers = #tpu.dot_dimension_numbers<[1], [0], [0], [1], [0, 0, 1, 1], [], []>} : vector<28x32xf32>, vector<32x32xf32>, vector<28x32xf32> -> vector<28x32xf32>
    %c0_6 = arith.constant 0 : index
    %c0_7 = arith.constant 0 : index
    %c0_8 = arith.constant 0 : index
    %6 = vector.load %arg3[%c0_6, %c0_7, %c0_8] : memref<5x32x168xf32, #tpu.memory_space<vmem>>, vector<1x32x168xf32>
    %7 = vector.shape_cast %6 : vector<1x32x168xf32> to vector<32x168xf32>
    %cst_9 = arith.constant dense<0.000000e+00> : vector<28x168xf32>
    %8 = tpu.matmul %5, %7, %cst_9 {dimension_numbers = #tpu.dot_dimension_numbers<[1], [0], [0], [1], [0, 0, 1, 1], [], []>} : vector<28x32xf32>, vector<32x168xf32>, vector<28x168xf32> -> vector<28x168xf32>
    %9 = arith.addf %2, %8 : vector<28x168xf32>
    %c1 = arith.constant 1 : index
    %c0_10 = arith.constant 0 : index
    %c0_11 = arith.constant 0 : index
    %10 = vector.load %arg2[%c1, %c0_10, %c0_11] : memref<5x28x32xf32, #tpu.memory_space<vmem>>, vector<1x28x32xf32>
    %11 = vector.shape_cast %10 : vector<1x28x32xf32> to vector<28x32xf32>
    %cst_12 = arith.constant dense<0.000000e+00> : vector<28x32xf32>
    %12 = tpu.matmul %11, %1, %cst_12 {dimension_numbers = #tpu.dot_dimension_numbers<[1], [0], [0], [1], [0, 0, 1, 1], [], []>} : vector<28x32xf32>, vector<32x32xf32>, vector<28x32xf32> -> vector<28x32xf32>
    %c1_13 = arith.constant 1 : index
    %c0_14 = arith.constant 0 : index
    %c0_15 = arith.constant 0 : index
    %13 = vector.load %arg3[%c1_13, %c0_14, %c0_15] : memref<5x32x168xf32, #tpu.memory_space<vmem>>, vector<1x32x168xf32>
    %14 = vector.shape_cast %13 : vector<1x32x168xf32> to vector<32x168xf32>
    %cst_16 = arith.constant dense<0.000000e+00> : vector<28x168xf32>
    %15 = tpu.matmul %12, %14, %cst_16 {dimension_numbers = #tpu.dot_dimension_numbers<[1], [0], [0], [1], [0, 0, 1, 1], [], []>} : vector<28x32xf32>, vector<32x168xf32>, vector<28x168xf32> -> vector<28x168xf32>
    %16 = arith.addf %9, %15 : vector<28x168xf32>
    %c2 = arith.constant 2 : index
    %c0_17 = arith.constant 0 : index
    %c0_18 = arith.constant 0 : index
    %17 = vector.load %arg2[%c2, %c0_17, %c0_18] : memref<5x28x32xf32, #tpu.memory_space<vmem>>, vector<1x28x32xf32>
    %18 = vector.shape_cast %17 : vector<1x28x32xf32> to vector<28x32xf32>
    %cst_19 = arith.constant dense<0.000000e+00> : vector<28x32xf32>
    %19 = tpu.matmul %18, %1, %cst_19 {dimension_numbers = #tpu.dot_dimension_numbers<[1], [0], [0], [1], [0, 0, 1, 1], [], []>} : vector<28x32xf32>, vector<32x32xf32>, vector<28x32xf32> -> vector<28x32xf32>
    %c2_20 = arith.constant 2 : index
    %c0_21 = arith.constant 0 : index
    %c0_22 = arith.constant 0 : index
    %20 = vector.load %arg3[%c2_20, %c0_21, %c0_22] : memref<5x32x168xf32, #tpu.memory_space<vmem>>, vector<1x32x168xf32>
    %21 = vector.shape_cast %20 : vector<1x32x168xf32> to vector<32x168xf32>
    %cst_23 = arith.constant dense<0.000000e+00> : vector<28x168xf32>
    %22 = tpu.matmul %19, %21, %cst_23 {dimension_numbers = #tpu.dot_dimension_numbers<[1], [0], [0], [1], [0, 0, 1, 1], [], []>} : vector<28x32xf32>, vector<32x168xf32>, vector<28x168xf32> -> vector<28x168xf32>
    %23 = arith.addf %16, %22 : vector<28x168xf32>
    %c3 = arith.constant 3 : index
    %c0_24 = arith.constant 0 : index
    %c0_25 = arith.constant 0 : index
    %24 = vector.load %arg2[%c3, %c0_24, %c0_25] : memref<5x28x32xf32, #tpu.memory_space<vmem>>, vector<1x28x32xf32>
    %25 = vector.shape_cast %24 : vector<1x28x32xf32> to vector<28x32xf32>
    %cst_26 = arith.constant dense<0.000000e+00> : vector<28x32xf32>
    %26 = tpu.matmul %25, %1, %cst_26 {dimension_numbers = #tpu.dot_dimension_numbers<[1], [0], [0], [1], [0, 0, 1, 1], [], []>} : vector<28x32xf32>, vector<32x32xf32>, vector<28x32xf32> -> vector<28x32xf32>
    %c3_27 = arith.constant 3 : index
    %c0_28 = arith.constant 0 : index
    %c0_29 = arith.constant 0 : index
    %27 = vector.load %arg3[%c3_27, %c0_28, %c0_29] : memref<5x32x168xf32, #tpu.memory_space<vmem>>, vector<1x32x168xf32>
    %28 = vector.shape_cast %27 : vector<1x32x168xf32> to vector<32x168xf32>
    %cst_30 = arith.constant dense<0.000000e+00> : vector<28x168xf32>
    %29 = tpu.matmul %26, %28, %cst_30 {dimension_numbers = #tpu.dot_dimension_numbers<[1], [0], [0], [1], [0, 0, 1, 1], [], []>} : vector<28x32xf32>, vector<32x168xf32>, vector<28x168xf32> -> vector<28x168xf32>
    %30 = arith.addf %23, %29 : vector<28x168xf32>
    %c4 = arith.constant 4 : index
    %c0_31 = arith.constant 0 : index
    %c0_32 = arith.constant 0 : index
    %31 = vector.load %arg2[%c4, %c0_31, %c0_32] : memref<5x28x32xf32, #tpu.memory_space<vmem>>, vector<1x28x32xf32>
    %32 = vector.shape_cast %31 : vector<1x28x32xf32> to vector<28x32xf32>
    %cst_33 = arith.constant dense<0.000000e+00> : vector<28x32xf32>
    %33 = tpu.matmul %32, %1, %cst_33 {dimension_numbers = #tpu.dot_dimension_numbers<[1], [0], [0], [1], [0, 0, 1, 1], [], []>} : vector<28x32xf32>, vector<32x32xf32>, vector<28x32xf32> -> vector<28x32xf32>
    %c4_34 = arith.constant 4 : index
    %c0_35 = arith.constant 0 : index
    %c0_36 = arith.constant 0 : index
    %34 = vector.load %arg3[%c4_34, %c0_35, %c0_36] : memref<5x32x168xf32, #tpu.memory_space<vmem>>, vector<1x32x168xf32>
    %35 = vector.shape_cast %34 : vector<1x32x168xf32> to vector<32x168xf32>
    %cst_37 = arith.constant dense<0.000000e+00> : vector<28x168xf32>
    %36 = tpu.matmul %33, %35, %cst_37 {dimension_numbers = #tpu.dot_dimension_numbers<[1], [0], [0], [1], [0, 0, 1, 1], [], []>} : vector<28x32xf32>, vector<32x168xf32>, vector<28x168xf32> -> vector<28x168xf32>
    %37 = arith.addf %30, %36 : vector<28x168xf32>
    %c0_38 = arith.constant 0 : index
    %c0_39 = arith.constant 0 : index
    %38 = vector.load %arg4[%c0_38, %c0_39] : memref<1x168xf32, #tpu.memory_space<vmem>>, vector<1x168xf32>
    %39 = vector.broadcast %38 : vector<1x168xf32> to vector<28x168xf32>
    %40 = arith.addf %37, %39 : vector<28x168xf32>
    %cst_40 = arith.constant 0.000000e+00 : f32
    %41 = vector.broadcast %cst_40 : f32 to vector<28x168xf32>
    %42 = arith.subf %41, %40 : vector<28x168xf32>
    %43 = math.exp %42 : vector<28x168xf32>
    %cst_41 = arith.constant 1.000000e+00 : f32
    %44 = vector.broadcast %cst_41 : f32 to vector<28x168xf32>
    %45 = arith.addf %44, %43 : vector<28x168xf32>
    %cst_42 = arith.constant 1.000000e+00 : f32
    %46 = vector.broadcast %cst_42 : f32 to vector<28x168xf32>
    %47 = arith.divf %46, %45 : vector<28x168xf32>
    %48 = vector.extract_strided_slice %47 {offsets = [0, 0], sizes = [14, 168], strides = [1, 1]} : vector<28x168xf32> to vector<14x168xf32>
    %49 = vector.extract_strided_slice %47 {offsets = [14, 0], sizes = [14, 168], strides = [1, 1]} : vector<28x168xf32> to vector<14x168xf32>
    %50 = arith.maximumf %48, %49 : vector<14x168xf32>
    %51 = vector.extract_strided_slice %50 {offsets = [0, 0], sizes = [14, 84], strides = [1, 1]} : vector<14x168xf32> to vector<14x84xf32>
    %52 = vector.extract_strided_slice %50 {offsets = [0, 84], sizes = [14, 84], strides = [1, 1]} : vector<14x168xf32> to vector<14x84xf32>
    %53 = arith.maximumf %51, %52 : vector<14x84xf32>
    %cst_43 = arith.constant 0.000000e+00 : f32
    %54 = vector.broadcast %cst_43 : f32 to vector<10x160xf32>
    %c0_44 = arith.constant 0 : index
    %c0_45 = arith.constant 0 : index
    %c0_46 = arith.constant 0 : index
    %55 = vector.load %arg5[%c0_44, %c0_45, %c0_46] : memref<5x10x14xf32, #tpu.memory_space<vmem>>, vector<1x10x14xf32>
    %56 = vector.shape_cast %55 : vector<1x10x14xf32> to vector<10x14xf32>
    %cst_47 = arith.constant dense<0.000000e+00> : vector<10x84xf32>
    %57 = tpu.matmul %56, %53, %cst_47 {dimension_numbers = #tpu.dot_dimension_numbers<[1], [0], [0], [1], [0, 0, 1, 1], [], []>} : vector<10x14xf32>, vector<14x84xf32>, vector<10x84xf32> -> vector<10x84xf32>
    %c0_48 = arith.constant 0 : index
    %c0_49 = arith.constant 0 : index
    %c0_50 = arith.constant 0 : index
    %58 = vector.load %arg6[%c0_48, %c0_49, %c0_50] : memref<5x84x160xf32, #tpu.memory_space<vmem>>, vector<1x84x160xf32>
    %59 = vector.shape_cast %58 : vector<1x84x160xf32> to vector<84x160xf32>
    %cst_51 = arith.constant dense<0.000000e+00> : vector<10x160xf32>
    %60 = tpu.matmul %57, %59, %cst_51 {dimension_numbers = #tpu.dot_dimension_numbers<[1], [0], [0], [1], [0, 0, 1, 1], [], []>} : vector<10x84xf32>, vector<84x160xf32>, vector<10x160xf32> -> vector<10x160xf32>
    %61 = arith.addf %54, %60 : vector<10x160xf32>
    %c1_52 = arith.constant 1 : index
    %c0_53 = arith.constant 0 : index
    %c0_54 = arith.constant 0 : index
    %62 = vector.load %arg5[%c1_52, %c0_53, %c0_54] : memref<5x10x14xf32, #tpu.memory_space<vmem>>, vector<1x10x14xf32>
    %63 = vector.shape_cast %62 : vector<1x10x14xf32> to vector<10x14xf32>
    %cst_55 = arith.constant dense<0.000000e+00> : vector<10x84xf32>
    %64 = tpu.matmul %63, %53, %cst_55 {dimension_numbers = #tpu.dot_dimension_numbers<[1], [0], [0], [1], [0, 0, 1, 1], [], []>} : vector<10x14xf32>, vector<14x84xf32>, vector<10x84xf32> -> vector<10x84xf32>
    %c1_56 = arith.constant 1 : index
    %c0_57 = arith.constant 0 : index
    %c0_58 = arith.constant 0 : index
    %65 = vector.load %arg6[%c1_56, %c0_57, %c0_58] : memref<5x84x160xf32, #tpu.memory_space<vmem>>, vector<1x84x160xf32>
    %66 = vector.shape_cast %65 : vector<1x84x160xf32> to vector<84x160xf32>
    %cst_59 = arith.constant dense<0.000000e+00> : vector<10x160xf32>
    %67 = tpu.matmul %64, %66, %cst_59 {dimension_numbers = #tpu.dot_dimension_numbers<[1], [0], [0], [1], [0, 0, 1, 1], [], []>} : vector<10x84xf32>, vector<84x160xf32>, vector<10x160xf32> -> vector<10x160xf32>
    %68 = arith.addf %61, %67 : vector<10x160xf32>
    %c2_60 = arith.constant 2 : index
    %c0_61 = arith.constant 0 : index
    %c0_62 = arith.constant 0 : index
    %69 = vector.load %arg5[%c2_60, %c0_61, %c0_62] : memref<5x10x14xf32, #tpu.memory_space<vmem>>, vector<1x10x14xf32>
    %70 = vector.shape_cast %69 : vector<1x10x14xf32> to vector<10x14xf32>
    %cst_63 = arith.constant dense<0.000000e+00> : vector<10x84xf32>
    %71 = tpu.matmul %70, %53, %cst_63 {dimension_numbers = #tpu.dot_dimension_numbers<[1], [0], [0], [1], [0, 0, 1, 1], [], []>} : vector<10x14xf32>, vector<14x84xf32>, vector<10x84xf32> -> vector<10x84xf32>
    %c2_64 = arith.constant 2 : index
    %c0_65 = arith.constant 0 : index
    %c0_66 = arith.constant 0 : index
    %72 = vector.load %arg6[%c2_64, %c0_65, %c0_66] : memref<5x84x160xf32, #tpu.memory_space<vmem>>, vector<1x84x160xf32>
    %73 = vector.shape_cast %72 : vector<1x84x160xf32> to vector<84x160xf32>
    %cst_67 = arith.constant dense<0.000000e+00> : vector<10x160xf32>
    %74 = tpu.matmul %71, %73, %cst_67 {dimension_numbers = #tpu.dot_dimension_numbers<[1], [0], [0], [1], [0, 0, 1, 1], [], []>} : vector<10x84xf32>, vector<84x160xf32>, vector<10x160xf32> -> vector<10x160xf32>
    %75 = arith.addf %68, %74 : vector<10x160xf32>
    %c3_68 = arith.constant 3 : index
    %c0_69 = arith.constant 0 : index
    %c0_70 = arith.constant 0 : index
    %76 = vector.load %arg5[%c3_68, %c0_69, %c0_70] : memref<5x10x14xf32, #tpu.memory_space<vmem>>, vector<1x10x14xf32>
    %77 = vector.shape_cast %76 : vector<1x10x14xf32> to vector<10x14xf32>
    %cst_71 = arith.constant dense<0.000000e+00> : vector<10x84xf32>
    %78 = tpu.matmul %77, %53, %cst_71 {dimension_numbers = #tpu.dot_dimension_numbers<[1], [0], [0], [1], [0, 0, 1, 1], [], []>} : vector<10x14xf32>, vector<14x84xf32>, vector<10x84xf32> -> vector<10x84xf32>
    %c3_72 = arith.constant 3 : index
    %c0_73 = arith.constant 0 : index
    %c0_74 = arith.constant 0 : index
    %79 = vector.load %arg6[%c3_72, %c0_73, %c0_74] : memref<5x84x160xf32, #tpu.memory_space<vmem>>, vector<1x84x160xf32>
    %80 = vector.shape_cast %79 : vector<1x84x160xf32> to vector<84x160xf32>
    %cst_75 = arith.constant dense<0.000000e+00> : vector<10x160xf32>
    %81 = tpu.matmul %78, %80, %cst_75 {dimension_numbers = #tpu.dot_dimension_numbers<[1], [0], [0], [1], [0, 0, 1, 1], [], []>} : vector<10x84xf32>, vector<84x160xf32>, vector<10x160xf32> -> vector<10x160xf32>
    %82 = arith.addf %75, %81 : vector<10x160xf32>
    %c4_76 = arith.constant 4 : index
    %c0_77 = arith.constant 0 : index
    %c0_78 = arith.constant 0 : index
    %83 = vector.load %arg5[%c4_76, %c0_77, %c0_78] : memref<5x10x14xf32, #tpu.memory_space<vmem>>, vector<1x10x14xf32>
    %84 = vector.shape_cast %83 : vector<1x10x14xf32> to vector<10x14xf32>
    %cst_79 = arith.constant dense<0.000000e+00> : vector<10x84xf32>
    %85 = tpu.matmul %84, %53, %cst_79 {dimension_numbers = #tpu.dot_dimension_numbers<[1], [0], [0], [1], [0, 0, 1, 1], [], []>} : vector<10x14xf32>, vector<14x84xf32>, vector<10x84xf32> -> vector<10x84xf32>
    %c4_80 = arith.constant 4 : index
    %c0_81 = arith.constant 0 : index
    %c0_82 = arith.constant 0 : index
    %86 = vector.load %arg6[%c4_80, %c0_81, %c0_82] : memref<5x84x160xf32, #tpu.memory_space<vmem>>, vector<1x84x160xf32>
    %87 = vector.shape_cast %86 : vector<1x84x160xf32> to vector<84x160xf32>
    %cst_83 = arith.constant dense<0.000000e+00> : vector<10x160xf32>
    %88 = tpu.matmul %85, %87, %cst_83 {dimension_numbers = #tpu.dot_dimension_numbers<[1], [0], [0], [1], [0, 0, 1, 1], [], []>} : vector<10x84xf32>, vector<84x160xf32>, vector<10x160xf32> -> vector<10x160xf32>
    %89 = arith.addf %82, %88 : vector<10x160xf32>
    %c0_84 = arith.constant 0 : index
    %c0_85 = arith.constant 0 : index
    %90 = vector.load %arg7[%c0_84, %c0_85] : memref<1x160xf32, #tpu.memory_space<vmem>>, vector<1x160xf32>
    %91 = vector.broadcast %90 : vector<1x160xf32> to vector<10x160xf32>
    %92 = arith.addf %89, %91 : vector<10x160xf32>
    %cst_86 = arith.constant 0.000000e+00 : f32
    %93 = vector.broadcast %cst_86 : f32 to vector<10x160xf32>
    %94 = arith.subf %93, %92 : vector<10x160xf32>
    %95 = math.exp %94 : vector<10x160xf32>
    %cst_87 = arith.constant 1.000000e+00 : f32
    %96 = vector.broadcast %cst_87 : f32 to vector<10x160xf32>
    %97 = arith.addf %96, %95 : vector<10x160xf32>
    %cst_88 = arith.constant 1.000000e+00 : f32
    %98 = vector.broadcast %cst_88 : f32 to vector<10x160xf32>
    %99 = arith.divf %98, %97 : vector<10x160xf32>
    %100 = vector.extract_strided_slice %99 {offsets = [0, 0], sizes = [5, 160], strides = [1, 1]} : vector<10x160xf32> to vector<5x160xf32>
    %101 = vector.extract_strided_slice %99 {offsets = [5, 0], sizes = [5, 160], strides = [1, 1]} : vector<10x160xf32> to vector<5x160xf32>
    %102 = arith.maximumf %100, %101 : vector<5x160xf32>
    %103 = vector.extract_strided_slice %102 {offsets = [0, 0], sizes = [5, 80], strides = [1, 1]} : vector<5x160xf32> to vector<5x80xf32>
    %104 = vector.extract_strided_slice %102 {offsets = [0, 80], sizes = [5, 80], strides = [1, 1]} : vector<5x160xf32> to vector<5x80xf32>
    %105 = arith.maximumf %103, %104 : vector<5x80xf32>
    %c0_89 = arith.constant 0 : index
    %c0_90 = arith.constant 0 : index
    %106 = vector.load %arg8[%c0_89, %c0_90] : memref<400x120xf32, #tpu.memory_space<vmem>>, vector<400x120xf32>
    %c0_91 = arith.constant 0 : index
    %c0_92 = arith.constant 0 : index
    %107 = vector.load %arg9[%c0_91, %c0_92] : memref<1x120xf32, #tpu.memory_space<vmem>>, vector<1x120xf32>
    %108 = vector.extract_strided_slice %105 {offsets = [0, 0], sizes = [1, 80], strides = [1, 1]} : vector<5x80xf32> to vector<1x80xf32>
    %109 = vector.extract_strided_slice %106 {offsets = [0, 0], sizes = [80, 120], strides = [1, 1]} : vector<400x120xf32> to vector<80x120xf32>
    %cst_93 = arith.constant dense<0.000000e+00> : vector<1x120xf32>
    %110 = tpu.matmul %108, %109, %cst_93 {dimension_numbers = #tpu.dot_dimension_numbers<[1], [0], [0], [1], [0, 0, 1, 1], [], []>} : vector<1x80xf32>, vector<80x120xf32>, vector<1x120xf32> -> vector<1x120xf32>
    %111 = arith.addf %107, %110 : vector<1x120xf32>
    %112 = vector.extract_strided_slice %105 {offsets = [1, 0], sizes = [1, 80], strides = [1, 1]} : vector<5x80xf32> to vector<1x80xf32>
    %113 = vector.extract_strided_slice %106 {offsets = [80, 0], sizes = [80, 120], strides = [1, 1]} : vector<400x120xf32> to vector<80x120xf32>
    %cst_94 = arith.constant dense<0.000000e+00> : vector<1x120xf32>
    %114 = tpu.matmul %112, %113, %cst_94 {dimension_numbers = #tpu.dot_dimension_numbers<[1], [0], [0], [1], [0, 0, 1, 1], [], []>} : vector<1x80xf32>, vector<80x120xf32>, vector<1x120xf32> -> vector<1x120xf32>
    %115 = arith.addf %111, %114 : vector<1x120xf32>
    %116 = vector.extract_strided_slice %105 {offsets = [2, 0], sizes = [1, 80], strides = [1, 1]} : vector<5x80xf32> to vector<1x80xf32>
    %117 = vector.extract_strided_slice %106 {offsets = [160, 0], sizes = [80, 120], strides = [1, 1]} : vector<400x120xf32> to vector<80x120xf32>
    %cst_95 = arith.constant dense<0.000000e+00> : vector<1x120xf32>
    %118 = tpu.matmul %116, %117, %cst_95 {dimension_numbers = #tpu.dot_dimension_numbers<[1], [0], [0], [1], [0, 0, 1, 1], [], []>} : vector<1x80xf32>, vector<80x120xf32>, vector<1x120xf32> -> vector<1x120xf32>
    %119 = arith.addf %115, %118 : vector<1x120xf32>
    %120 = vector.extract_strided_slice %105 {offsets = [3, 0], sizes = [1, 80], strides = [1, 1]} : vector<5x80xf32> to vector<1x80xf32>
    %121 = vector.extract_strided_slice %106 {offsets = [240, 0], sizes = [80, 120], strides = [1, 1]} : vector<400x120xf32> to vector<80x120xf32>
    %cst_96 = arith.constant dense<0.000000e+00> : vector<1x120xf32>
    %122 = tpu.matmul %120, %121, %cst_96 {dimension_numbers = #tpu.dot_dimension_numbers<[1], [0], [0], [1], [0, 0, 1, 1], [], []>} : vector<1x80xf32>, vector<80x120xf32>, vector<1x120xf32> -> vector<1x120xf32>
    %123 = arith.addf %119, %122 : vector<1x120xf32>
    %124 = vector.extract_strided_slice %105 {offsets = [4, 0], sizes = [1, 80], strides = [1, 1]} : vector<5x80xf32> to vector<1x80xf32>
    %125 = vector.extract_strided_slice %106 {offsets = [320, 0], sizes = [80, 120], strides = [1, 1]} : vector<400x120xf32> to vector<80x120xf32>
    %cst_97 = arith.constant dense<0.000000e+00> : vector<1x120xf32>
    %126 = tpu.matmul %124, %125, %cst_97 {dimension_numbers = #tpu.dot_dimension_numbers<[1], [0], [0], [1], [0, 0, 1, 1], [], []>} : vector<1x80xf32>, vector<80x120xf32>, vector<1x120xf32> -> vector<1x120xf32>
    %127 = arith.addf %123, %126 : vector<1x120xf32>
    %cst_98 = arith.constant 0.000000e+00 : f32
    %128 = vector.broadcast %cst_98 : f32 to vector<1x120xf32>
    %129 = arith.subf %128, %127 : vector<1x120xf32>
    %130 = math.exp %129 : vector<1x120xf32>
    %cst_99 = arith.constant 1.000000e+00 : f32
    %131 = vector.broadcast %cst_99 : f32 to vector<1x120xf32>
    %132 = arith.addf %131, %130 : vector<1x120xf32>
    %cst_100 = arith.constant 1.000000e+00 : f32
    %133 = vector.broadcast %cst_100 : f32 to vector<1x120xf32>
    %134 = arith.divf %133, %132 : vector<1x120xf32>
    %c0_101 = arith.constant 0 : index
    %c0_102 = arith.constant 0 : index
    %135 = vector.load %arg10[%c0_101, %c0_102] : memref<120x84xf32, #tpu.memory_space<vmem>>, vector<120x84xf32>
    %cst_103 = arith.constant dense<0.000000e+00> : vector<1x84xf32>
    %136 = tpu.matmul %134, %135, %cst_103 {dimension_numbers = #tpu.dot_dimension_numbers<[1], [0], [0], [1], [0, 0, 1, 1], [], []>} : vector<1x120xf32>, vector<120x84xf32>, vector<1x84xf32> -> vector<1x84xf32>
    %c0_104 = arith.constant 0 : index
    %c0_105 = arith.constant 0 : index
    %137 = vector.load %arg11[%c0_104, %c0_105] : memref<1x84xf32, #tpu.memory_space<vmem>>, vector<1x84xf32>
    %138 = arith.addf %136, %137 : vector<1x84xf32>
    %cst_106 = arith.constant 0.000000e+00 : f32
    %139 = vector.broadcast %cst_106 : f32 to vector<1x84xf32>
    %140 = arith.subf %139, %138 : vector<1x84xf32>
    %141 = math.exp %140 : vector<1x84xf32>
    %cst_107 = arith.constant 1.000000e+00 : f32
    %142 = vector.broadcast %cst_107 : f32 to vector<1x84xf32>
    %143 = arith.addf %142, %141 : vector<1x84xf32>
    %cst_108 = arith.constant 1.000000e+00 : f32
    %144 = vector.broadcast %cst_108 : f32 to vector<1x84xf32>
    %145 = arith.divf %144, %143 : vector<1x84xf32>
    %c0_109 = arith.constant 0 : index
    %c0_110 = arith.constant 0 : index
    %146 = vector.load %arg12[%c0_109, %c0_110] : memref<84x10xf32, #tpu.memory_space<vmem>>, vector<84x10xf32>
    %cst_111 = arith.constant dense<0.000000e+00> : vector<1x10xf32>
    %147 = tpu.matmul %145, %146, %cst_111 {dimension_numbers = #tpu.dot_dimension_numbers<[1], [0], [0], [1], [0, 0, 1, 1], [], []>} : vector<1x84xf32>, vector<84x10xf32>, vector<1x10xf32> -> vector<1x10xf32>
    %c0_112 = arith.constant 0 : index
    %c0_113 = arith.constant 0 : index
    %148 = vector.load %arg13[%c0_112, %c0_113] : memref<1x10xf32, #tpu.memory_space<vmem>>, vector<1x10xf32>
    %149 = arith.addf %147, %148 : vector<1x10xf32>
    %c0_114 = arith.constant 0 : index
    %c0_115 = arith.constant 0 : index
    %c0_116 = arith.constant 0 : index
    %150 = vector.load %arg14[%c0_114, %c0_115, %c0_116] : memref<1x1x10xf32, #tpu.memory_space<vmem>>, vector<1x1x10xf32>
    %151 = vector.shape_cast %150 : vector<1x1x10xf32> to vector<1x10xf32>
    %152 = vector.shape_cast %149 : vector<1x10xf32> to vector<1x1x10xf32>
    tpu.vector_store %arg14[%c0_114, %c0_115, %c0_116], %152 {strides = array<i32>} : memref<1x1x10xf32, #tpu.memory_space<vmem>>, vector<1x1x10xf32>,
    return
  }
  func.func @transform_0(%arg0: i32) -> (i32, i32, i32) {
    %c0_i32 = arith.constant 0 : i32
    %c0_i32_0 = arith.constant 0 : i32
    %c0_i32_1 = arith.constant 0 : i32
    return %arg0, %c0_i32, %c0_i32_0 : i32, i32, i32
  }
  func.func @transform_1(%arg0: i32) -> (i32, i32, i32) {
    %c0_i32 = arith.constant 0 : i32
    %c0_i32_0 = arith.constant 0 : i32
    %c0_i32_1 = arith.constant 0 : i32
    %c0_i32_2 = arith.constant 0 : i32
    return %c0_i32, %c0_i32_0, %c0_i32_1 : i32, i32, i32
  }
  func.func @transform_2(%arg0: i32) -> (i32, i32, i32) {
    %c0_i32 = arith.constant 0 : i32
    %c0_i32_0 = arith.constant 0 : i32
    %c0_i32_1 = arith.constant 0 : i32
    %c0_i32_2 = arith.constant 0 : i32
    return %c0_i32, %c0_i32_0, %c0_i32_1 : i32, i32, i32
  }
  func.func @transform_3(%arg0: i32) -> (i32, i32) {
    %c0_i32 = arith.constant 0 : i32
    %c0_i32_0 = arith.constant 0 : i32
    %c0_i32_1 = arith.constant 0 : i32
    return %c0_i32, %c0_i32_0 : i32, i32
  }
  func.func @transform_4(%arg0: i32) -> (i32, i32, i32) {
    %c0_i32 = arith.constant 0 : i32
    %c0_i32_0 = arith.constant 0 : i32
    %c0_i32_1 = arith.constant 0 : i32
    %c0_i32_2 = arith.constant 0 : i32
    return %c0_i32, %c0_i32_0, %c0_i32_1 : i32, i32, i32
  }
  func.func @transform_5(%arg0: i32) -> (i32, i32, i32) {
    %c0_i32 = arith.constant 0 : i32
    %c0_i32_0 = arith.constant 0 : i32
    %c0_i32_1 = arith.constant 0 : i32
    %c0_i32_2 = arith.constant 0 : i32
    return %c0_i32, %c0_i32_0, %c0_i32_1 : i32, i32, i32
  }
  func.func @transform_6(%arg0: i32) -> (i32, i32) {
    %c0_i32 = arith.constant 0 : i32
    %c0_i32_0 = arith.constant 0 : i32
    %c0_i32_1 = arith.constant 0 : i32
    return %c0_i32, %c0_i32_0 : i32, i32
  }
  func.func @transform_7(%arg0: i32) -> (i32, i32) {
    %c0_i32 = arith.constant 0 : i32
    %c0_i32_0 = arith.constant 0 : i32
    %c0_i32_1 = arith.constant 0 : i32
    return %c0_i32, %c0_i32_0 : i32, i32
  }
  func.func @transform_8(%arg0: i32) -> (i32, i32) {
    %c0_i32 = arith.constant 0 : i32
    %c0_i32_0 = arith.constant 0 : i32
    %c0_i32_1 = arith.constant 0 : i32
    return %c0_i32, %c0_i32_0 : i32, i32
  }
  func.func @transform_9(%arg0: i32) -> (i32, i32) {
    %c0_i32 = arith.constant 0 : i32
    %c0_i32_0 = arith.constant 0 : i32
    %c0_i32_1 = arith.constant 0 : i32
    return %c0_i32, %c0_i32_0 : i32, i32
  }
  func.func @transform_10(%arg0: i32) -> (i32, i32) {
    %c0_i32 = arith.constant 0 : i32
    %c0_i32_0 = arith.constant 0 : i32
    %c0_i32_1 = arith.constant 0 : i32
    return %c0_i32, %c0_i32_0 : i32, i32
  }
  func.func @transform_11(%arg0: i32) -> (i32, i32) {
    %c0_i32 = arith.constant 0 : i32
    %c0_i32_0 = arith.constant 0 : i32
    %c0_i32_1 = arith.constant 0 : i32
    return %c0_i32, %c0_i32_0 : i32, i32
  }
  func.func @transform_12(%arg0: i32) -> (i32, i32) {
    %c0_i32 = arith.constant 0 : i32
    %c0_i32_0 = arith.constant 0 : i32
    %c0_i32_1 = arith.constant 0 : i32
    return %c0_i32, %c0_i32_0 : i32, i32
  }
  func.func @transform_13(%arg0: i32) -> (i32, i32, i32) {
    %c0_i32 = arith.constant 0 : i32
    %c0_i32_0 = arith.constant 0 : i32
    %c0_i32_1 = arith.constant 0 : i32
    return %arg0, %c0_i32, %c0_i32_0 : i32, i32, i32
  }
}

</mosaic_0001>

<llo_original>
// kernel: lenet_forward.1
$region0: #{lenet_forward.1}
  #allocation0 [shape = 'u32[]', space=smem, size = 0x4, offset = 0x4, fixed_abs, tag = 'smem constant byte address 0x4 - core index']
  #allocation1 [shape = 'u32[144,128]{1,0:T(1,128)}', space=vmem, size = 0x12000, scoped, tag = 'internal scratch']
  %s0 = inlined_call_operand.vmem [shape: f32[2,32,32], index: 0, kind: input, shape index: {}]
  %s1 = inlined_call_operand.vmem [shape: f32[5,28,32], index: 1, kind: input, shape index: {}]
  %s2 = inlined_call_operand.vmem [shape: f32[5,32,168], index: 2, kind: input, shape index: {}]
  %s3 = inlined_call_operand.vmem [shape: f32[1,168], index: 3, kind: input, shape index: {}]
  %s4 = inlined_call_operand.vmem [shape: f32[5,10,14], index: 4, kind: input, shape index: {}]
  %s5 = inlined_call_operand.vmem [shape: f32[5,84,160], index: 5, kind: input, shape index: {}]
  %s6 = inlined_call_operand.vmem [shape: f32[1,160], index: 6, kind: input, shape index: {}]
  %s7 = inlined_call_operand.vmem [shape: f32[400,120], index: 7, kind: input, shape index: {}]
  %s8 = inlined_call_operand.vmem [shape: f32[1,120], index: 8, kind: input, shape index: {}]
  %s9 = inlined_call_operand.vmem [shape: f32[120,84], index: 9, kind: input, shape index: {}]
  %s10 = inlined_call_operand.vmem [shape: f32[1,84], index: 10, kind: input, shape index: {}]
  %s11 = inlined_call_operand.vmem [shape: f32[84,10], index: 11, kind: input, shape index: {}]
  %s12 = inlined_call_operand.vmem [shape: f32[1,10], index: 12, kind: input, shape index: {}]
  %s13 = inlined_call_operand.hbm [shape: f32[2,1,10], index: 13, kind: output, shape index: {}]
  %s14 = sld [smem:[#allocation0]]
  $region85: #{lenet_forward.1} parent=0
    _
  %s16 = ssub.s32 1, %s14
  %s17 = scalar_select 0, %s16, %s14
  $region1: #{lenet_forward.1} parent=0
    #allocation2 [shape = 'u8[1024]{0}', space=vmem, size = 0x400, scoped, tag = 'output window, operand 0']
    #allocation3 [shape = 's32[2]{0}', space=sflag, size = 0x8, scoped, tag = 'scoped memory for lenet_forward.1']
    %18 = vsyncpa [#allocation3], 0
    %s19 = scalar_lea.sflag [#allocation3], 1
    %20 = vsyncpa %s19, 0
    loop: start=0, step=1, limit=4
    $region2: #{lenet_forward.1} parent=1 // loop_pre_header
      _
    $region3: #{lenet_forward.1} parent=1 // loop_header
      %s22 = sphi 0, %s26
      %p23 = scmp.ge.s32.totalorder %s22, 4
      %s32 = sphi 0, %s34
      %s35 = sphi 0, %s32
      %s36 = sphi 0, %s35
      %s52 = sphi 0, %s36
      %s56 = sphi 0, %s56
      %s58 = sphi 0, %s56
      %s59 = sphi 0, %s58
      %s73 = sphi 0, %s59
      %s77 = sphi 0, %s77
      %s79 = sphi 0, %s77
      %s80 = sphi 0, %s79
      %s94 = sphi 0, %s80
      %s98 = sphi 0, %s98
      %s100 = sphi 0, %s98
      %s101 = sphi 0, %s100
      %s115 = sphi 0, %s101
      %s119 = sphi 0, %s119
      %s121 = sphi 0, %s119
      %s122 = sphi 0, %s121
      %s136 = sphi 0, %s122
      %s140 = sphi 0, %s140
      %s142 = sphi 0, %s140
      %s143 = sphi 0, %s142
      %s157 = sphi 0, %s143
      %s161 = sphi 0, %s161
      %s163 = sphi 0, %s161
      %s164 = sphi 0, %s163
      %s178 = sphi 0, %s164
      %s182 = sphi 0, %s182
      %s184 = sphi 0, %s182
      %s185 = sphi 0, %s184
      %s199 = sphi 0, %s185
      %s203 = sphi 0, %s203
      %s205 = sphi 0, %s203
      %s206 = sphi 0, %s205
      %s220 = sphi 0, %s206
      %s224 = sphi 0, %s224
      %s226 = sphi 0, %s224
      %s227 = sphi 0, %s226
      %s241 = sphi 0, %s227
      %s245 = sphi 0, %s245
      %s247 = sphi 0, %s245
      %s248 = sphi 0, %s247
      %s262 = sphi 0, %s248
      %s266 = sphi 0, %s266
      %s268 = sphi 0, %s266
      %s269 = sphi 0, %s268
      %s283 = sphi 0, %s269
      %s287 = sphi 0, %s287
      %s289 = sphi 0, %s287
      %s290 = sphi 0, %s289
      %s304 = sphi 0, %s290
      %s310 = sphi 0, %s312
      %s313 = sphi 0, %s310
      %s314 = sphi 0, %s313
      %s330 = sphi 0, %s314
    $region4: #{lenet_forward.1} parent=1 // loop_header_branch
      %25 = sbr.rel (%p23) target = $region8
    $region5: #{lenet_forward.1} parent=1 // loop_body
      %s27 = ssub.s32 %s22, 1
      %s28 = ssub.s32 %s22, 2
      %s29 = sadd.s32 %s22, 1
      %s30 = ssub.s32 %s22, %s29
      %p31 = scmp.eq.s32.totalorder %s30, 0
      %s33 = sadd.s32 %s32, 1
      %s34 = scalar_select %p31, %s32, %s33
      %p37 = pneg %p31
      %p38 = scmp.eq.s32.totalorder %s22, 1
      %p39 = por %p37, %p38
      %p40 = scmp.ne.s32.totalorder %s32, %s35
      %p41 = scmp.eq.s32.totalorder %s22, 0
      %p42 = por %p40, %p41
      %p43 = scmp.ne.s32.totalorder %s32, %s35
      %p44 = scmp.eq.s32.totalorder %s27, 1
      %p45 = por %p43, %p44
      %p46 = scmp.ne.s32.totalorder %s35, %s36
      %p47 = scmp.eq.s32.totalorder %s27, 0
      %p48 = por %p46, %p47
      %p49 = scmp.ne.s32.totalorder %s35, %s36
      %p50 = scmp.eq.s32.totalorder %s28, 1
      %p51 = por %p49, %p50
      %p53 = scmp.ne.s32.totalorder %s36, %s52
      %p54 = scmp.eq.s32.totalorder %s28, 0
      %p55 = por %p53, %p54
      %s57 = sadd.s32 %s56, 1
      %p60 = scmp.eq.s32.totalorder %s22, 1
      %p61 = scmp.ne.s32.totalorder %s56, %s58
      %p62 = scmp.eq.s32.totalorder %s22, 0
      %p63 = por %p61, %p62
      %p64 = scmp.ne.s32.totalorder %s56, %s58
      %p65 = scmp.eq.s32.totalorder %s27, 1
      %p66 = por %p64, %p65
      %p67 = scmp.ne.s32.totalorder %s58, %s59
      %p68 = scmp.eq.s32.totalorder %s27, 0
      %p69 = por %p67, %p68
      %p70 = scmp.ne.s32.totalorder %s58, %s59
      %p71 = scmp.eq.s32.totalorder %s28, 1
      %p72 = por %p70, %p71
      %p74 = scmp.ne.s32.totalorder %s59, %s73
      %p75 = scmp.eq.s32.totalorder %s28, 0
      %p76 = por %p74, %p75
      %s78 = sadd.s32 %s77, 1
      %p81 = scmp.eq.s32.totalorder %s22, 1
      %p82 = scmp.ne.s32.totalorder %s77, %s79
      %p83 = scmp.eq.s32.totalorder %s22, 0
      %p84 = por %p82, %p83
      %p85 = scmp.ne.s32.totalorder %s77, %s79
      %p86 = scmp.eq.s32.totalorder %s27, 1
      %p87 = por %p85, %p86
      %p88 = scmp.ne.s32.totalorder %s79, %s80
      %p89 = scmp.eq.s32.totalorder %s27, 0
      %p90 = por %p88, %p89
      %p91 = scmp.ne.s32.totalorder %s79, %s80
      %p92 = scmp.eq.s32.totalorder %s28, 1
      %p93 = por %p91, %p92
      %p95 = scmp.ne.s32.totalorder %s80, %s94
      %p96 = scmp.eq.s32.totalorder %s28, 0
      %p97 = por %p95, %p96
      %s99 = sadd.s32 %s98, 1
      %p102 = scmp.eq.s32.totalorder %s22, 1
      %p103 = scmp.ne.s32.totalorder %s98, %s100
      %p104 = scmp.eq.s32.totalorder %s22, 0
      %p105 = por %p103, %p104
      %p106 = scmp.ne.s32.totalorder %s98, %s100
      %p107 = scmp.eq.s32.totalorder %s27, 1
      %p108 = por %p106, %p107
      %p109 = scmp.ne.s32.totalorder %s100, %s101
      %p110 = scmp.eq.s32.totalorder %s27, 0
      %p111 = por %p109, %p110
      %p112 = scmp.ne.s32.totalorder %s100, %s101
      %p113 = scmp.eq.s32.totalorder %s28, 1
      %p114 = por %p112, %p113
      %p116 = scmp.ne.s32.totalorder %s101, %s115
      %p117 = scmp.eq.s32.totalorder %s28, 0
      %p118 = por %p116, %p117
      %s120 = sadd.s32 %s119, 1
      %p123 = scmp.eq.s32.totalorder %s22, 1
      %p124 = scmp.ne.s32.totalorder %s119, %s121
      %p125 = scmp.eq.s32.totalorder %s22, 0
      %p126 = por %p124, %p125
      %p127 = scmp.ne.s32.totalorder %s119, %s121
      %p128 = scmp.eq.s32.totalorder %s27, 1
      %p129 = por %p127, %p128
      %p130 = scmp.ne.s32.totalorder %s121, %s122
      %p131 = scmp.eq.s32.totalorder %s27, 0
      %p132 = por %p130, %p131
      %p133 = scmp.ne.s32.totalorder %s121, %s122
      %p134 = scmp.eq.s32.totalorder %s28, 1
      %p135 = por %p133, %p134
      %p137 = scmp.ne.s32.totalorder %s122, %s136
      %p138 = scmp.eq.s32.totalorder %s28, 0
      %p139 = por %p137, %p138
      %s141 = sadd.s32 %s140, 1
      %p144 = scmp.eq.s32.totalorder %s22, 1
      %p145 = scmp.ne.s32.totalorder %s140, %s142
      %p146 = scmp.eq.s32.totalorder %s22, 0
      %p147 = por %p145, %p146
      %p148 = scmp.ne.s32.totalorder %s140, %s142
      %p149 = scmp.eq.s32.totalorder %s27, 1
      %p150 = por %p148, %p149
      %p151 = scmp.ne.s32.totalorder %s142, %s143
      %p152 = scmp.eq.s32.totalorder %s27, 0
      %p153 = por %p151, %p152
      %p154 = scmp.ne.s32.totalorder %s142, %s143
      %p155 = scmp.eq.s32.totalorder %s28, 1
      %p156 = por %p154, %p155
      %p158 = scmp.ne.s32.totalorder %s143, %s157
      %p159 = scmp.eq.s32.totalorder %s28, 0
      %p160 = por %p158, %p159
      %s162 = sadd.s32 %s161, 1
      %p165 = scmp.eq.s32.totalorder %s22, 1
      %p166 = scmp.ne.s32.totalorder %s161, %s163
      %p167 = scmp.eq.s32.totalorder %s22, 0
      %p168 = por %p166, %p167
      %p169 = scmp.ne.s32.totalorder %s161, %s163
      %p170 = scmp.eq.s32.totalorder %s27, 1
      %p171 = por %p169, %p170
      %p172 = scmp.ne.s32.totalorder %s163, %s164
      %p173 = scmp.eq.s32.totalorder %s27, 0
      %p174 = por %p172, %p173
      %p175 = scmp.ne.s32.totalorder %s163, %s164
      %p176 = scmp.eq.s32.totalorder %s28, 1
      %p177 = por %p175, %p176
      %p179 = scmp.ne.s32.totalorder %s164, %s178
      %p180 = scmp.eq.s32.totalorder %s28, 0
      %p181 = por %p179, %p180
      %s183 = sadd.s32 %s182, 1
      %p186 = scmp.eq.s32.totalorder %s22, 1
      %p187 = scmp.ne.s32.totalorder %s182, %s184
      %p188 = scmp.eq.s32.totalorder %s22, 0
      %p189 = por %p187, %p188
      %p190 = scmp.ne.s32.totalorder %s182, %s184
      %p191 = scmp.eq.s32.totalorder %s27, 1
      %p192 = por %p190, %p191
      %p193 = scmp.ne.s32.totalorder %s184, %s185
      %p194 = scmp.eq.s32.totalorder %s27, 0
      %p195 = por %p193, %p194
      %p196 = scmp.ne.s32.totalorder %s184, %s185
      %p197 = scmp.eq.s32.totalorder %s28, 1
      %p198 = por %p196, %p197
      %p200 = scmp.ne.s32.totalorder %s185, %s199
      %p201 = scmp.eq.s32.totalorder %s28, 0
      %p202 = por %p200, %p201
      %s204 = sadd.s32 %s203, 1
      %p207 = scmp.eq.s32.totalorder %s22, 1
      %p208 = scmp.ne.s32.totalorder %s203, %s205
      %p209 = scmp.eq.s32.totalorder %s22, 0
      %p210 = por %p208, %p209
      %p211 = scmp.ne.s32.totalorder %s203, %s205
      %p212 = scmp.eq.s32.totalorder %s27, 1
      %p213 = por %p211, %p212
      %p214 = scmp.ne.s32.totalorder %s205, %s206
      %p215 = scmp.eq.s32.totalorder %s27, 0
      %p216 = por %p214, %p215
      %p217 = scmp.ne.s32.totalorder %s205, %s206
      %p218 = scmp.eq.s32.totalorder %s28, 1
      %p219 = por %p217, %p218
      %p221 = scmp.ne.s32.totalorder %s206, %s220
      %p222 = scmp.eq.s32.totalorder %s28, 0
      %p223 = por %p221, %p222
      %s225 = sadd.s32 %s224, 1
      %p228 = scmp.eq.s32.totalorder %s22, 1
      %p229 = scmp.ne.s32.totalorder %s224, %s226
      %p230 = scmp.eq.s32.totalorder %s22, 0
      %p231 = por %p229, %p230
      %p232 = scmp.ne.s32.totalorder %s224, %s226
      %p233 = scmp.eq.s32.totalorder %s27, 1
      %p234 = por %p232, %p233
      %p235 = scmp.ne.s32.totalorder %s226, %s227
      %p236 = scmp.eq.s32.totalorder %s27, 0
      %p237 = por %p235, %p236
      %p238 = scmp.ne.s32.totalorder %s226, %s227
      %p239 = scmp.eq.s32.totalorder %s28, 1
      %p240 = por %p238, %p239
      %p242 = scmp.ne.s32.totalorder %s227, %s241
      %p243 = scmp.eq.s32.totalorder %s28, 0
      %p244 = por %p242, %p243
      %s246 = sadd.s32 %s245, 1
      %p249 = scmp.eq.s32.totalorder %s22, 1
      %p250 = scmp.ne.s32.totalorder %s245, %s247
      %p251 = scmp.eq.s32.totalorder %s22, 0
      %p252 = por %p250, %p251
      %p253 = scmp.ne.s32.totalorder %s245, %s247
      %p254 = scmp.eq.s32.totalorder %s27, 1
      %p255 = por %p253, %p254
      %p256 = scmp.ne.s32.totalorder %s247, %s248
      %p257 = scmp.eq.s32.totalorder %s27, 0
      %p258 = por %p256, %p257
      %p259 = scmp.ne.s32.totalorder %s247, %s248
      %p260 = scmp.eq.s32.totalorder %s28, 1
      %p261 = por %p259, %p260
      %p263 = scmp.ne.s32.totalorder %s248, %s262
      %p264 = scmp.eq.s32.totalorder %s28, 0
      %p265 = por %p263, %p264
      %s267 = sadd.s32 %s266, 1
      %p270 = scmp.eq.s32.totalorder %s22, 1
      %p271 = scmp.ne.s32.totalorder %s266, %s268
      %p272 = scmp.eq.s32.totalorder %s22, 0
      %p273 = por %p271, %p272
      %p274 = scmp.ne.s32.totalorder %s266, %s268
      %p275 = scmp.eq.s32.totalorder %s27, 1
      %p276 = por %p274, %p275
      %p277 = scmp.ne.s32.totalorder %s268, %s269
      %p278 = scmp.eq.s32.totalorder %s27, 0
      %p279 = por %p277, %p278
      %p280 = scmp.ne.s32.totalorder %s268, %s269
      %p281 = scmp.eq.s32.totalorder %s28, 1
      %p282 = por %p280, %p281
      %p284 = scmp.ne.s32.totalorder %s269, %s283
      %p285 = scmp.eq.s32.totalorder %s28, 0
      %p286 = por %p284, %p285
      %s288 = sadd.s32 %s287, 1
      %p291 = scmp.eq.s32.totalorder %s22, 1
      %p292 = scmp.ne.s32.totalorder %s287, %s289
      %p293 = scmp.eq.s32.totalorder %s22, 0
      %p294 = por %p292, %p293
      %p295 = scmp.ne.s32.totalorder %s287, %s289
      %p296 = scmp.eq.s32.totalorder %s27, 1
      %p297 = por %p295, %p296
      %p298 = scmp.ne.s32.totalorder %s289, %s290
      %p299 = scmp.eq.s32.totalorder %s27, 0
      %p300 = por %p298, %p299
      %p301 = scmp.ne.s32.totalorder %s289, %s290
      %p302 = scmp.eq.s32.totalorder %s28, 1
      %p303 = por %p301, %p302
      %p305 = scmp.ne.s32.totalorder %s290, %s304
      %p306 = scmp.eq.s32.totalorder %s28, 0
      %p307 = por %p305, %p306
      %s308 = ssub.s32 %s22, %s29
      %p309 = scmp.eq.s32.totalorder %s308, 0
      %s311 = sadd.s32 %s310, 1
      %s312 = scalar_select %p309, %s310, %s311
      %p315 = pneg %p309
      %p316 = scmp.eq.s32.totalorder %s22, 1
      %p317 = por %p315, %p316
      %p318 = scmp.ne.s32.totalorder %s310, %s313
      %p319 = scmp.eq.s32.totalorder %s22, 0
      %p320 = por %p318, %p319
      %p321 = scmp.ne.s32.totalorder %s310, %s313
      %p322 = scmp.eq.s32.totalorder %s27, 1
      %p323 = por %p321, %p322
      %p324 = scmp.ne.s32.totalorder %s313, %s314
      %p325 = scmp.eq.s32.totalorder %s27, 0
      %p326 = por %p324, %p325
      %p327 = scmp.ne.s32.totalorder %s313, %s314
      %p328 = scmp.eq.s32.totalorder %s28, 1
      %p329 = por %p327, %p328
      %p331 = scmp.ne.s32.totalorder %s314, %s330
      %p332 = scmp.eq.s32.totalorder %s28, 0
      %p333 = por %p331, %p332
      %p334 = scmp.le.s32.totalorder 1, %s22
      %p335 = scmp.lt.s32.totalorder %s22, 3
      %p336 = pnand %p334, %p335
      %p337 = pneg %p336
      // Predicated region
      $region9: #{lenet_forward.1} parent=5 // pred_check
        _
      $region10: #{lenet_forward.1} parent=5 // pred_check_branch
        %339 = sbr.rel (%p336) target = $region12
      $region11: #{lenet_forward.1} parent=5 // pred_region
        %s340 = ssub.s32 %s22, 1
        // Predicated region
        $region13: #{lenet_forward.1} parent=11 // pred_check
          %p341 = pneg %p69
        $region14: #{lenet_forward.1} parent=11 // pred_check_branch
          %343 = sbr.rel (%p341) target = $region16
        $region15: #{lenet_forward.1} parent=11 // pred_region
          _
        $region16: #{lenet_forward.1} parent=11 // pred_fallthru
          _
        // Predicated region
        $region17: #{lenet_forward.1} parent=11 // pred_check
          %p344 = pneg %p90
        $region18: #{lenet_forward.1} parent=11 // pred_check_branch
          %346 = sbr.rel (%p344) target = $region20
        $region19: #{lenet_forward.1} parent=11 // pred_region
          _
        $region20: #{lenet_forward.1} parent=11 // pred_fallthru
          _
        // Predicated region
        $region21: #{lenet_forward.1} parent=11 // pred_check
          %p347 = pneg %p111
        $region22: #{lenet_forward.1} parent=11 // pred_check_branch
          %349 = sbr.rel (%p347) target = $region24
        $region23: #{lenet_forward.1} parent=11 // pred_region
          _
        $region24: #{lenet_forward.1} parent=11 // pred_fallthru
          _
        // Predicated region
        $region25: #{lenet_forward.1} parent=11 // pred_check
          %p350 = pneg %p132
        $region26: #{lenet_forward.1} parent=11 // pred_check_branch
          %352 = sbr.rel (%p350) target = $region28
        $region27: #{lenet_forward.1} parent=11 // pred_region
          _
        $region28: #{lenet_forward.1} parent=11 // pred_fallthru
          _
        // Predicated region
        $region29: #{lenet_forward.1} parent=11 // pred_check
          %p353 = pneg %p153
        $region30: #{lenet_forward.1} parent=11 // pred_check_branch
          %355 = sbr.rel (%p353) target = $region32
        $region31: #{lenet_forward.1} parent=11 // pred_region
          _
        $region32: #{lenet_forward.1} parent=11 // pred_fallthru
          _
        // Predicated region
        $region33: #{lenet_forward.1} parent=11 // pred_check
          %p356 = pneg %p174
        $region34: #{lenet_forward.1} parent=11 // pred_check_branch
          %358 = sbr.rel (%p356) target = $region36
        $region35: #{lenet_forward.1} parent=11 // pred_region
          _
        $region36: #{lenet_forward.1} parent=11 // pred_fallthru
          _
        // Predicated region
        $region37: #{lenet_forward.1} parent=11 // pred_check
          %p359 = pneg %p195
        $region38: #{lenet_forward.1} parent=11 // pred_check_branch
          %361 = sbr.rel (%p359) target = $region40
        $region39: #{lenet_forward.1} parent=11 // pred_region
          _
        $region40: #{lenet_forward.1} parent=11 // pred_fallthru
          _
        // Predicated region
        $region41: #{lenet_forward.1} parent=11 // pred_check
          %p362 = pneg %p216
        $region42: #{lenet_forward.1} parent=11 // pred_check_branch
          %364 = sbr.rel (%p362) target = $region44
        $region43: #{lenet_forward.1} parent=11 // pred_region
          _
        $region44: #{lenet_forward.1} parent=11 // pred_fallthru
          _
        // Predicated region
        $region45: #{lenet_forward.1} parent=11 // pred_check
          %p365 = pneg %p237
        $region46: #{lenet_forward.1} parent=11 // pred_check_branch
          %367 = sbr.rel (%p365) target = $region48
        $region47: #{lenet_forward.1} parent=11 // pred_region
          _
        $region48: #{lenet_forward.1} parent=11 // pred_fallthru
          _
        // Predicated region
        $region49: #{lenet_forward.1} parent=11 // pred_check
          %p368 = pneg %p258
        $region50: #{lenet_forward.1} parent=11 // pred_check_branch
          %370 = sbr.rel (%p368) target = $region52
        $region51: #{lenet_forward.1} parent=11 // pred_region
          _
        $region52: #{lenet_forward.1} parent=11 // pred_fallthru
          _
        // Predicated region
        $region53: #{lenet_forward.1} parent=11 // pred_check
          %p371 = pneg %p279
        $region54: #{lenet_forward.1} parent=11 // pred_check_branch
          %373 = sbr.rel (%p371) target = $region56
        $region55: #{lenet_forward.1} parent=11 // pred_region
          _
        $region56: #{lenet_forward.1} parent=11 // pred_fallthru
          _
        // Predicated region
        $region57: #{lenet_forward.1} parent=11 // pred_check
          %p374 = pneg %p300
        $region58: #{lenet_forward.1} parent=11 // pred_check_branch
          %376 = sbr.rel (%p374) target = $region60
        $region59: #{lenet_forward.1} parent=11 // pred_region
          _
        $region60: #{lenet_forward.1} parent=11 // pred_fallthru
          _
      $region12: #{lenet_forward.1} parent=5 // pred_fallthru
        _
      %p377 = scmp.lt.s32.totalorder %s22, 2
      // Predicated region
      $region61: #{lenet_forward.1} parent=5 // pred_check
        %p378 = pneg %p377
      $region62: #{lenet_forward.1} parent=5 // pred_check_branch
        %380 = sbr.rel (%p378) target = $region64
      $region63: #{lenet_forward.1} parent=5 // pred_region
        // Predicated region
        $region65: #{lenet_forward.1} parent=63 // pred_check
          %p381 = pneg %p42
        $region66: #{lenet_forward.1} parent=63 // pred_check_branch
          %383 = sbr.rel (%p381) target = $region68
        $region67: #{lenet_forward.1} parent=63 // pred_region
          %p384 = scmp.lt.s32.totalorder %s22, 1
          %s385 = scalar_select %p384, %s22, 1
          %s386 = smul.addr %s385, 4
          %s387 = smul.addr %s386, 8
          %s388 = scalar_lea.vmem %s0, %s387
        $region68: #{lenet_forward.1} parent=63 // pred_fallthru
          _
      $region64: #{lenet_forward.1} parent=5 // pred_fallthru
        _
      %p389 = scmp.le.s32.totalorder 1, %s22
      %p390 = scmp.lt.s32.totalorder %s22, 3
      %p391 = pnand %p389, %p390
      %p392 = pneg %p391
      // Predicated region
      $region69: #{lenet_forward.1} parent=5 // pred_check
        _
      $region70: #{lenet_forward.1} parent=5 // pred_check_branch
        %394 = sbr.rel (%p391) target = $region72
      $region71: #{lenet_forward.1} parent=5 // pred_region
        %s395 = ssub.s32 %s22, 1
        %p396 = scmp.lt.s32.totalorder %s27, 1
        %s397 = scalar_select %p396, %s27, 1
        %s398 = smul.addr %s397, 4
        %s399 = smul.addr %s398, 8
        %s400 = scalar_lea.vmem %s0, %s399
        %p401 = pneg %p48
        %p402 = pneg %p45
        %p403 = pneg %p69
        %p404 = pneg %p66
        %p405 = pneg %p90
        %p406 = pneg %p87
        %p407 = pneg %p111
        %p408 = pneg %p108
        %p409 = pneg %p132
        %p410 = pneg %p129
        %p411 = pneg %p153
        %p412 = pneg %p150
        %p413 = pneg %p174
        %p414 = pneg %p171
        %p415 = pneg %p195
        %p416 = pneg %p192
        %p417 = pneg %p216
        %p418 = pneg %p213
        %p419 = pneg %p237
        %p420 = pneg %p234
        %p421 = pneg %p258
        %p422 = pneg %p255
        %p423 = pneg %p279
        %p424 = pneg %p276
        %p425 = pneg %p300
        %p426 = pneg %p297
        %p427 = pneg %p326
        %p428 = pneg %p323
        %s429 = sand.u32 %s313, 1
        %s430 = scalar_lea.sflag [#allocation3], %s429
        %s431 = sand.u32 %s313, 1
        %s432 = scalar_lea.vmem [#allocation2], %s431
        %p433 = scmp.lt.s32.totalorder %s27, 1
        %s434 = scalar_select %p433, %s27, 1
        %s435 = smul.addr %s434, 4
        %s436 = smul.addr %s435, 8
        %s437 = scalar_lea.vmem %s0, %s436
        %v438 = vld [vmem:[%s437] sm:$0xff]
        %v439 = vld [vmem:[%s437 + $0x8] sm:$0xff]
        %v440 = vld [vmem:[%s437 + $0x10] sm:$0xff]
        %v441 = vld [vmem:[%s437 + $0x18] sm:$0xff]
        %v442 = vld [vmem:[%s1] sm:$0xff]
        %v443 = vld [vmem:[%s1 + $0x8] sm:$0xff]
        %v444 = vld [vmem:[%s1 + $0x10] sm:$0xff]
        %v445 = vld [vmem:[%s1 + $0x18] sm:$0xf]
        %vm446 = vcmask 261120
        %v448 = vsel %vm446, %v442, 0
        %v451 = vsel %vm446, %v443, 0
        %v454 = vsel %vm446, %v444, 0
        %v457 = vsel %vm446, %v445, 0
        %459 = vmatprep.subr.mxu0 0.0
        %460 = vmatpush1.msra.mxu0 %v438
        %461 = vmatprep.subr.mxu0 0.0
        %462 = vmatpush1.msra.mxu0 %v439
        %463 = vmatprep.subr.mxu0 0.0
        %464 = vmatpush1.msra.mxu0 %v440
        %465 = vmatprep.subr.mxu0 0.0
        %466 = vmatpush1.msra.mxu0 %v441
        %467 = vmatprep.subr.mxu0 0.0
        %468 = vmatpush1.msra.mxu0 0.0
        %469 = vmatprep.subr.mxu0 0.0
        %470 = vmatpush1.msra.mxu0 0.0
        %471 = vmatprep.subr.mxu0 0.0
        %472 = vmatpush1.msra.mxu0 0.0
        %473 = vmatprep.subr.mxu0 0.0
        %474 = vmatpush1.msra.mxu0 0.0
        %475 = vmatprep.subr.mxu0 0.0
        %476 = vmatpush1.msra.mxu0 0.0
        %477 = vmatprep.subr.mxu0 0.0
        %478 = vmatpush1.msra.mxu0 0.0
        %479 = vmatprep.subr.mxu0 0.0
        %480 = vmatpush1.msra.mxu0 0.0
        %481 = vmatprep.subr.mxu0 0.0
        %482 = vmatpush1.msra.mxu0 0.0
        %483 = vmatprep.subr.mxu0 0.0
        %484 = vmatpush1.msra.mxu0 0.0
        %485 = vmatprep.subr.mxu0 0.0
        %486 = vmatpush1.msra.mxu0 0.0
        %487 = vmatprep.subr.mxu0 0.0
        %488 = vmatpush1.msra.mxu0 0.0
        %489 = vmatprep.subr.mxu0 0.0
        %490 = vmatpush1.msra.mxu0 0.0
        %491 = vmatprep.subr.mxu0 0.0
        %492 = vmatpush1.msra.mxu0 0.0
        %493 = vmatprep.subr.mxu0 0.0
        %494 = vmatpush1.msra.mxu0 0.0
        %495 = vmatprep.subr.mxu0 0.0
        %496 = vmatpush1.msra.mxu0 0.0
        %497 = vmatprep.subr.mxu0 0.0
        %498 = vmatpush1.msra.mxu0 0.0
        %499 = vmatprep.subr.mxu0 0.0
        %500 = vmatpush1.msra.mxu0 0.0
        %501 = vmatprep.subr.mxu0 0.0
        %502 = vmatpush1.msra.mxu0 0.0
        %503 = vmatprep.subr.mxu0 0.0
        %504 = vmatpush1.msra.mxu0 0.0
        %505 = vmatprep.subr.mxu0 0.0
        %506 = vmatpush1.msra.mxu0 0.0
        %507 = vmatprep.subr.mxu0 0.0
        %508 = vmatpush1.msra.mxu0 0.0
        %509 = vmatprep.subr.mxu0 0.0
        %510 = vmatpush1.msra.mxu0 0.0
        %511 = vmatprep.subr.mxu0 0.0
        %512 = vmatpush1.msra.mxu0 0.0
        %513 = vmatprep.subr.mxu0 0.0
        %514 = vmatpush1.msra.mxu0 0.0
        %515 = vmatprep.subr.mxu0 0.0
        %516 = vmatpush1.msra.mxu0 0.0
        %517 = vmatprep.subr.mxu0 0.0
        %518 = vmatpush1.msra.mxu0 0.0
        %519 = vmatprep.subr.mxu0 0.0
        %520 = vmatpush1.msra.mxu0 0.0
        %521 = vmatprep.subr.mxu0 0.0
        %522 = vmatpush1.msra.mxu0 0.0
        %523 = vmatprep.mubr.f32.mxu0 0.0
        %524 = vmatmul.mubr.f32.gmra.mrb[0].mxu0 %v448
        %v525 = vpop.f32.mrb[0].mxu0
        %v526 = vadd.f32 0.0, %v525
        %v527 = vpop.f32.mrb[0].mxu0
        %528 = vmatprep.mubr.f32.mxu0 0.0
        %529 = vmatmul.mubr.f32.gmra.mrb[0].mxu0 %v451
        %v530 = vpop.f32.mrb[0].mxu0
        %v531 = vadd.f32 0.0, %v530
        %v532 = vpop.f32.mrb[0].mxu0
        %533 = vmatprep.mubr.f32.mxu0 0.0
        %534 = vmatmul.mubr.f32.gmra.mrb[0].mxu0 %v454
        %v535 = vpop.f32.mrb[0].mxu0
        %v536 = vadd.f32 0.0, %v535
        %v537 = vpop.f32.mrb[0].mxu0
        %538 = vmatprep.mubr.f32.mxu0 0.0
        %539 = vmatmul.mubr.f32.gmra.mrb[0].mxu0 %v457
        %v540 = vpop.f32.mrb[0].mxu0
        %v541 = vadd.f32 0.0, %v540
        %v542 = vpop.f32.mrb[0].mxu0
        %543 = vdwg.mxu0
        %v544 = vld [vmem:[%s2] sm:$0xff]
        %v545 = vld [vmem:[%s2 + $0x8] sm:$0xff]
        %v546 = vld [vmem:[%s2 + $0x10] sm:$0xff]
        %v547 = vld [vmem:[%s2 + $0x18] sm:$0xff]
        %v548 = vld [vmem:[%s2 + $0x20] sm:$0xff]
        %v549 = vld [vmem:[%s2 + $0x28] sm:$0xff]
        %v550 = vld [vmem:[%s2 + $0x30] sm:$0xff]
        %v551 = vld [vmem:[%s2 + $0x38] sm:$0xff]
        %s552 = scalar_lea.vmem %s1, 32
        %v553 = vld [vmem:[%s552] sm:$0xff]
        %v554 = vld [vmem:[%s552 + $0x8] sm:$0xff]
        %v555 = vld [vmem:[%s552 + $0x10] sm:$0xff]
        %v556 = vld [vmem:[%s552 + $0x18] sm:$0xf]
        %v558 = vsel %vm446, %v553, 0
        %v561 = vsel %vm446, %v554, 0
        %v564 = vsel %vm446, %v555, 0
        %v567 = vsel %vm446, %v556, 0
        %569 = vmatprep.subr.mxu0 0.0
        %570 = vmatpush1.msra.mxu0 %v438
        %571 = vmatprep.subr.mxu0 0.0
        %572 = vmatpush1.msra.mxu0 %v439
        %573 = vmatprep.subr.mxu0 0.0
        %574 = vmatpush1.msra.mxu0 %v440
        %575 = vmatprep.subr.mxu0 0.0
        %576 = vmatpush1.msra.mxu0 %v441
        %577 = vmatprep.subr.mxu0 0.0
        %578 = vmatpush1.msra.mxu0 0.0
        %579 = vmatprep.subr.mxu0 0.0
        %580 = vmatpush1.msra.mxu0 0.0
        %581 = vmatprep.subr.mxu0 0.0
        %582 = vmatpush1.msra.mxu0 0.0
        %583 = vmatprep.subr.mxu0 0.0
        %584 = vmatpush1.msra.mxu0 0.0
        %585 = vmatprep.subr.mxu0 0.0
        %586 = vmatpush1.msra.mxu0 0.0
        %587 = vmatprep.subr.mxu0 0.0
        %588 = vmatpush1.msra.mxu0 0.0
        %589 = vmatprep.subr.mxu0 0.0
        %590 = vmatpush1.msra.mxu0 0.0
        %591 = vmatprep.subr.mxu0 0.0
        %592 = vmatpush1.msra.mxu0 0.0
        %593 = vmatprep.subr.mxu0 0.0
        %594 = vmatpush1.msra.mxu0 0.0
        %595 = vmatprep.subr.mxu0 0.0
        %596 = vmatpush1.msra.mxu0 0.0
        %597 = vmatprep.subr.mxu0 0.0
        %598 = vmatpush1.msra.mxu0 0.0
        %599 = vmatprep.subr.mxu0 0.0
        %600 = vmatpush1.msra.mxu0 0.0
        %601 = vmatprep.subr.mxu0 0.0
        %602 = vmatpush1.msra.mxu0 0.0
        %603 = vmatprep.subr.mxu0 0.0
        %604 = vmatpush1.msra.mxu0 0.0
        %605 = vmatprep.subr.mxu0 0.0
        %606 = vmatpush1.msra.mxu0 0.0
        %607 = vmatprep.subr.mxu0 0.0
        %608 = vmatpush1.msra.mxu0 0.0
        %609 = vmatprep.subr.mxu0 0.0
        %610 = vmatpush1.msra.mxu0 0.0
        %611 = vmatprep.subr.mxu0 0.0
        %612 = vmatpush1.msra.mxu0 0.0
        %613 = vmatprep.subr.mxu0 0.0
        %614 = vmatpush1.msra.mxu0 0.0
        %615 = vmatprep.subr.mxu0 0.0
        %616 = vmatpush1.msra.mxu0 0.0
        %617 = vmatprep.subr.mxu0 0.0
        %618 = vmatpush1.msra.mxu0 0.0
        %619 = vmatprep.subr.mxu0 0.0
        %620 = vmatpush1.msra.mxu0 0.0
        %621 = vmatprep.subr.mxu0 0.0
        %622 = vmatpush1.msra.mxu0 0.0
        %623 = vmatprep.subr.mxu0 0.0
        %624 = vmatpush1.msra.mxu0 0.0
        %625 = vmatprep.subr.mxu0 0.0
        %626 = vmatpush1.msra.mxu0 0.0
        %627 = vmatprep.subr.mxu0 0.0
        %628 = vmatpush1.msra.mxu0 0.0
        %629 = vmatprep.subr.mxu0 0.0
        %630 = vmatpush1.msra.mxu0 0.0
        %631 = vmatprep.subr.mxu0 0.0
        %632 = vmatpush1.msra.mxu0 0.0
        %633 = vmatprep.mubr.f32.mxu0 0.0
        %634 = vmatmul.mubr.f32.gmra.mrb[0].mxu0 %v558
        %v635 = vpop.f32.mrb[0].mxu0
        %v636 = vadd.f32 0.0, %v635
        %v637 = vpop.f32.mrb[0].mxu0
        %638 = vmatprep.mubr.f32.mxu0 0.0
        %639 = vmatmul.mubr.f32.gmra.mrb[0].mxu0 %v561
        %v640 = vpop.f32.mrb[0].mxu0
        %v641 = vadd.f32 0.0, %v640
        %v642 = vpop.f32.mrb[0].mxu0
        %643 = vmatprep.mubr.f32.mxu0 0.0
        %644 = vmatmul.mubr.f32.gmra.mrb[0].mxu0 %v564
        %v645 = vpop.f32.mrb[0].mxu0
        %v646 = vadd.f32 0.0, %v645
        %v647 = vpop.f32.mrb[0].mxu0
        %648 = vmatprep.mubr.f32.mxu0 0.0
        %649 = vmatmul.mubr.f32.gmra.mrb[0].mxu0 %v567
        %v650 = vpop.f32.mrb[0].mxu0
        %v651 = vadd.f32 0.0, %v650
        %v652 = vpop.f32.mrb[0].mxu0
        %653 = vdwg.mxu0
        %s654 = scalar_lea.vmem %s2, 64
        %v655 = vld [vmem:[%s654] sm:$0xff]
        %v656 = vld [vmem:[%s654 + $0x8] sm:$0xff]
        %v657 = vld [vmem:[%s654 + $0x10] sm:$0xff]
        %v658 = vld [vmem:[%s654 + $0x18] sm:$0xff]
        %v659 = vld [vmem:[%s654 + $0x20] sm:$0xff]
        %v660 = vld [vmem:[%s654 + $0x28] sm:$0xff]
        %v661 = vld [vmem:[%s654 + $0x30] sm:$0xff]
        %v662 = vld [vmem:[%s654 + $0x38] sm:$0xff]
        %v664 = vsel %vm446, %v636, 0
        %v667 = vsel %vm446, %v641, 0
        %v670 = vsel %vm446, %v646, 0
        %v673 = vsel %vm446, %v651, 0
        %675 = vmatprep.subr.mxu0 %v656
        %676 = vmatpush1.msra.mxu0 %v655
        %677 = vmatprep.subr.mxu0 %v658
        %678 = vmatpush1.msra.mxu0 %v657
        %679 = vmatprep.subr.mxu0 %v660
        %680 = vmatpush1.msra.mxu0 %v659
        %681 = vmatprep.subr.mxu0 %v662
        %682 = vmatpush1.msra.mxu0 %v661
        %683 = vmatprep.subr.mxu0 0.0
        %684 = vmatpush1.msra.mxu0 0.0
        %685 = vmatprep.subr.mxu0 0.0
        %686 = vmatpush1.msra.mxu0 0.0
        %687 = vmatprep.subr.mxu0 0.0
        %688 = vmatpush1.msra.mxu0 0.0
        %689 = vmatprep.subr.mxu0 0.0
        %690 = vmatpush1.msra.mxu0 0.0
        %691 = vmatprep.subr.mxu0 0.0
        %692 = vmatpush1.msra.mxu0 0.0
        %693 = vmatprep.subr.mxu0 0.0
        %694 = vmatpush1.msra.mxu0 0.0
        %695 = vmatprep.subr.mxu0 0.0
        %696 = vmatpush1.msra.mxu0 0.0
        %697 = vmatprep.subr.mxu0 0.0
        %698 = vmatpush1.msra.mxu0 0.0
        %699 = vmatprep.subr.mxu0 0.0
        %700 = vmatpush1.msra.mxu0 0.0
        %701 = vmatprep.subr.mxu0 0.0
        %702 = vmatpush1.msra.mxu0 0.0
        %703 = vmatprep.subr.mxu0 0.0
        %704 = vmatpush1.msra.mxu0 0.0
        %705 = vmatprep.subr.mxu0 0.0
        %706 = vmatpush1.msra.mxu0 0.0
        %707 = vmatprep.subr.mxu0 0.0
        %708 = vmatpush1.msra.mxu0 0.0
        %709 = vmatprep.subr.mxu0 0.0
        %710 = vmatpush1.msra.mxu0 0.0
        %711 = vmatprep.subr.mxu0 0.0
        %712 = vmatpush1.msra.mxu0 0.0
        %713 = vmatprep.subr.mxu0 0.0
        %714 = vmatpush1.msra.mxu0 0.0
        %715 = vmatprep.subr.mxu0 0.0
        %716 = vmatpush1.msra.mxu0 0.0
        %717 = vmatprep.subr.mxu0 0.0
        %718 = vmatpush1.msra.mxu0 0.0
        %719 = vmatprep.subr.mxu0 0.0
        %720 = vmatpush1.msra.mxu0 0.0
        %721 = vmatprep.subr.mxu0 0.0
        %722 = vmatpush1.msra.mxu0 0.0
        %723 = vmatprep.subr.mxu0 0.0
        %724 = vmatpush1.msra.mxu0 0.0
        %725 = vmatprep.subr.mxu0 0.0
        %726 = vmatpush1.msra.mxu0 0.0
        %727 = vmatprep.subr.mxu0 0.0
        %728 = vmatpush1.msra.mxu0 0.0
        %729 = vmatprep.subr.mxu0 0.0
        %730 = vmatpush1.msra.mxu0 0.0
        %731 = vmatprep.subr.mxu0 0.0
        %732 = vmatpush1.msra.mxu0 0.0
        %733 = vmatprep.subr.mxu0 0.0
        %734 = vmatpush1.msra.mxu0 0.0
        %735 = vmatprep.subr.mxu0 0.0
        %736 = vmatpush1.msra.mxu0 0.0
        %737 = vmatprep.subr.mxu0 0.0
        %738 = vmatpush1.msra.mxu0 0.0
        %739 = vmatprep.mubr.f32.mxu0 0.0
        %740 = vmatmul.mubr.f32.gmra.mrb[0].mxu0 %v664
        %v741 = vpop.f32.mrb[0].mxu0
        %v742 = vadd.f32 0.0, %v741
        %v743 = vpop.f32.mrb[0].mxu0
        %v744 = vadd.f32 0.0, %v743
        %745 = vmatprep.mubr.f32.mxu0 0.0
        %746 = vmatmul.mubr.f32.gmra.mrb[0].mxu0 %v667
        %v747 = vpop.f32.mrb[0].mxu0
        %v748 = vadd.f32 0.0, %v747
        %v749 = vpop.f32.mrb[0].mxu0
        %v750 = vadd.f32 0.0, %v749
        %751 = vmatprep.mubr.f32.mxu0 0.0
        %752 = vmatmul.mubr.f32.gmra.mrb[0].mxu0 %v670
        %v753 = vpop.f32.mrb[0].mxu0
        %v754 = vadd.f32 0.0, %v753
        %v755 = vpop.f32.mrb[0].mxu0
        %v756 = vadd.f32 0.0, %v755
        %757 = vmatprep.mubr.f32.mxu0 0.0
        %758 = vmatmul.mubr.f32.gmra.mrb[0].mxu0 %v673
        %v759 = vpop.f32.mrb[0].mxu0
        %v760 = vadd.f32 0.0, %v759
        %v761 = vpop.f32.mrb[0].mxu0
        %v762 = vadd.f32 0.0, %v761
        %763 = vdwg.mxu0
        %v765 = vsel %vm446, %v526, 0
        %v768 = vsel %vm446, %v531, 0
        %v771 = vsel %vm446, %v536, 0
        %v774 = vsel %vm446, %v541, 0
        %776 = vmatprep.subr.mxu0 %v545
        %777 = vmatpush1.msra.mxu0 %v544
        %778 = vmatprep.subr.mxu0 %v547
        %779 = vmatpush1.msra.mxu0 %v546
        %780 = vmatprep.subr.mxu0 %v549
        %781 = vmatpush1.msra.mxu0 %v548
        %782 = vmatprep.subr.mxu0 %v551
        %783 = vmatpush1.msra.mxu0 %v550
        %784 = vmatprep.subr.mxu0 0.0
        %785 = vmatpush1.msra.mxu0 0.0
        %786 = vmatprep.subr.mxu0 0.0
        %787 = vmatpush1.msra.mxu0 0.0
        %788 = vmatprep.subr.mxu0 0.0
        %789 = vmatpush1.msra.mxu0 0.0
        %790 = vmatprep.subr.mxu0 0.0
        %791 = vmatpush1.msra.mxu0 0.0
        %792 = vmatprep.subr.mxu0 0.0
        %793 = vmatpush1.msra.mxu0 0.0
        %794 = vmatprep.subr.mxu0 0.0
        %795 = vmatpush1.msra.mxu0 0.0
        %796 = vmatprep.subr.mxu0 0.0
        %797 = vmatpush1.msra.mxu0 0.0
        %798 = vmatprep.subr.mxu0 0.0
        %799 = vmatpush1.msra.mxu0 0.0
        %800 = vmatprep.subr.mxu0 0.0
        %801 = vmatpush1.msra.mxu0 0.0
        %802 = vmatprep.subr.mxu0 0.0
        %803 = vmatpush1.msra.mxu0 0.0
        %804 = vmatprep.subr.mxu0 0.0
        %805 = vmatpush1.msra.mxu0 0.0
        %806 = vmatprep.subr.mxu0 0.0
        %807 = vmatpush1.msra.mxu0 0.0
        %808 = vmatprep.subr.mxu0 0.0
        %809 = vmatpush1.msra.mxu0 0.0
        %810 = vmatprep.subr.mxu0 0.0
        %811 = vmatpush1.msra.mxu0 0.0
        %812 = vmatprep.subr.mxu0 0.0
        %813 = vmatpush1.msra.mxu0 0.0
        %814 = vmatprep.subr.mxu0 0.0
        %815 = vmatpush1.msra.mxu0 0.0
        %816 = vmatprep.subr.mxu0 0.0
        %817 = vmatpush1.msra.mxu0 0.0
        %818 = vmatprep.subr.mxu0 0.0
        %819 = vmatpush1.msra.mxu0 0.0
        %820 = vmatprep.subr.mxu0 0.0
        %821 = vmatpush1.msra.mxu0 0.0
        %822 = vmatprep.subr.mxu0 0.0
        %823 = vmatpush1.msra.mxu0 0.0
        %824 = vmatprep.subr.mxu0 0.0
        %825 = vmatpush1.msra.mxu0 0.0
        %826 = vmatprep.subr.mxu0 0.0
        %827 = vmatpush1.msra.mxu0 0.0
        %828 = vmatprep.subr.mxu0 0.0
        %829 = vmatpush1.msra.mxu0 0.0
        %830 = vmatprep.subr.mxu0 0.0
        %831 = vmatpush1.msra.mxu0 0.0
        %832 = vmatprep.subr.mxu0 0.0
        %833 = vmatpush1.msra.mxu0 0.0
        %834 = vmatprep.subr.mxu0 0.0
        %835 = vmatpush1.msra.mxu0 0.0
        %836 = vmatprep.subr.mxu0 0.0
        %837 = vmatpush1.msra.mxu0 0.0
        %838 = vmatprep.subr.mxu0 0.0
        %839 = vmatpush1.msra.mxu0 0.0
        %840 = vmatprep.mubr.f32.mxu0 0.0
        %841 = vmatmul.mubr.f32.gmra.mrb[0].mxu0 %v765
        %v842 = vpop.f32.mrb[0].mxu0
        %v843 = vadd.f32 %v742, %v842
        %v844 = vpop.f32.mrb[0].mxu0
        %v845 = vadd.f32 %v744, %v844
        %846 = vmatprep.mubr.f32.mxu0 0.0
        %847 = vmatmul.mubr.f32.gmra.mrb[0].mxu0 %v768
        %v848 = vpop.f32.mrb[0].mxu0
        %v849 = vadd.f32 %v748, %v848
        %v850 = vpop.f32.mrb[0].mxu0
        %v851 = vadd.f32 %v750, %v850
        %852 = vmatprep.mubr.f32.mxu0 0.0
        %853 = vmatmul.mubr.f32.gmra.mrb[0].mxu0 %v771
        %v854 = vpop.f32.mrb[0].mxu0
        %v855 = vadd.f32 %v754, %v854
        %v856 = vpop.f32.mrb[0].mxu0
        %v857 = vadd.f32 %v756, %v856
        %858 = vmatprep.mubr.f32.mxu0 0.0
        %859 = vmatmul.mubr.f32.gmra.mrb[0].mxu0 %v774
        %v860 = vpop.f32.mrb[0].mxu0
        %v861 = vadd.f32 %v760, %v860
        %v862 = vpop.f32.mrb[0].mxu0
        %v863 = vadd.f32 %v762, %v862
        %864 = vdwg.mxu0
        %s865 = scalar_lea.vmem %s1, 64
        %v866 = vld [vmem:[%s865] sm:$0xff]
        %v867 = vld [vmem:[%s865 + $0x8] sm:$0xff]
        %v868 = vld [vmem:[%s865 + $0x10] sm:$0xff]
        %v869 = vld [vmem:[%s865 + $0x18] sm:$0xf]
        %v871 = vsel %vm446, %v866, 0
        %v874 = vsel %vm446, %v867, 0
        %v877 = vsel %vm446, %v868, 0
        %v880 = vsel %vm446, %v869, 0
        %882 = vmatprep.subr.mxu0 0.0
        %883 = vmatpush1.msra.mxu0 %v438
        %884 = vmatprep.subr.mxu0 0.0
        %885 = vmatpush1.msra.mxu0 %v439
        %886 = vmatprep.subr.mxu0 0.0
        %887 = vmatpush1.msra.mxu0 %v440
        %888 = vmatprep.subr.mxu0 0.0
        %889 = vmatpush1.msra.mxu0 %v441
        %890 = vmatprep.subr.mxu0 0.0
        %891 = vmatpush1.msra.mxu0 0.0
        %892 = vmatprep.subr.mxu0 0.0
        %893 = vmatpush1.msra.mxu0 0.0
        %894 = vmatprep.subr.mxu0 0.0
        %895 = vmatpush1.msra.mxu0 0.0
        %896 = vmatprep.subr.mxu0 0.0
        %897 = vmatpush1.msra.mxu0 0.0
        %898 = vmatprep.subr.mxu0 0.0
        %899 = vmatpush1.msra.mxu0 0.0
        %900 = vmatprep.subr.mxu0 0.0
        %901 = vmatpush1.msra.mxu0 0.0
        %902 = vmatprep.subr.mxu0 0.0
        %903 = vmatpush1.msra.mxu0 0.0
        %904 = vmatprep.subr.mxu0 0.0
        %905 = vmatpush1.msra.mxu0 0.0
        %906 = vmatprep.subr.mxu0 0.0
        %907 = vmatpush1.msra.mxu0 0.0
        %908 = vmatprep.subr.mxu0 0.0
        %909 = vmatpush1.msra.mxu0 0.0
        %910 = vmatprep.subr.mxu0 0.0
        %911 = vmatpush1.msra.mxu0 0.0
        %912 = vmatprep.subr.mxu0 0.0
        %913 = vmatpush1.msra.mxu0 0.0
        %914 = vmatprep.subr.mxu0 0.0
        %915 = vmatpush1.msra.mxu0 0.0
        %916 = vmatprep.subr.mxu0 0.0
        %917 = vmatpush1.msra.mxu0 0.0
        %918 = vmatprep.subr.mxu0 0.0
        %919 = vmatpush1.msra.mxu0 0.0
        %920 = vmatprep.subr.mxu0 0.0
        %921 = vmatpush1.msra.mxu0 0.0
        %922 = vmatprep.subr.mxu0 0.0
        %923 = vmatpush1.msra.mxu0 0.0
        %924 = vmatprep.subr.mxu0 0.0
        %925 = vmatpush1.msra.mxu0 0.0
        %926 = vmatprep.subr.mxu0 0.0
        %927 = vmatpush1.msra.mxu0 0.0
        %928 = vmatprep.subr.mxu0 0.0
        %929 = vmatpush1.msra.mxu0 0.0
        %930 = vmatprep.subr.mxu0 0.0
        %931 = vmatpush1.msra.mxu0 0.0
        %932 = vmatprep.subr.mxu0 0.0
        %933 = vmatpush1.msra.mxu0 0.0
        %934 = vmatprep.subr.mxu0 0.0
        %935 = vmatpush1.msra.mxu0 0.0
        %936 = vmatprep.subr.mxu0 0.0
        %937 = vmatpush1.msra.mxu0 0.0
        %938 = vmatprep.subr.mxu0 0.0
        %939 = vmatpush1.msra.mxu0 0.0
        %940 = vmatprep.subr.mxu0 0.0
        %941 = vmatpush1.msra.mxu0 0.0
        %942 = vmatprep.subr.mxu0 0.0
        %943 = vmatpush1.msra.mxu0 0.0
        %944 = vmatprep.subr.mxu0 0.0
        %945 = vmatpush1.msra.mxu0 0.0
        %946 = vmatprep.mubr.f32.mxu0 0.0
        %947 = vmatmul.mubr.f32.gmra.mrb[0].mxu0 %v871
        %v948 = vpop.f32.mrb[0].mxu0
        %v949 = vadd.f32 0.0, %v948
        %v950 = vpop.f32.mrb[0].mxu0
        %951 = vmatprep.mubr.f32.mxu0 0.0
        %952 = vmatmul.mubr.f32.gmra.mrb[0].mxu0 %v874
        %v953 = vpop.f32.mrb[0].mxu0
        %v954 = vadd.f32 0.0, %v953
        %v955 = vpop.f32.mrb[0].mxu0
        %956 = vmatprep.mubr.f32.mxu0 0.0
        %957 = vmatmul.mubr.f32.gmra.mrb[0].mxu0 %v877
        %v958 = vpop.f32.mrb[0].mxu0
        %v959 = vadd.f32 0.0, %v958
        %v960 = vpop.f32.mrb[0].mxu0
        %961 = vmatprep.mubr.f32.mxu0 0.0
        %962 = vmatmul.mubr.f32.gmra.mrb[0].mxu0 %v880
        %v963 = vpop.f32.mrb[0].mxu0
        %v964 = vadd.f32 0.0, %v963
        %v965 = vpop.f32.mrb[0].mxu0
        %966 = vdwg.mxu0
        %s967 = scalar_lea.vmem %s2, 128
        %v968 = vld [vmem:[%s967] sm:$0xff]
        %v969 = vld [vmem:[%s967 + $0x8] sm:$0xff]
        %v970 = vld [vmem:[%s967 + $0x10] sm:$0xff]
        %v971 = vld [vmem:[%s967 + $0x18] sm:$0xff]
        %v972 = vld [vmem:[%s967 + $0x20] sm:$0xff]
        %v973 = vld [vmem:[%s967 + $0x28] sm:$0xff]
        %v974 = vld [vmem:[%s967 + $0x30] sm:$0xff]
        %v975 = vld [vmem:[%s967 + $0x38] sm:$0xff]
        %v977 = vsel %vm446, %v949, 0
        %v980 = vsel %vm446, %v954, 0
        %v983 = vsel %vm446, %v959, 0
        %v986 = vsel %vm446, %v964, 0
        %988 = vmatprep.subr.mxu0 %v969
        %989 = vmatpush1.msra.mxu0 %v968
        %990 = vmatprep.subr.mxu0 %v971
        %991 = vmatpush1.msra.mxu0 %v970
        %992 = vmatprep.subr.mxu0 %v973
        %993 = vmatpush1.msra.mxu0 %v972
        %994 = vmatprep.subr.mxu0 %v975
        %995 = vmatpush1.msra.mxu0 %v974
        %996 = vmatprep.subr.mxu0 0.0
        %997 = vmatpush1.msra.mxu0 0.0
        %998 = vmatprep.subr.mxu0 0.0
        %999 = vmatpush1.msra.mxu0 0.0
        %1000 = vmatprep.subr.mxu0 0.0
        %1001 = vmatpush1.msra.mxu0 0.0
        %1002 = vmatprep.subr.mxu0 0.0
        %1003 = vmatpush1.msra.mxu0 0.0
        %1004 = vmatprep.subr.mxu0 0.0
        %1005 = vmatpush1.msra.mxu0 0.0
        %1006 = vmatprep.subr.mxu0 0.0
        %1007 = vmatpush1.msra.mxu0 0.0
        %1008 = vmatprep.subr.mxu0 0.0
        %1009 = vmatpush1.msra.mxu0 0.0
        %1010 = vmatprep.subr.mxu0 0.0
        %1011 = vmatpush1.msra.mxu0 0.0
        %1012 = vmatprep.subr.mxu0 0.0
        %1013 = vmatpush1.msra.mxu0 0.0
        %1014 = vmatprep.subr.mxu0 0.0
        %1015 = vmatpush1.msra.mxu0 0.0
        %1016 = vmatprep.subr.mxu0 0.0
        %1017 = vmatpush1.msra.mxu0 0.0
        %1018 = vmatprep.subr.mxu0 0.0
        %1019 = vmatpush1.msra.mxu0 0.0
        %1020 = vmatprep.subr.mxu0 0.0
        %1021 = vmatpush1.msra.mxu0 0.0
        %1022 = vmatprep.subr.mxu0 0.0
        %1023 = vmatpush1.msra.mxu0 0.0
        %1024 = vmatprep.subr.mxu0 0.0
        %1025 = vmatpush1.msra.mxu0 0.0
        %1026 = vmatprep.subr.mxu0 0.0
        %1027 = vmatpush1.msra.mxu0 0.0
        %1028 = vmatprep.subr.mxu0 0.0
        %1029 = vmatpush1.msra.mxu0 0.0
        %1030 = vmatprep.subr.mxu0 0.0
        %1031 = vmatpush1.msra.mxu0 0.0
        %1032 = vmatprep.subr.mxu0 0.0
        %1033 = vmatpush1.msra.mxu0 0.0
        %1034 = vmatprep.subr.mxu0 0.0
        %1035 = vmatpush1.msra.mxu0 0.0
        %1036 = vmatprep.subr.mxu0 0.0
        %1037 = vmatpush1.msra.mxu0 0.0
        %1038 = vmatprep.subr.mxu0 0.0
        %1039 = vmatpush1.msra.mxu0 0.0
        %1040 = vmatprep.subr.mxu0 0.0
        %1041 = vmatpush1.msra.mxu0 0.0
        %1042 = vmatprep.subr.mxu0 0.0
        %1043 = vmatpush1.msra.mxu0 0.0
        %1044 = vmatprep.subr.mxu0 0.0
        %1045 = vmatpush1.msra.mxu0 0.0
        %1046 = vmatprep.subr.mxu0 0.0
        %1047 = vmatpush1.msra.mxu0 0.0
        %1048 = vmatprep.subr.mxu0 0.0
        %1049 = vmatpush1.msra.mxu0 0.0
        %1050 = vmatprep.subr.mxu0 0.0
        %1051 = vmatpush1.msra.mxu0 0.0
        %1052 = vmatprep.mubr.f32.mxu0 0.0
        %1053 = vmatmul.mubr.f32.gmra.mrb[0].mxu0 %v977
        %v1054 = vpop.f32.mrb[0].mxu0
        %v1055 = vadd.f32 0.0, %v1054
        %v1056 = vpop.f32.mrb[0].mxu0
        %v1057 = vadd.f32 0.0, %v1056
        %1058 = vmatprep.mubr.f32.mxu0 0.0
        %1059 = vmatmul.mubr.f32.gmra.mrb[0].mxu0 %v980
        %v1060 = vpop.f32.mrb[0].mxu0
        %v1061 = vadd.f32 0.0, %v1060
        %v1062 = vpop.f32.mrb[0].mxu0
        %v1063 = vadd.f32 0.0, %v1062
        %1064 = vmatprep.mubr.f32.mxu0 0.0
        %1065 = vmatmul.mubr.f32.gmra.mrb[0].mxu0 %v983
        %v1066 = vpop.f32.mrb[0].mxu0
        %v1067 = vadd.f32 0.0, %v1066
        %v1068 = vpop.f32.mrb[0].mxu0
        %v1069 = vadd.f32 0.0, %v1068
        %1070 = vmatprep.mubr.f32.mxu0 0.0
        %1071 = vmatmul.mubr.f32.gmra.mrb[0].mxu0 %v986
        %v1072 = vpop.f32.mrb[0].mxu0
        %v1073 = vadd.f32 0.0, %v1072
        %v1074 = vpop.f32.mrb[0].mxu0
        %v1075 = vadd.f32 0.0, %v1074
        %1076 = vdwg.mxu0
        %v1077 = vadd.f32 %v843, %v1055
        %v1078 = vadd.f32 %v845, %v1057
        %v1079 = vadd.f32 %v849, %v1061
        %v1080 = vadd.f32 %v851, %v1063
        %v1081 = vadd.f32 %v855, %v1067
        %v1082 = vadd.f32 %v857, %v1069
        %v1083 = vadd.f32 %v861, %v1073
        %v1084 = vadd.f32 %v863, %v1075
        %s1085 = scalar_lea.vmem %s1, 96
        %v1086 = vld [vmem:[%s1085] sm:$0xff]
        %v1087 = vld [vmem:[%s1085 + $0x8] sm:$0xff]
        %v1088 = vld [vmem:[%s1085 + $0x10] sm:$0xff]
        %v1089 = vld [vmem:[%s1085 + $0x18] sm:$0xf]
        %v1091 = vsel %vm446, %v1086, 0
        %v1094 = vsel %vm446, %v1087, 0
        %v1097 = vsel %vm446, %v1088, 0
        %v1100 = vsel %vm446, %v1089, 0
        %1102 = vmatprep.subr.mxu0 0.0
        %1103 = vmatpush1.msra.mxu0 %v438
        %1104 = vmatprep.subr.mxu0 0.0
        %1105 = vmatpush1.msra.mxu0 %v439
        %1106 = vmatprep.subr.mxu0 0.0
        %1107 = vmatpush1.msra.mxu0 %v440
        %1108 = vmatprep.subr.mxu0 0.0
        %1109 = vmatpush1.msra.mxu0 %v441
        %1110 = vmatprep.subr.mxu0 0.0
        %1111 = vmatpush1.msra.mxu0 0.0
        %1112 = vmatprep.subr.mxu0 0.0
        %1113 = vmatpush1.msra.mxu0 0.0
        %1114 = vmatprep.subr.mxu0 0.0
        %1115 = vmatpush1.msra.mxu0 0.0
        %1116 = vmatprep.subr.mxu0 0.0
        %1117 = vmatpush1.msra.mxu0 0.0
        %1118 = vmatprep.subr.mxu0 0.0
        %1119 = vmatpush1.msra.mxu0 0.0
        %1120 = vmatprep.subr.mxu0 0.0
        %1121 = vmatpush1.msra.mxu0 0.0
        %1122 = vmatprep.subr.mxu0 0.0
        %1123 = vmatpush1.msra.mxu0 0.0
        %1124 = vmatprep.subr.mxu0 0.0
        %1125 = vmatpush1.msra.mxu0 0.0
        %1126 = vmatprep.subr.mxu0 0.0
        %1127 = vmatpush1.msra.mxu0 0.0
        %1128 = vmatprep.subr.mxu0 0.0
        %1129 = vmatpush1.msra.mxu0 0.0
        %1130 = vmatprep.subr.mxu0 0.0
        %1131 = vmatpush1.msra.mxu0 0.0
        %1132 = vmatprep.subr.mxu0 0.0
        %1133 = vmatpush1.msra.mxu0 0.0
        %1134 = vmatprep.subr.mxu0 0.0
        %1135 = vmatpush1.msra.mxu0 0.0
        %1136 = vmatprep.subr.mxu0 0.0
        %1137 = vmatpush1.msra.mxu0 0.0
        %1138 = vmatprep.subr.mxu0 0.0
        %1139 = vmatpush1.msra.mxu0 0.0
        %1140 = vmatprep.subr.mxu0 0.0
        %1141 = vmatpush1.msra.mxu0 0.0
        %1142 = vmatprep.subr.mxu0 0.0
        %1143 = vmatpush1.msra.mxu0 0.0
        %1144 = vmatprep.subr.mxu0 0.0
        %1145 = vmatpush1.msra.mxu0 0.0
        %1146 = vmatprep.subr.mxu0 0.0
        %1147 = vmatpush1.msra.mxu0 0.0
        %1148 = vmatprep.subr.mxu0 0.0
        %1149 = vmatpush1.msra.mxu0 0.0
        %1150 = vmatprep.subr.mxu0 0.0
        %1151 = vmatpush1.msra.mxu0 0.0
        %1152 = vmatprep.subr.mxu0 0.0
        %1153 = vmatpush1.msra.mxu0 0.0
        %1154 = vmatprep.subr.mxu0 0.0
        %1155 = vmatpush1.msra.mxu0 0.0
        %1156 = vmatprep.subr.mxu0 0.0
        %1157 = vmatpush1.msra.mxu0 0.0
        %1158 = vmatprep.subr.mxu0 0.0
        %1159 = vmatpush1.msra.mxu0 0.0
        %1160 = vmatprep.subr.mxu0 0.0
        %1161 = vmatpush1.msra.mxu0 0.0
        %1162 = vmatprep.subr.mxu0 0.0
        %1163 = vmatpush1.msra.mxu0 0.0
        %1164 = vmatprep.subr.mxu0 0.0
        %1165 = vmatpush1.msra.mxu0 0.0
        %1166 = vmatprep.mubr.f32.mxu0 0.0
        %1167 = vmatmul.mubr.f32.gmra.mrb[0].mxu0 %v1091
        %v1168 = vpop.f32.mrb[0].mxu0
        %v1169 = vadd.f32 0.0, %v1168
        %v1170 = vpop.f32.mrb[0].mxu0
        %1171 = vmatprep.mubr.f32.mxu0 0.0
        %1172 = vmatmul.mubr.f32.gmra.mrb[0].mxu0 %v1094
        %v1173 = vpop.f32.mrb[0].mxu0
        %v1174 = vadd.f32 0.0, %v1173
        %v1175 = vpop.f32.mrb[0].mxu0
        %1176 = vmatprep.mubr.f32.mxu0 0.0
        %1177 = vmatmul.mubr.f32.gmra.mrb[0].mxu0 %v1097
        %v1178 = vpop.f32.mrb[0].mxu0
        %v1179 = vadd.f32 0.0, %v1178
        %v1180 = vpop.f32.mrb[0].mxu0
        %1181 = vmatprep.mubr.f32.mxu0 0.0
        %1182 = vmatmul.mubr.f32.gmra.mrb[0].mxu0 %v1100
        %v1183 = vpop.f32.mrb[0].mxu0
        %v1184 = vadd.f32 0.0, %v1183
        %v1185 = vpop.f32.mrb[0].mxu0
        %1186 = vdwg.mxu0
        %s1187 = scalar_lea.vmem %s2, 192
        %v1188 = vld [vmem:[%s1187] sm:$0xff]
        %v1189 = vld [vmem:[%s1187 + $0x8] sm:$0xff]
        %v1190 = vld [vmem:[%s1187 + $0x10] sm:$0xff]
        %v1191 = vld [vmem:[%s1187 + $0x18] sm:$0xff]
        %v1192 = vld [vmem:[%s1187 + $0x20] sm:$0xff]
        %v1193 = vld [vmem:[%s1187 + $0x28] sm:$0xff]
        %v1194 = vld [vmem:[%s1187 + $0x30] sm:$0xff]
        %v1195 = vld [vmem:[%s1187 + $0x38] sm:$0xff]
        %v1197 = vsel %vm446, %v1169, 0
        %v1200 = vsel %vm446, %v1174, 0
        %v1203 = vsel %vm446, %v1179, 0
        %v1206 = vsel %vm446, %v1184, 0
        %1208 = vmatprep.subr.mxu0 %v1189
        %1209 = vmatpush1.msra.mxu0 %v1188
        %1210 = vmatprep.subr.mxu0 %v1191
        %1211 = vmatpush1.msra.mxu0 %v1190
        %1212 = vmatprep.subr.mxu0 %v1193
        %1213 = vmatpush1.msra.mxu0 %v1192
        %1214 = vmatprep.subr.mxu0 %v1195
        %1215 = vmatpush1.msra.mxu0 %v1194
        %1216 = vmatprep.subr.mxu0 0.0
        %1217 = vmatpush1.msra.mxu0 0.0
        %1218 = vmatprep.subr.mxu0 0.0
        %1219 = vmatpush1.msra.mxu0 0.0
        %1220 = vmatprep.subr.mxu0 0.0
        %1221 = vmatpush1.msra.mxu0 0.0
        %1222 = vmatprep.subr.mxu0 0.0
        %1223 = vmatpush1.msra.mxu0 0.0
        %1224 = vmatprep.subr.mxu0 0.0
        %1225 = vmatpush1.msra.mxu0 0.0
        %1226 = vmatprep.subr.mxu0 0.0
        %1227 = vmatpush1.msra.mxu0 0.0
        %1228 = vmatprep.subr.mxu0 0.0
        %1229 = vmatpush1.msra.mxu0 0.0
        %1230 = vmatprep.subr.mxu0 0.0
        %1231 = vmatpush1.msra.mxu0 0.0
        %1232 = vmatprep.subr.mxu0 0.0
        %1233 = vmatpush1.msra.mxu0 0.0
        %1234 = vmatprep.subr.mxu0 0.0
        %1235 = vmatpush1.msra.mxu0 0.0
        %1236 = vmatprep.subr.mxu0 0.0
        %1237 = vmatpush1.msra.mxu0 0.0
        %1238 = vmatprep.subr.mxu0 0.0
        %1239 = vmatpush1.msra.mxu0 0.0
        %1240 = vmatprep.subr.mxu0 0.0
        %1241 = vmatpush1.msra.mxu0 0.0
        %1242 = vmatprep.subr.mxu0 0.0
        %1243 = vmatpush1.msra.mxu0 0.0
        %1244 = vmatprep.subr.mxu0 0.0
        %1245 = vmatpush1.msra.mxu0 0.0
        %1246 = vmatprep.subr.mxu0 0.0
        %1247 = vmatpush1.msra.mxu0 0.0
        %1248 = vmatprep.subr.mxu0 0.0
        %1249 = vmatpush1.msra.mxu0 0.0
        %1250 = vmatprep.subr.mxu0 0.0
        %1251 = vmatpush1.msra.mxu0 0.0
        %1252 = vmatprep.subr.mxu0 0.0
        %1253 = vmatpush1.msra.mxu0 0.0
        %1254 = vmatprep.subr.mxu0 0.0
        %1255 = vmatpush1.msra.mxu0 0.0
        %1256 = vmatprep.subr.mxu0 0.0
        %1257 = vmatpush1.msra.mxu0 0.0
        %1258 = vmatprep.subr.mxu0 0.0
        %1259 = vmatpush1.msra.mxu0 0.0
        %1260 = vmatprep.subr.mxu0 0.0
        %1261 = vmatpush1.msra.mxu0 0.0
        %1262 = vmatprep.subr.mxu0 0.0
        %1263 = vmatpush1.msra.mxu0 0.0
        %1264 = vmatprep.subr.mxu0 0.0
        %1265 = vmatpush1.msra.mxu0 0.0
        %1266 = vmatprep.subr.mxu0 0.0
        %1267 = vmatpush1.msra.mxu0 0.0
        %1268 = vmatprep.subr.mxu0 0.0
        %1269 = vmatpush1.msra.mxu0 0.0
        %1270 = vmatprep.subr.mxu0 0.0
        %1271 = vmatpush1.msra.mxu0 0.0
        %1272 = vmatprep.mubr.f32.mxu0 0.0
        %1273 = vmatmul.mubr.f32.gmra.mrb[0].mxu0 %v1197
        %v1274 = vpop.f32.mrb[0].mxu0
        %v1275 = vadd.f32 0.0, %v1274
        %v1276 = vpop.f32.mrb[0].mxu0
        %v1277 = vadd.f32 0.0, %v1276
        %1278 = vmatprep.mubr.f32.mxu0 0.0
        %1279 = vmatmul.mubr.f32.gmra.mrb[0].mxu0 %v1200
        %v1280 = vpop.f32.mrb[0].mxu0
        %v1281 = vadd.f32 0.0, %v1280
        %v1282 = vpop.f32.mrb[0].mxu0
        %v1283 = vadd.f32 0.0, %v1282
        %1284 = vmatprep.mubr.f32.mxu0 0.0
        %1285 = vmatmul.mubr.f32.gmra.mrb[0].mxu0 %v1203
        %v1286 = vpop.f32.mrb[0].mxu0
        %v1287 = vadd.f32 0.0, %v1286
        %v1288 = vpop.f32.mrb[0].mxu0
        %v1289 = vadd.f32 0.0, %v1288
        %1290 = vmatprep.mubr.f32.mxu0 0.0
        %1291 = vmatmul.mubr.f32.gmra.mrb[0].mxu0 %v1206
        %v1292 = vpop.f32.mrb[0].mxu0
        %v1293 = vadd.f32 0.0, %v1292
        %v1294 = vpop.f32.mrb[0].mxu0
        %v1295 = vadd.f32 0.0, %v1294
        %1296 = vdwg.mxu0
        %v1297 = vadd.f32 %v1077, %v1275
        %v1298 = vadd.f32 %v1078, %v1277
        %v1299 = vadd.f32 %v1079, %v1281
        %v1300 = vadd.f32 %v1080, %v1283
        %v1301 = vadd.f32 %v1081, %v1287
        %v1302 = vadd.f32 %v1082, %v1289
        %v1303 = vadd.f32 %v1083, %v1293
        %v1304 = vadd.f32 %v1084, %v1295
        %s1305 = scalar_lea.vmem %s1, 128
        %v1306 = vld [vmem:[%s1305] sm:$0xff]
        %v1307 = vld [vmem:[%s1305 + $0x8] sm:$0xff]
        %v1308 = vld [vmem:[%s1305 + $0x10] sm:$0xff]
        %v1309 = vld [vmem:[%s1305 + $0x18] sm:$0xf]
        %v1311 = vsel %vm446, %v1306, 0
        %v1314 = vsel %vm446, %v1307, 0
        %v1317 = vsel %vm446, %v1308, 0
        %v1320 = vsel %vm446, %v1309, 0
        %1322 = vmatprep.subr.mxu0 0.0
        %1323 = vmatpush1.msra.mxu0 %v438
        %1324 = vmatprep.subr.mxu0 0.0
        %1325 = vmatpush1.msra.mxu0 %v439
        %1326 = vmatprep.subr.mxu0 0.0
        %1327 = vmatpush1.msra.mxu0 %v440
        %1328 = vmatprep.subr.mxu0 0.0
        %1329 = vmatpush1.msra.mxu0 %v441
        %1330 = vmatprep.subr.mxu0 0.0
        %1331 = vmatpush1.msra.mxu0 0.0
        %1332 = vmatprep.subr.mxu0 0.0
        %1333 = vmatpush1.msra.mxu0 0.0
        %1334 = vmatprep.subr.mxu0 0.0
        %1335 = vmatpush1.msra.mxu0 0.0
        %1336 = vmatprep.subr.mxu0 0.0
        %1337 = vmatpush1.msra.mxu0 0.0
        %1338 = vmatprep.subr.mxu0 0.0
        %1339 = vmatpush1.msra.mxu0 0.0
        %1340 = vmatprep.subr.mxu0 0.0
        %1341 = vmatpush1.msra.mxu0 0.0
        %1342 = vmatprep.subr.mxu0 0.0
        %1343 = vmatpush1.msra.mxu0 0.0
        %1344 = vmatprep.subr.mxu0 0.0
        %1345 = vmatpush1.msra.mxu0 0.0
        %1346 = vmatprep.subr.mxu0 0.0
        %1347 = vmatpush1.msra.mxu0 0.0
        %1348 = vmatprep.subr.mxu0 0.0
        %1349 = vmatpush1.msra.mxu0 0.0
        %1350 = vmatprep.subr.mxu0 0.0
        %1351 = vmatpush1.msra.mxu0 0.0
        %1352 = vmatprep.subr.mxu0 0.0
        %1353 = vmatpush1.msra.mxu0 0.0
        %1354 = vmatprep.subr.mxu0 0.0
        %1355 = vmatpush1.msra.mxu0 0.0
        %1356 = vmatprep.subr.mxu0 0.0
        %1357 = vmatpush1.msra.mxu0 0.0
        %1358 = vmatprep.subr.mxu0 0.0
        %1359 = vmatpush1.msra.mxu0 0.0
        %1360 = vmatprep.subr.mxu0 0.0
        %1361 = vmatpush1.msra.mxu0 0.0
        %1362 = vmatprep.subr.mxu0 0.0
        %1363 = vmatpush1.msra.mxu0 0.0
        %1364 = vmatprep.subr.mxu0 0.0
        %1365 = vmatpush1.msra.mxu0 0.0
        %1366 = vmatprep.subr.mxu0 0.0
        %1367 = vmatpush1.msra.mxu0 0.0
        %1368 = vmatprep.subr.mxu0 0.0
        %1369 = vmatpush1.msra.mxu0 0.0
        %1370 = vmatprep.subr.mxu0 0.0
        %1371 = vmatpush1.msra.mxu0 0.0
        %1372 = vmatprep.subr.mxu0 0.0
        %1373 = vmatpush1.msra.mxu0 0.0
        %1374 = vmatprep.subr.mxu0 0.0
        %1375 = vmatpush1.msra.mxu0 0.0
        %1376 = vmatprep.subr.mxu0 0.0
        %1377 = vmatpush1.msra.mxu0 0.0
        %1378 = vmatprep.subr.mxu0 0.0
        %1379 = vmatpush1.msra.mxu0 0.0
        %1380 = vmatprep.subr.mxu0 0.0
        %1381 = vmatpush1.msra.mxu0 0.0
        %1382 = vmatprep.subr.mxu0 0.0
        %1383 = vmatpush1.msra.mxu0 0.0
        %1384 = vmatprep.subr.mxu0 0.0
        %1385 = vmatpush1.msra.mxu0 0.0
        %1386 = vmatprep.mubr.f32.mxu0 0.0
        %1387 = vmatmul.mubr.f32.gmra.mrb[0].mxu0 %v1311
        %v1388 = vpop.f32.mrb[0].mxu0
        %v1389 = vadd.f32 0.0, %v1388
        %v1390 = vpop.f32.mrb[0].mxu0
        %1391 = vmatprep.mubr.f32.mxu0 0.0
        %1392 = vmatmul.mubr.f32.gmra.mrb[0].mxu0 %v1314
        %v1393 = vpop.f32.mrb[0].mxu0
        %v1394 = vadd.f32 0.0, %v1393
        %v1395 = vpop.f32.mrb[0].mxu0
        %1396 = vmatprep.mubr.f32.mxu0 0.0
        %1397 = vmatmul.mubr.f32.gmra.mrb[0].mxu0 %v1317
        %v1398 = vpop.f32.mrb[0].mxu0
        %v1399 = vadd.f32 0.0, %v1398
        %v1400 = vpop.f32.mrb[0].mxu0
        %1401 = vmatprep.mubr.f32.mxu0 0.0
        %1402 = vmatmul.mubr.f32.gmra.mrb[0].mxu0 %v1320
        %v1403 = vpop.f32.mrb[0].mxu0
        %v1404 = vadd.f32 0.0, %v1403
        %v1405 = vpop.f32.mrb[0].mxu0
        %1406 = vdwg.mxu0
        %s1407 = scalar_lea.vmem %s2, 256
        %v1408 = vld [vmem:[%s1407] sm:$0xff]
        %v1409 = vld [vmem:[%s1407 + $0x8] sm:$0xff]
        %v1410 = vld [vmem:[%s1407 + $0x10] sm:$0xff]
        %v1411 = vld [vmem:[%s1407 + $0x18] sm:$0xff]
        %v1412 = vld [vmem:[%s1407 + $0x20] sm:$0xff]
        %v1413 = vld [vmem:[%s1407 + $0x28] sm:$0xff]
        %v1414 = vld [vmem:[%s1407 + $0x30] sm:$0xff]
        %v1415 = vld [vmem:[%s1407 + $0x38] sm:$0xff]
        %v1417 = vsel %vm446, %v1389, 0
        %v1420 = vsel %vm446, %v1394, 0
        %v1423 = vsel %vm446, %v1399, 0
        %v1426 = vsel %vm446, %v1404, 0
        %1428 = vmatprep.subr.mxu0 %v1409
        %1429 = vmatpush1.msra.mxu0 %v1408
        %1430 = vmatprep.subr.mxu0 %v1411
        %1431 = vmatpush1.msra.mxu0 %v1410
        %1432 = vmatprep.subr.mxu0 %v1413
        %1433 = vmatpush1.msra.mxu0 %v1412
        %1434 = vmatprep.subr.mxu0 %v1415
        %1435 = vmatpush1.msra.mxu0 %v1414
        %1436 = vmatprep.subr.mxu0 0.0
        %1437 = vmatpush1.msra.mxu0 0.0
        %1438 = vmatprep.subr.mxu0 0.0
        %1439 = vmatpush1.msra.mxu0 0.0
        %1440 = vmatprep.subr.mxu0 0.0
        %1441 = vmatpush1.msra.mxu0 0.0
        %1442 = vmatprep.subr.mxu0 0.0
        %1443 = vmatpush1.msra.mxu0 0.0
        %1444 = vmatprep.subr.mxu0 0.0
        %1445 = vmatpush1.msra.mxu0 0.0
        %1446 = vmatprep.subr.mxu0 0.0
        %1447 = vmatpush1.msra.mxu0 0.0
        %1448 = vmatprep.subr.mxu0 0.0
        %1449 = vmatpush1.msra.mxu0 0.0
        %1450 = vmatprep.subr.mxu0 0.0
        %1451 = vmatpush1.msra.mxu0 0.0
        %1452 = vmatprep.subr.mxu0 0.0
        %1453 = vmatpush1.msra.mxu0 0.0
        %1454 = vmatprep.subr.mxu0 0.0
        %1455 = vmatpush1.msra.mxu0 0.0
        %1456 = vmatprep.subr.mxu0 0.0
        %1457 = vmatpush1.msra.mxu0 0.0
        %1458 = vmatprep.subr.mxu0 0.0
        %1459 = vmatpush1.msra.mxu0 0.0
        %1460 = vmatprep.subr.mxu0 0.0
        %1461 = vmatpush1.msra.mxu0 0.0
        %1462 = vmatprep.subr.mxu0 0.0
        %1463 = vmatpush1.msra.mxu0 0.0
        %1464 = vmatprep.subr.mxu0 0.0
        %1465 = vmatpush1.msra.mxu0 0.0
        %1466 = vmatprep.subr.mxu0 0.0
        %1467 = vmatpush1.msra.mxu0 0.0
        %1468 = vmatprep.subr.mxu0 0.0
        %1469 = vmatpush1.msra.mxu0 0.0
        %1470 = vmatprep.subr.mxu0 0.0
        %1471 = vmatpush1.msra.mxu0 0.0
        %1472 = vmatprep.subr.mxu0 0.0
        %1473 = vmatpush1.msra.mxu0 0.0
        %1474 = vmatprep.subr.mxu0 0.0
        %1475 = vmatpush1.msra.mxu0 0.0
        %1476 = vmatprep.subr.mxu0 0.0
        %1477 = vmatpush1.msra.mxu0 0.0
        %1478 = vmatprep.subr.mxu0 0.0
        %1479 = vmatpush1.msra.mxu0 0.0
        %1480 = vmatprep.subr.mxu0 0.0
        %1481 = vmatpush1.msra.mxu0 0.0
        %1482 = vmatprep.subr.mxu0 0.0
        %1483 = vmatpush1.msra.mxu0 0.0
        %1484 = vmatprep.subr.mxu0 0.0
        %1485 = vmatpush1.msra.mxu0 0.0
        %1486 = vmatprep.subr.mxu0 0.0
        %1487 = vmatpush1.msra.mxu0 0.0
        %1488 = vmatprep.subr.mxu0 0.0
        %1489 = vmatpush1.msra.mxu0 0.0
        %1490 = vmatprep.subr.mxu0 0.0
        %1491 = vmatpush1.msra.mxu0 0.0
        %1492 = vmatprep.mubr.f32.mxu0 0.0
        %1493 = vmatmul.mubr.f32.gmra.mrb[0].mxu0 %v1417
        %v1494 = vpop.f32.mrb[0].mxu0
        %v1495 = vadd.f32 0.0, %v1494
        %v1496 = vpop.f32.mrb[0].mxu0
        %v1497 = vadd.f32 0.0, %v1496
        %1498 = vmatprep.mubr.f32.mxu0 0.0
        %1499 = vmatmul.mubr.f32.gmra.mrb[0].mxu0 %v1420
        %v1500 = vpop.f32.mrb[0].mxu0
        %v1501 = vadd.f32 0.0, %v1500
        %v1502 = vpop.f32.mrb[0].mxu0
        %v1503 = vadd.f32 0.0, %v1502
        %1504 = vmatprep.mubr.f32.mxu0 0.0
        %1505 = vmatmul.mubr.f32.gmra.mrb[0].mxu0 %v1423
        %v1506 = vpop.f32.mrb[0].mxu0
        %v1507 = vadd.f32 0.0, %v1506
        %v1508 = vpop.f32.mrb[0].mxu0
        %v1509 = vadd.f32 0.0, %v1508
        %1510 = vmatprep.mubr.f32.mxu0 0.0
        %1511 = vmatmul.mubr.f32.gmra.mrb[0].mxu0 %v1426
        %v1512 = vpop.f32.mrb[0].mxu0
        %v1513 = vadd.f32 0.0, %v1512
        %v1514 = vpop.f32.mrb[0].mxu0
        %v1515 = vadd.f32 0.0, %v1514
        %1516 = vdwg.mxu0
        %v1517 = vadd.f32 %v1297, %v1495
        %v1518 = vadd.f32 %v1298, %v1497
        %v1519 = vadd.f32 %v1299, %v1501
        %v1520 = vadd.f32 %v1300, %v1503
        %v1521 = vadd.f32 %v1301, %v1507
        %v1522 = vadd.f32 %v1302, %v1509
        %v1523 = vadd.f32 %v1303, %v1513
        %v1524 = vadd.f32 %v1304, %v1515
        %v1525 = vld [vmem:[%s3] sm:$0x3]
        %v1527 = vlaneseq
        %v1528 = vshrl.u32 %v1527, 7
        %v1529 = vsub.s32 0, %v1528
        %v1530 = vrot.slane %v1525, %v1529
        %v1531 = vlaneseq
        %v1532 = vshrl.u32 %v1531, 7
        %v1533 = vsub.s32 1, %v1532
        %v1534 = vrot.slane %v1525, %v1533
        %v1537 = vadd.f32 %v1517, %v1530
        %v1538 = vadd.f32 %v1518, %v1534
        %v1539 = vadd.f32 %v1519, %v1530
        %v1540 = vadd.f32 %v1520, %v1534
        %v1541 = vadd.f32 %v1521, %v1530
        %v1542 = vadd.f32 %v1522, %v1534
        %v1543 = vadd.f32 %v1523, %v1530
        %v1544 = vadd.f32 %v1524, %v1534
        %v1545 = vsub.f32 0.0, %v1537
        %v1546 = vsub.f32 0.0, %v1538
        %v1547 = vsub.f32 0.0, %v1539
        %v1548 = vsub.f32 0.0, %v1540
        %v1549 = vsub.f32 0.0, %v1541
        %v1550 = vsub.f32 0.0, %v1542
        %v1551 = vsub.f32 0.0, %v1543
        %v1552 = vsub.f32 0.0, %v1544
        %v1553 = vmul.f32 %v1545, 1.442695
        %v1554 = vpow.pop %v1553
        %v1555 = vmul.f32 %v1546, 1.442695
        %v1556 = vpow.pop %v1555
        %v1557 = vmul.f32 %v1547, 1.442695
        %v1558 = vpow.pop %v1557
        %v1559 = vmul.f32 %v1548, 1.442695
        %v1560 = vpow.pop %v1559
        %v1561 = vmul.f32 %v1549, 1.442695
        %v1562 = vpow.pop %v1561
        %v1563 = vmul.f32 %v1550, 1.442695
        %v1564 = vpow.pop %v1563
        %v1565 = vmul.f32 %v1551, 1.442695
        %v1566 = vpow.pop %v1565
        %v1567 = vmul.f32 %v1552, 1.442695
        %v1568 = vpow.pop %v1567
        %v1569 = vadd.f32 %v1554, 1.0
        %v1570 = vadd.f32 %v1556, 1.0
        %v1571 = vadd.f32 %v1558, 1.0
        %v1572 = vadd.f32 %v1560, 1.0
        %v1573 = vadd.f32 %v1562, 1.0
        %v1574 = vadd.f32 %v1564, 1.0
        %v1575 = vadd.f32 %v1566, 1.0
        %v1576 = vadd.f32 %v1568, 1.0
        %v1577 = vrcp.pop %v1569
        %v1578 = vmul.f32 1.0, %v1577
        %v1579 = vrcp.pop %v1570
        %v1580 = vmul.f32 1.0, %v1579
        %v1581 = vrcp.pop %v1571
        %v1582 = vmul.f32 1.0, %v1581
        %v1583 = vrcp.pop %v1572
        %v1584 = vmul.f32 1.0, %v1583
        %v1585 = vrcp.pop %v1573
        %v1586 = vmul.f32 1.0, %v1585
        %v1587 = vrcp.pop %v1574
        %v1588 = vmul.f32 1.0, %v1587
        %v1589 = vrcp.pop %v1575
        %v1590 = vmul.f32 1.0, %v1589
        %v1591 = vrcp.pop %v1576
        %v1592 = vmul.f32 1.0, %v1591
        %vm1599 = vcmask 1041408
        %v1600 = vrot.slane %v1582, 6
        %v1601 = vrot.slane %v1586, 6
        %v1602 = vsel %vm1599, %v1600, %v1601
        %v1603 = vrot.slane %v1584, 6
        %v1604 = vrot.slane %v1588, 6
        %v1605 = vsel %vm1599, %v1603, %v1604
        %v1606 = vrot.slane %v1590, 6
        %v1607 = vsel %vm1599, %v1601, %v1606
        %v1608 = vrot.slane %v1592, 6
        %v1609 = vsel %vm1599, %v1604, %v1608
        %v1614 = vmax.f32 %v1578, %v1602
        %v1615 = vmax.f32 %v1580, %v1605
        %v1616 = vmax.f32 %v1582, %v1607
        %v1617 = vmax.f32 %v1584, %v1609
        %1622 = vrot.lane.b32.xlu0 %v1614, 44
        %v1623 = vpop.permute.xlu0 %1622
        %1624 = vrot.lane.b32.xlu0 %v1615, 44
        %v1625 = vpop.permute.xlu0 %1624
        %1626 = vrot.lane.b32.xlu0 %v1616, 44
        %v1627 = vpop.permute.xlu0 %1626
        %1628 = vrot.lane.b32.xlu0 %v1617, 44
        %v1629 = vpop.permute.xlu0 %1628
        %vm1630 = vcmask 359424
        %v1631 = vsel %vm1630, %v1623, %v1625
        %v1632 = vsel %vm1630, %v1627, %v1629
        %v1635 = vmax.f32 %v1614, %v1631
        %v1636 = vmax.f32 %v1616, %v1632
        %v1637 = vld [vmem:[%s4] sm:$0xff]
        %v1638 = vld [vmem:[%s4 + $0x8] sm:$0x3]
        %vm1639 = vcmask 113664
        %v1641 = vsel %vm1639, %v1637, 0
        %v1644 = vsel %vm1639, %v1638, 0
        %vm1646 = vcmask 1045504
        %v1648 = vsel %vm1646, %v1636, 0
        %1650 = vmatprep.subr.mxu0 0.0
        %1651 = vmatpush1.msra.mxu0 %v1635
        %1652 = vmatprep.subr.mxu0 0.0
        %1653 = vmatpush1.msra.mxu0 %v1648
        %1654 = vmatprep.subr.mxu0 0.0
        %1655 = vmatpush1.msra.mxu0 0.0
        %1656 = vmatprep.subr.mxu0 0.0
        %1657 = vmatpush1.msra.mxu0 0.0
        %1658 = vmatprep.subr.mxu0 0.0
        %1659 = vmatpush1.msra.mxu0 0.0
        %1660 = vmatprep.subr.mxu0 0.0
        %1661 = vmatpush1.msra.mxu0 0.0
        %1662 = vmatprep.subr.mxu0 0.0
        %1663 = vmatpush1.msra.mxu0 0.0
        %1664 = vmatprep.subr.mxu0 0.0
        %1665 = vmatpush1.msra.mxu0 0.0
        %1666 = vmatprep.subr.mxu0 0.0
        %1667 = vmatpush1.msra.mxu0 0.0
        %1668 = vmatprep.subr.mxu0 0.0
        %1669 = vmatpush1.msra.mxu0 0.0
        %1670 = vmatprep.subr.mxu0 0.0
        %1671 = vmatpush1.msra.mxu0 0.0
        %1672 = vmatprep.subr.mxu0 0.0
        %1673 = vmatpush1.msra.mxu0 0.0
        %1674 = vmatprep.subr.mxu0 0.0
        %1675 = vmatpush1.msra.mxu0 0.0
        %1676 = vmatprep.subr.mxu0 0.0
        %1677 = vmatpush1.msra.mxu0 0.0
        %1678 = vmatprep.subr.mxu0 0.0
        %1679 = vmatpush1.msra.mxu0 0.0
        %1680 = vmatprep.subr.mxu0 0.0
        %1681 = vmatpush1.msra.mxu0 0.0
        %1682 = vmatprep.subr.mxu0 0.0
        %1683 = vmatpush1.msra.mxu0 0.0
        %1684 = vmatprep.subr.mxu0 0.0
        %1685 = vmatpush1.msra.mxu0 0.0
        %1686 = vmatprep.subr.mxu0 0.0
        %1687 = vmatpush1.msra.mxu0 0.0
        %1688 = vmatprep.subr.mxu0 0.0
        %1689 = vmatpush1.msra.mxu0 0.0
        %1690 = vmatprep.subr.mxu0 0.0
        %1691 = vmatpush1.msra.mxu0 0.0
        %1692 = vmatprep.subr.mxu0 0.0
        %1693 = vmatpush1.msra.mxu0 0.0
        %1694 = vmatprep.subr.mxu0 0.0
        %1695 = vmatpush1.msra.mxu0 0.0
        %1696 = vmatprep.subr.mxu0 0.0
        %1697 = vmatpush1.msra.mxu0 0.0
        %1698 = vmatprep.subr.mxu0 0.0
        %1699 = vmatpush1.msra.mxu0 0.0
        %1700 = vmatprep.subr.mxu0 0.0
        %1701 = vmatpush1.msra.mxu0 0.0
        %1702 = vmatprep.subr.mxu0 0.0
        %1703 = vmatpush1.msra.mxu0 0.0
        %1704 = vmatprep.subr.mxu0 0.0
        %1705 = vmatpush1.msra.mxu0 0.0
        %1706 = vmatprep.subr.mxu0 0.0
        %1707 = vmatpush1.msra.mxu0 0.0
        %1708 = vmatprep.subr.mxu0 0.0
        %1709 = vmatpush1.msra.mxu0 0.0
        %1710 = vmatprep.subr.mxu0 0.0
        %1711 = vmatpush1.msra.mxu0 0.0
        %1712 = vmatprep.subr.mxu0 0.0
        %1713 = vmatpush1.msra.mxu0 0.0
        %1714 = vmatprep.mubr.f32.mxu0 0.0
        %1715 = vmatmul.mubr.f32.gmra.mrb[0].mxu0 %v1641
        %v1716 = vpop.f32.mrb[0].mxu0
        %v1717 = vadd.f32 0.0, %v1716
        %v1718 = vpop.f32.mrb[0].mxu0
        %1719 = vmatprep.mubr.f32.mxu0 0.0
        %1720 = vmatmul.mubr.f32.gmra.mrb[0].mxu0 %v1644
        %v1721 = vpop.f32.mrb[0].mxu0
        %v1722 = vadd.f32 0.0, %v1721
        %v1723 = vpop.f32.mrb[0].mxu0
        %1724 = vdwg.mxu0
        %v1725 = vld [vmem:[%s5] sm:$0xff]
        %v1726 = vld [vmem:[%s5 + $0x8] sm:$0xff]
        %v1727 = vld [vmem:[%s5 + $0x10] sm:$0xff]
        %v1728 = vld [vmem:[%s5 + $0x18] sm:$0xff]
        %v1729 = vld [vmem:[%s5 + $0x20] sm:$0xff]
        %v1730 = vld [vmem:[%s5 + $0x28] sm:$0xff]
        %v1731 = vld [vmem:[%s5 + $0x30] sm:$0xff]
        %v1732 = vld [vmem:[%s5 + $0x38] sm:$0xff]
        %v1733 = vld [vmem:[%s5 + $0x40] sm:$0xff]
        %v1734 = vld [vmem:[%s5 + $0x48] sm:$0xff]
        %v1735 = vld [vmem:[%s5 + $0x50] sm:$0xff]
        %v1736 = vld [vmem:[%s5 + $0x58] sm:$0xff]
        %v1737 = vld [vmem:[%s5 + $0x60] sm:$0xff]
        %v1738 = vld [vmem:[%s5 + $0x68] sm:$0xff]
        %v1739 = vld [vmem:[%s5 + $0x70] sm:$0xff]
        %v1740 = vld [vmem:[%s5 + $0x78] sm:$0xff]
        %v1741 = vld [vmem:[%s5 + $0x80] sm:$0xff]
        %v1742 = vld [vmem:[%s5 + $0x88] sm:$0xff]
        %v1743 = vld [vmem:[%s5 + $0x90] sm:$0xff]
        %v1744 = vld [vmem:[%s5 + $0x98] sm:$0xff]
        %v1745 = vld [vmem:[%s5 + $0xa0] sm:$0xf]
        %v1746 = vld [vmem:[%s5 + $0xa8] sm:$0xf]
        %s1747 = scalar_lea.vmem %s4, 16
        %v1748 = vld [vmem:[%s1747] sm:$0xff]
        %v1749 = vld [vmem:[%s1747 + $0x8] sm:$0x3]
        %v1751 = vsel %vm1639, %v1748, 0
        %v1754 = vsel %vm1639, %v1749, 0
        %1756 = vmatprep.subr.mxu0 0.0
        %1757 = vmatpush1.msra.mxu0 %v1635
        %1758 = vmatprep.subr.mxu0 0.0
        %1759 = vmatpush1.msra.mxu0 %v1648
        %1760 = vmatprep.subr.mxu0 0.0
        %1761 = vmatpush1.msra.mxu0 0.0
        %1762 = vmatprep.subr.mxu0 0.0
        %1763 = vmatpush1.msra.mxu0 0.0
        %1764 = vmatprep.subr.mxu0 0.0
        %1765 = vmatpush1.msra.mxu0 0.0
        %1766 = vmatprep.subr.mxu0 0.0
        %1767 = vmatpush1.msra.mxu0 0.0
        %1768 = vmatprep.subr.mxu0 0.0
        %1769 = vmatpush1.msra.mxu0 0.0
        %1770 = vmatprep.subr.mxu0 0.0
        %1771 = vmatpush1.msra.mxu0 0.0
        %1772 = vmatprep.subr.mxu0 0.0
        %1773 = vmatpush1.msra.mxu0 0.0
        %1774 = vmatprep.subr.mxu0 0.0
        %1775 = vmatpush1.msra.mxu0 0.0
        %1776 = vmatprep.subr.mxu0 0.0
        %1777 = vmatpush1.msra.mxu0 0.0
        %1778 = vmatprep.subr.mxu0 0.0
        %1779 = vmatpush1.msra.mxu0 0.0
        %1780 = vmatprep.subr.mxu0 0.0
        %1781 = vmatpush1.msra.mxu0 0.0
        %1782 = vmatprep.subr.mxu0 0.0
        %1783 = vmatpush1.msra.mxu0 0.0
        %1784 = vmatprep.subr.mxu0 0.0
        %1785 = vmatpush1.msra.mxu0 0.0
        %1786 = vmatprep.subr.mxu0 0.0
        %1787 = vmatpush1.msra.mxu0 0.0
        %1788 = vmatprep.subr.mxu0 0.0
        %1789 = vmatpush1.msra.mxu0 0.0
        %1790 = vmatprep.subr.mxu0 0.0
        %1791 = vmatpush1.msra.mxu0 0.0
        %1792 = vmatprep.subr.mxu0 0.0
        %1793 = vmatpush1.msra.mxu0 0.0
        %1794 = vmatprep.subr.mxu0 0.0
        %1795 = vmatpush1.msra.mxu0 0.0
        %1796 = vmatprep.subr.mxu0 0.0
        %1797 = vmatpush1.msra.mxu0 0.0
        %1798 = vmatprep.subr.mxu0 0.0
        %1799 = vmatpush1.msra.mxu0 0.0
        %1800 = vmatprep.subr.mxu0 0.0
        %1801 = vmatpush1.msra.mxu0 0.0
        %1802 = vmatprep.subr.mxu0 0.0
        %1803 = vmatpush1.msra.mxu0 0.0
        %1804 = vmatprep.subr.mxu0 0.0
        %1805 = vmatpush1.msra.mxu0 0.0
        %1806 = vmatprep.subr.mxu0 0.0
        %1807 = vmatpush1.msra.mxu0 0.0
        %1808 = vmatprep.subr.mxu0 0.0
        %1809 = vmatpush1.msra.mxu0 0.0
        %1810 = vmatprep.subr.mxu0 0.0
        %1811 = vmatpush1.msra.mxu0 0.0
        %1812 = vmatprep.subr.mxu0 0.0
        %1813 = vmatpush1.msra.mxu0 0.0
        %1814 = vmatprep.subr.mxu0 0.0
        %1815 = vmatpush1.msra.mxu0 0.0
        %1816 = vmatprep.subr.mxu0 0.0
        %1817 = vmatpush1.msra.mxu0 0.0
        %1818 = vmatprep.subr.mxu0 0.0
        %1819 = vmatpush1.msra.mxu0 0.0
        %1820 = vmatprep.mubr.f32.mxu0 0.0
        %1821 = vmatmul.mubr.f32.gmra.mrb[0].mxu0 %v1751
        %v1822 = vpop.f32.mrb[0].mxu0
        %v1823 = vadd.f32 0.0, %v1822
        %v1824 = vpop.f32.mrb[0].mxu0
        %1825 = vmatprep.mubr.f32.mxu0 0.0
        %1826 = vmatmul.mubr.f32.gmra.mrb[0].mxu0 %v1754
        %v1827 = vpop.f32.mrb[0].mxu0
        %v1828 = vadd.f32 0.0, %v1827
        %v1829 = vpop.f32.mrb[0].mxu0
        %1830 = vdwg.mxu0
        %s1831 = scalar_lea.vmem %s5, 176
        %v1832 = vld [vmem:[%s1831] sm:$0xff]
        %v1833 = vld [vmem:[%s1831 + $0x8] sm:$0xff]
        %v1834 = vld [vmem:[%s1831 + $0x10] sm:$0xff]
        %v1835 = vld [vmem:[%s1831 + $0x18] sm:$0xff]
        %v1836 = vld [vmem:[%s1831 + $0x20] sm:$0xff]
        %v1837 = vld [vmem:[%s1831 + $0x28] sm:$0xff]
        %v1838 = vld [vmem:[%s1831 + $0x30] sm:$0xff]
        %v1839 = vld [vmem:[%s1831 + $0x38] sm:$0xff]
        %v1840 = vld [vmem:[%s1831 + $0x40] sm:$0xff]
        %v1841 = vld [vmem:[%s1831 + $0x48] sm:$0xff]
        %v1842 = vld [vmem:[%s1831 + $0x50] sm:$0xff]
        %v1843 = vld [vmem:[%s1831 + $0x58] sm:$0xff]
        %v1844 = vld [vmem:[%s1831 + $0x60] sm:$0xff]
        %v1845 = vld [vmem:[%s1831 + $0x68] sm:$0xff]
        %v1846 = vld [vmem:[%s1831 + $0x70] sm:$0xff]
        %v1847 = vld [vmem:[%s1831 + $0x78] sm:$0xff]
        %v1848 = vld [vmem:[%s1831 + $0x80] sm:$0xff]
        %v1849 = vld [vmem:[%s1831 + $0x88] sm:$0xff]
        %v1850 = vld [vmem:[%s1831 + $0x90] sm:$0xff]
        %v1851 = vld [vmem:[%s1831 + $0x98] sm:$0xff]
        %v1852 = vld [vmem:[%s1831 + $0xa0] sm:$0xf]
        %v1853 = vld [vmem:[%s1831 + $0xa8] sm:$0xf]
        %vm1854 = vcmask 687104
        %v1856 = vsel %vm1854, %v1823, 0
        %v1859 = vsel %vm1854, %v1828, 0
        %vm1861 = vcmask 1043456
        %v1863 = vsel %vm1861, %v1852, 0
        %v1866 = vsel %vm1861, %v1853, 0
        %1868 = vmatprep.subr.mxu0 %v1833
        %1869 = vmatpush1.msra.mxu0 %v1832
        %1870 = vmatprep.subr.mxu0 %v1835
        %1871 = vmatpush1.msra.mxu0 %v1834
        %1872 = vmatprep.subr.mxu0 %v1837
        %1873 = vmatpush1.msra.mxu0 %v1836
        %1874 = vmatprep.subr.mxu0 %v1839
        %1875 = vmatpush1.msra.mxu0 %v1838
        %1876 = vmatprep.subr.mxu0 %v1841
        %1877 = vmatpush1.msra.mxu0 %v1840
        %1878 = vmatprep.subr.mxu0 %v1843
        %1879 = vmatpush1.msra.mxu0 %v1842
        %1880 = vmatprep.subr.mxu0 %v1845
        %1881 = vmatpush1.msra.mxu0 %v1844
        %1882 = vmatprep.subr.mxu0 %v1847
        %1883 = vmatpush1.msra.mxu0 %v1846
        %1884 = vmatprep.subr.mxu0 %v1849
        %1885 = vmatpush1.msra.mxu0 %v1848
        %1886 = vmatprep.subr.mxu0 %v1851
        %1887 = vmatpush1.msra.mxu0 %v1850
        %1888 = vmatprep.subr.mxu0 %v1866
        %1889 = vmatpush1.msra.mxu0 %v1863
        %1890 = vmatprep.subr.mxu0 0.0
        %1891 = vmatpush1.msra.mxu0 0.0
        %1892 = vmatprep.subr.mxu0 0.0
        %1893 = vmatpush1.msra.mxu0 0.0
        %1894 = vmatprep.subr.mxu0 0.0
        %1895 = vmatpush1.msra.mxu0 0.0
        %1896 = vmatprep.subr.mxu0 0.0
        %1897 = vmatpush1.msra.mxu0 0.0
        %1898 = vmatprep.subr.mxu0 0.0
        %1899 = vmatpush1.msra.mxu0 0.0
        %1900 = vmatprep.subr.mxu0 0.0
        %1901 = vmatpush1.msra.mxu0 0.0
        %1902 = vmatprep.subr.mxu0 0.0
        %1903 = vmatpush1.msra.mxu0 0.0
        %1904 = vmatprep.subr.mxu0 0.0
        %1905 = vmatpush1.msra.mxu0 0.0
        %1906 = vmatprep.subr.mxu0 0.0
        %1907 = vmatpush1.msra.mxu0 0.0
        %1908 = vmatprep.subr.mxu0 0.0
        %1909 = vmatpush1.msra.mxu0 0.0
        %1910 = vmatprep.subr.mxu0 0.0
        %1911 = vmatpush1.msra.mxu0 0.0
        %1912 = vmatprep.subr.mxu0 0.0
        %1913 = vmatpush1.msra.mxu0 0.0
        %1914 = vmatprep.subr.mxu0 0.0
        %1915 = vmatpush1.msra.mxu0 0.0
        %1916 = vmatprep.subr.mxu0 0.0
        %1917 = vmatpush1.msra.mxu0 0.0
        %1918 = vmatprep.subr.mxu0 0.0
        %1919 = vmatpush1.msra.mxu0 0.0
        %1920 = vmatprep.subr.mxu0 0.0
        %1921 = vmatpush1.msra.mxu0 0.0
        %1922 = vmatprep.subr.mxu0 0.0
        %1923 = vmatpush1.msra.mxu0 0.0
        %1924 = vmatprep.subr.mxu0 0.0
        %1925 = vmatpush1.msra.mxu0 0.0
        %1926 = vmatprep.subr.mxu0 0.0
        %1927 = vmatpush1.msra.mxu0 0.0
        %1928 = vmatprep.subr.mxu0 0.0
        %1929 = vmatpush1.msra.mxu0 0.0
        %1930 = vmatprep.subr.mxu0 0.0
        %1931 = vmatpush1.msra.mxu0 0.0
        %1932 = vmatprep.mubr.f32.mxu0 0.0
        %1933 = vmatmul.mubr.f32.gmra.mrb[0].mxu0 %v1856
        %v1934 = vpop.f32.mrb[0].mxu0
        %v1935 = vadd.f32 0.0, %v1934
        %v1936 = vpop.f32.mrb[0].mxu0
        %v1937 = vadd.f32 0.0, %v1936
        %1938 = vmatprep.mubr.f32.mxu0 0.0
        %1939 = vmatmul.mubr.f32.gmra.mrb[0].mxu0 %v1859
        %v1940 = vpop.f32.mrb[0].mxu0
        %v1941 = vadd.f32 0.0, %v1940
        %v1942 = vpop.f32.mrb[0].mxu0
        %v1943 = vadd.f32 0.0, %v1942
        %1944 = vdwg.mxu0
        %v1946 = vsel %vm1854, %v1717, 0
        %v1949 = vsel %vm1854, %v1722, 0
        %v1952 = vsel %vm1861, %v1745, 0
        %v1955 = vsel %vm1861, %v1746, 0
        %1957 = vmatprep.subr.mxu0 %v1726
        %1958 = vmatpush1.msra.mxu0 %v1725
        %1959 = vmatprep.subr.mxu0 %v1728
        %1960 = vmatpush1.msra.mxu0 %v1727
        %1961 = vmatprep.subr.mxu0 %v1730
        %1962 = vmatpush1.msra.mxu0 %v1729
        %1963 = vmatprep.subr.mxu0 %v1732
        %1964 = vmatpush1.msra.mxu0 %v1731
        %1965 = vmatprep.subr.mxu0 %v1734
        %1966 = vmatpush1.msra.mxu0 %v1733
        %1967 = vmatprep.subr.mxu0 %v1736
        %1968 = vmatpush1.msra.mxu0 %v1735
        %1969 = vmatprep.subr.mxu0 %v1738
        %1970 = vmatpush1.msra.mxu0 %v1737
        %1971 = vmatprep.subr.mxu0 %v1740
        %1972 = vmatpush1.msra.mxu0 %v1739
        %1973 = vmatprep.subr.mxu0 %v1742
        %1974 = vmatpush1.msra.mxu0 %v1741
        %1975 = vmatprep.subr.mxu0 %v1744
        %1976 = vmatpush1.msra.mxu0 %v1743
        %1977 = vmatprep.subr.mxu0 %v1955
        %1978 = vmatpush1.msra.mxu0 %v1952
        %1979 = vmatprep.subr.mxu0 0.0
        %1980 = vmatpush1.msra.mxu0 0.0
        %1981 = vmatprep.subr.mxu0 0.0
        %1982 = vmatpush1.msra.mxu0 0.0
        %1983 = vmatprep.subr.mxu0 0.0
        %1984 = vmatpush1.msra.mxu0 0.0
        %1985 = vmatprep.subr.mxu0 0.0
        %1986 = vmatpush1.msra.mxu0 0.0
        %1987 = vmatprep.subr.mxu0 0.0
        %1988 = vmatpush1.msra.mxu0 0.0
        %1989 = vmatprep.subr.mxu0 0.0
        %1990 = vmatpush1.msra.mxu0 0.0
        %1991 = vmatprep.subr.mxu0 0.0
        %1992 = vmatpush1.msra.mxu0 0.0
        %1993 = vmatprep.subr.mxu0 0.0
        %1994 = vmatpush1.msra.mxu0 0.0
        %1995 = vmatprep.subr.mxu0 0.0
        %1996 = vmatpush1.msra.mxu0 0.0
        %1997 = vmatprep.subr.mxu0 0.0
        %1998 = vmatpush1.msra.mxu0 0.0
        %1999 = vmatprep.subr.mxu0 0.0
        %2000 = vmatpush1.msra.mxu0 0.0
        %2001 = vmatprep.subr.mxu0 0.0
        %2002 = vmatpush1.msra.mxu0 0.0
        %2003 = vmatprep.subr.mxu0 0.0
        %2004 = vmatpush1.msra.mxu0 0.0
        %2005 = vmatprep.subr.mxu0 0.0
        %2006 = vmatpush1.msra.mxu0 0.0
        %2007 = vmatprep.subr.mxu0 0.0
        %2008 = vmatpush1.msra.mxu0 0.0
        %2009 = vmatprep.subr.mxu0 0.0
        %2010 = vmatpush1.msra.mxu0 0.0
        %2011 = vmatprep.subr.mxu0 0.0
        %2012 = vmatpush1.msra.mxu0 0.0
        %2013 = vmatprep.subr.mxu0 0.0
        %2014 = vmatpush1.msra.mxu0 0.0
        %2015 = vmatprep.subr.mxu0 0.0
        %2016 = vmatpush1.msra.mxu0 0.0
        %2017 = vmatprep.subr.mxu0 0.0
        %2018 = vmatpush1.msra.mxu0 0.0
        %2019 = vmatprep.subr.mxu0 0.0
        %2020 = vmatpush1.msra.mxu0 0.0
        %2021 = vmatprep.mubr.f32.mxu0 0.0
        %2022 = vmatmul.mubr.f32.gmra.mrb[0].mxu0 %v1946
        %v2023 = vpop.f32.mrb[0].mxu0
        %v2024 = vadd.f32 %v1935, %v2023
        %v2025 = vpop.f32.mrb[0].mxu0
        %v2026 = vadd.f32 %v1937, %v2025
        %2027 = vmatprep.mubr.f32.mxu0 0.0
        %2028 = vmatmul.mubr.f32.gmra.mrb[0].mxu0 %v1949
        %v2029 = vpop.f32.mrb[0].mxu0
        %v2030 = vadd.f32 %v1941, %v2029
        %v2031 = vpop.f32.mrb[0].mxu0
        %v2032 = vadd.f32 %v1943, %v2031
        %2033 = vdwg.mxu0
        %s2034 = scalar_lea.vmem %s4, 32
        %v2035 = vld [vmem:[%s2034] sm:$0xff]
        %v2036 = vld [vmem:[%s2034 + $0x8] sm:$0x3]
        %v2038 = vsel %vm1639, %v2035, 0
        %v2041 = vsel %vm1639, %v2036, 0
        %2043 = vmatprep.subr.mxu0 0.0
        %2044 = vmatpush1.msra.mxu0 %v1635
        %2045 = vmatprep.subr.mxu0 0.0
        %2046 = vmatpush1.msra.mxu0 %v1648
        %2047 = vmatprep.subr.mxu0 0.0
        %2048 = vmatpush1.msra.mxu0 0.0
        %2049 = vmatprep.subr.mxu0 0.0
        %2050 = vmatpush1.msra.mxu0 0.0
        %2051 = vmatprep.subr.mxu0 0.0
        %2052 = vmatpush1.msra.mxu0 0.0
        %2053 = vmatprep.subr.mxu0 0.0
        %2054 = vmatpush1.msra.mxu0 0.0
        %2055 = vmatprep.subr.mxu0 0.0
        %2056 = vmatpush1.msra.mxu0 0.0
        %2057 = vmatprep.subr.mxu0 0.0
        %2058 = vmatpush1.msra.mxu0 0.0
        %2059 = vmatprep.subr.mxu0 0.0
        %2060 = vmatpush1.msra.mxu0 0.0
        %2061 = vmatprep.subr.mxu0 0.0
        %2062 = vmatpush1.msra.mxu0 0.0
        %2063 = vmatprep.subr.mxu0 0.0
        %2064 = vmatpush1.msra.mxu0 0.0
        %2065 = vmatprep.subr.mxu0 0.0
        %2066 = vmatpush1.msra.mxu0 0.0
        %2067 = vmatprep.subr.mxu0 0.0
        %2068 = vmatpush1.msra.mxu0 0.0
        %2069 = vmatprep.subr.mxu0 0.0
        %2070 = vmatpush1.msra.mxu0 0.0
        %2071 = vmatprep.subr.mxu0 0.0
        %2072 = vmatpush1.msra.mxu0 0.0
        %2073 = vmatprep.subr.mxu0 0.0
        %2074 = vmatpush1.msra.mxu0 0.0
        %2075 = vmatprep.subr.mxu0 0.0
        %2076 = vmatpush1.msra.mxu0 0.0
        %2077 = vmatprep.subr.mxu0 0.0
        %2078 = vmatpush1.msra.mxu0 0.0
        %2079 = vmatprep.subr.mxu0 0.0
        %2080 = vmatpush1.msra.mxu0 0.0
        %2081 = vmatprep.subr.mxu0 0.0
        %2082 = vmatpush1.msra.mxu0 0.0
        %2083 = vmatprep.subr.mxu0 0.0
        %2084 = vmatpush1.msra.mxu0 0.0
        %2085 = vmatprep.subr.mxu0 0.0
        %2086 = vmatpush1.msra.mxu0 0.0
        %2087 = vmatprep.subr.mxu0 0.0
        %2088 = vmatpush1.msra.mxu0 0.0
        %2089 = vmatprep.subr.mxu0 0.0
        %2090 = vmatpush1.msra.mxu0 0.0
        %2091 = vmatprep.subr.mxu0 0.0
        %2092 = vmatpush1.msra.mxu0 0.0
        %2093 = vmatprep.subr.mxu0 0.0
        %2094 = vmatpush1.msra.mxu0 0.0
        %2095 = vmatprep.subr.mxu0 0.0
        %2096 = vmatpush1.msra.mxu0 0.0
        %2097 = vmatprep.subr.mxu0 0.0
        %2098 = vmatpush1.msra.mxu0 0.0
        %2099 = vmatprep.subr.mxu0 0.0
        %2100 = vmatpush1.msra.mxu0 0.0
        %2101 = vmatprep.subr.mxu0 0.0
        %2102 = vmatpush1.msra.mxu0 0.0
        %2103 = vmatprep.subr.mxu0 0.0
        %2104 = vmatpush1.msra.mxu0 0.0
        %2105 = vmatprep.subr.mxu0 0.0
        %2106 = vmatpush1.msra.mxu0 0.0
        %2107 = vmatprep.mubr.f32.mxu0 0.0
        %2108 = vmatmul.mubr.f32.gmra.mrb[0].mxu0 %v2038
        %v2109 = vpop.f32.mrb[0].mxu0
        %v2110 = vadd.f32 0.0, %v2109
        %v2111 = vpop.f32.mrb[0].mxu0
        %2112 = vmatprep.mubr.f32.mxu0 0.0
        %2113 = vmatmul.mubr.f32.gmra.mrb[0].mxu0 %v2041
        %v2114 = vpop.f32.mrb[0].mxu0
        %v2115 = vadd.f32 0.0, %v2114
        %v2116 = vpop.f32.mrb[0].mxu0
        %2117 = vdwg.mxu0
        %s2118 = scalar_lea.vmem %s5, 352
        %v2119 = vld [vmem:[%s2118] sm:$0xff]
        %v2120 = vld [vmem:[%s2118 + $0x8] sm:$0xff]
        %v2121 = vld [vmem:[%s2118 + $0x10] sm:$0xff]
        %v2122 = vld [vmem:[%s2118 + $0x18] sm:$0xff]
        %v2123 = vld [vmem:[%s2118 + $0x20] sm:$0xff]
        %v2124 = vld [vmem:[%s2118 + $0x28] sm:$0xff]
        %v2125 = vld [vmem:[%s2118 + $0x30] sm:$0xff]
        %v2126 = vld [vmem:[%s2118 + $0x38] sm:$0xff]
        %v2127 = vld [vmem:[%s2118 + $0x40] sm:$0xff]
        %v2128 = vld [vmem:[%s2118 + $0x48] sm:$0xff]
        %v2129 = vld [vmem:[%s2118 + $0x50] sm:$0xff]
        %v2130 = vld [vmem:[%s2118 + $0x58] sm:$0xff]
        %v2131 = vld [vmem:[%s2118 + $0x60] sm:$0xff]
        %v2132 = vld [vmem:[%s2118 + $0x68] sm:$0xff]
        %v2133 = vld [vmem:[%s2118 + $0x70] sm:$0xff]
        %v2134 = vld [vmem:[%s2118 + $0x78] sm:$0xff]
        %v2135 = vld [vmem:[%s2118 + $0x80] sm:$0xff]
        %v2136 = vld [vmem:[%s2118 + $0x88] sm:$0xff]
        %v2137 = vld [vmem:[%s2118 + $0x90] sm:$0xff]
        %v2138 = vld [vmem:[%s2118 + $0x98] sm:$0xff]
        %v2139 = vld [vmem:[%s2118 + $0xa0] sm:$0xf]
        %v2140 = vld [vmem:[%s2118 + $0xa8] sm:$0xf]
        %v2142 = vsel %vm1854, %v2110, 0
        %v2145 = vsel %vm1854, %v2115, 0
        %v2148 = vsel %vm1861, %v2139, 0
        %v2151 = vsel %vm1861, %v2140, 0
        %2153 = vmatprep.subr.mxu0 %v2120
        %2154 = vmatpush1.msra.mxu0 %v2119
        %2155 = vmatprep.subr.mxu0 %v2122
        %2156 = vmatpush1.msra.mxu0 %v2121
        %2157 = vmatprep.subr.mxu0 %v2124
        %2158 = vmatpush1.msra.mxu0 %v2123
        %2159 = vmatprep.subr.mxu0 %v2126
        %2160 = vmatpush1.msra.mxu0 %v2125
        %2161 = vmatprep.subr.mxu0 %v2128
        %2162 = vmatpush1.msra.mxu0 %v2127
        %2163 = vmatprep.subr.mxu0 %v2130
        %2164 = vmatpush1.msra.mxu0 %v2129
        %2165 = vmatprep.subr.mxu0 %v2132
        %2166 = vmatpush1.msra.mxu0 %v2131
        %2167 = vmatprep.subr.mxu0 %v2134
        %2168 = vmatpush1.msra.mxu0 %v2133
        %2169 = vmatprep.subr.mxu0 %v2136
        %2170 = vmatpush1.msra.mxu0 %v2135
        %2171 = vmatprep.subr.mxu0 %v2138
        %2172 = vmatpush1.msra.mxu0 %v2137
        %2173 = vmatprep.subr.mxu0 %v2151
        %2174 = vmatpush1.msra.mxu0 %v2148
        %2175 = vmatprep.subr.mxu0 0.0
        %2176 = vmatpush1.msra.mxu0 0.0
        %2177 = vmatprep.subr.mxu0 0.0
        %2178 = vmatpush1.msra.mxu0 0.0
        %2179 = vmatprep.subr.mxu0 0.0
        %2180 = vmatpush1.msra.mxu0 0.0
        %2181 = vmatprep.subr.mxu0 0.0
        %2182 = vmatpush1.msra.mxu0 0.0
        %2183 = vmatprep.subr.mxu0 0.0
        %2184 = vmatpush1.msra.mxu0 0.0
        %2185 = vmatprep.subr.mxu0 0.0
        %2186 = vmatpush1.msra.mxu0 0.0
        %2187 = vmatprep.subr.mxu0 0.0
        %2188 = vmatpush1.msra.mxu0 0.0
        %2189 = vmatprep.subr.mxu0 0.0
        %2190 = vmatpush1.msra.mxu0 0.0
        %2191 = vmatprep.subr.mxu0 0.0
        %2192 = vmatpush1.msra.mxu0 0.0
        %2193 = vmatprep.subr.mxu0 0.0
        %2194 = vmatpush1.msra.mxu0 0.0
        %2195 = vmatprep.subr.mxu0 0.0
        %2196 = vmatpush1.msra.mxu0 0.0
        %2197 = vmatprep.subr.mxu0 0.0
        %2198 = vmatpush1.msra.mxu0 0.0
        %2199 = vmatprep.subr.mxu0 0.0
        %2200 = vmatpush1.msra.mxu0 0.0
        %2201 = vmatprep.subr.mxu0 0.0
        %2202 = vmatpush1.msra.mxu0 0.0
        %2203 = vmatprep.subr.mxu0 0.0
        %2204 = vmatpush1.msra.mxu0 0.0
        %2205 = vmatprep.subr.mxu0 0.0
        %2206 = vmatpush1.msra.mxu0 0.0
        %2207 = vmatprep.subr.mxu0 0.0
        %2208 = vmatpush1.msra.mxu0 0.0
        %2209 = vmatprep.subr.mxu0 0.0
        %2210 = vmatpush1.msra.mxu0 0.0
        %2211 = vmatprep.subr.mxu0 0.0
        %2212 = vmatpush1.msra.mxu0 0.0
        %2213 = vmatprep.subr.mxu0 0.0
        %2214 = vmatpush1.msra.mxu0 0.0
        %2215 = vmatprep.subr.mxu0 0.0
        %2216 = vmatpush1.msra.mxu0 0.0
        %2217 = vmatprep.mubr.f32.mxu0 0.0
        %2218 = vmatmul.mubr.f32.gmra.mrb[0].mxu0 %v2142
        %v2219 = vpop.f32.mrb[0].mxu0
        %v2220 = vadd.f32 0.0, %v2219
        %v2221 = vpop.f32.mrb[0].mxu0
        %v2222 = vadd.f32 0.0, %v2221
        %2223 = vmatprep.mubr.f32.mxu0 0.0
        %2224 = vmatmul.mubr.f32.gmra.mrb[0].mxu0 %v2145
        %v2225 = vpop.f32.mrb[0].mxu0
        %v2226 = vadd.f32 0.0, %v2225
        %v2227 = vpop.f32.mrb[0].mxu0
        %v2228 = vadd.f32 0.0, %v2227
        %2229 = vdwg.mxu0
        %v2230 = vadd.f32 %v2024, %v2220
        %v2231 = vadd.f32 %v2026, %v2222
        %v2232 = vadd.f32 %v2030, %v2226
        %v2233 = vadd.f32 %v2032, %v2228
        %s2234 = scalar_lea.vmem %s4, 48
        %v2235 = vld [vmem:[%s2234] sm:$0xff]
        %v2236 = vld [vmem:[%s2234 + $0x8] sm:$0x3]
        %v2238 = vsel %vm1639, %v2235, 0
        %v2241 = vsel %vm1639, %v2236, 0
        %2243 = vmatprep.subr.mxu0 0.0
        %2244 = vmatpush1.msra.mxu0 %v1635
        %2245 = vmatprep.subr.mxu0 0.0
        %2246 = vmatpush1.msra.mxu0 %v1648
        %2247 = vmatprep.subr.mxu0 0.0
        %2248 = vmatpush1.msra.mxu0 0.0
        %2249 = vmatprep.subr.mxu0 0.0
        %2250 = vmatpush1.msra.mxu0 0.0
        %2251 = vmatprep.subr.mxu0 0.0
        %2252 = vmatpush1.msra.mxu0 0.0
        %2253 = vmatprep.subr.mxu0 0.0
        %2254 = vmatpush1.msra.mxu0 0.0
        %2255 = vmatprep.subr.mxu0 0.0
        %2256 = vmatpush1.msra.mxu0 0.0
        %2257 = vmatprep.subr.mxu0 0.0
        %2258 = vmatpush1.msra.mxu0 0.0
        %2259 = vmatprep.subr.mxu0 0.0
        %2260 = vmatpush1.msra.mxu0 0.0
        %2261 = vmatprep.subr.mxu0 0.0
        %2262 = vmatpush1.msra.mxu0 0.0
        %2263 = vmatprep.subr.mxu0 0.0
        %2264 = vmatpush1.msra.mxu0 0.0
        %2265 = vmatprep.subr.mxu0 0.0
        %2266 = vmatpush1.msra.mxu0 0.0
        %2267 = vmatprep.subr.mxu0 0.0
        %2268 = vmatpush1.msra.mxu0 0.0
        %2269 = vmatprep.subr.mxu0 0.0
        %2270 = vmatpush1.msra.mxu0 0.0
        %2271 = vmatprep.subr.mxu0 0.0
        %2272 = vmatpush1.msra.mxu0 0.0
        %2273 = vmatprep.subr.mxu0 0.0
        %2274 = vmatpush1.msra.mxu0 0.0
        %2275 = vmatprep.subr.mxu0 0.0
        %2276 = vmatpush1.msra.mxu0 0.0
        %2277 = vmatprep.subr.mxu0 0.0
        %2278 = vmatpush1.msra.mxu0 0.0
        %2279 = vmatprep.subr.mxu0 0.0
        %2280 = vmatpush1.msra.mxu0 0.0
        %2281 = vmatprep.subr.mxu0 0.0
        %2282 = vmatpush1.msra.mxu0 0.0
        %2283 = vmatprep.subr.mxu0 0.0
        %2284 = vmatpush1.msra.mxu0 0.0
        %2285 = vmatprep.subr.mxu0 0.0
        %2286 = vmatpush1.msra.mxu0 0.0
        %2287 = vmatprep.subr.mxu0 0.0
        %2288 = vmatpush1.msra.mxu0 0.0
        %2289 = vmatprep.subr.mxu0 0.0
        %2290 = vmatpush1.msra.mxu0 0.0
        %2291 = vmatprep.subr.mxu0 0.0
        %2292 = vmatpush1.msra.mxu0 0.0
        %2293 = vmatprep.subr.mxu0 0.0
        %2294 = vmatpush1.msra.mxu0 0.0
        %2295 = vmatprep.subr.mxu0 0.0
        %2296 = vmatpush1.msra.mxu0 0.0
        %2297 = vmatprep.subr.mxu0 0.0
        %2298 = vmatpush1.msra.mxu0 0.0
        %2299 = vmatprep.subr.mxu0 0.0
        %2300 = vmatpush1.msra.mxu0 0.0
        %2301 = vmatprep.subr.mxu0 0.0
        %2302 = vmatpush1.msra.mxu0 0.0
        %2303 = vmatprep.subr.mxu0 0.0
        %2304 = vmatpush1.msra.mxu0 0.0
        %2305 = vmatprep.subr.mxu0 0.0
        %2306 = vmatpush1.msra.mxu0 0.0
        %2307 = vmatprep.mubr.f32.mxu0 0.0
        %2308 = vmatmul.mubr.f32.gmra.mrb[0].mxu0 %v2238
        %v2309 = vpop.f32.mrb[0].mxu0
        %v2310 = vadd.f32 0.0, %v2309
        %v2311 = vpop.f32.mrb[0].mxu0
        %2312 = vmatprep.mubr.f32.mxu0 0.0
        %2313 = vmatmul.mubr.f32.gmra.mrb[0].mxu0 %v2241
        %v2314 = vpop.f32.mrb[0].mxu0
        %v2315 = vadd.f32 0.0, %v2314
        %v2316 = vpop.f32.mrb[0].mxu0
        %2317 = vdwg.mxu0
        %s2318 = scalar_lea.vmem %s5, 528
        %v2319 = vld [vmem:[%s2318] sm:$0xff]
        %v2320 = vld [vmem:[%s2318 + $0x8] sm:$0xff]
        %v2321 = vld [vmem:[%s2318 + $0x10] sm:$0xff]
        %v2322 = vld [vmem:[%s2318 + $0x18] sm:$0xff]
        %v2323 = vld [vmem:[%s2318 + $0x20] sm:$0xff]
        %v2324 = vld [vmem:[%s2318 + $0x28] sm:$0xff]
        %v2325 = vld [vmem:[%s2318 + $0x30] sm:$0xff]
        %v2326 = vld [vmem:[%s2318 + $0x38] sm:$0xff]
        %v2327 = vld [vmem:[%s2318 + $0x40] sm:$0xff]
        %v2328 = vld [vmem:[%s2318 + $0x48] sm:$0xff]
        %v2329 = vld [vmem:[%s2318 + $0x50] sm:$0xff]
        %v2330 = vld [vmem:[%s2318 + $0x58] sm:$0xff]
        %v2331 = vld [vmem:[%s2318 + $0x60] sm:$0xff]
        %v2332 = vld [vmem:[%s2318 + $0x68] sm:$0xff]
        %v2333 = vld [vmem:[%s2318 + $0x70] sm:$0xff]
        %v2334 = vld [vmem:[%s2318 + $0x78] sm:$0xff]
        %v2335 = vld [vmem:[%s2318 + $0x80] sm:$0xff]
        %v2336 = vld [vmem:[%s2318 + $0x88] sm:$0xff]
        %v2337 = vld [vmem:[%s2318 + $0x90] sm:$0xff]
        %v2338 = vld [vmem:[%s2318 + $0x98] sm:$0xff]
        %v2339 = vld [vmem:[%s2318 + $0xa0] sm:$0xf]
        %v2340 = vld [vmem:[%s2318 + $0xa8] sm:$0xf]
        %v2342 = vsel %vm1854, %v2310, 0
        %v2345 = vsel %vm1854, %v2315, 0
        %v2348 = vsel %vm1861, %v2339, 0
        %v2351 = vsel %vm1861, %v2340, 0
        %2353 = vmatprep.subr.mxu0 %v2320
        %2354 = vmatpush1.msra.mxu0 %v2319
        %2355 = vmatprep.subr.mxu0 %v2322
        %2356 = vmatpush1.msra.mxu0 %v2321
        %2357 = vmatprep.subr.mxu0 %v2324
        %2358 = vmatpush1.msra.mxu0 %v2323
        %2359 = vmatprep.subr.mxu0 %v2326
        %2360 = vmatpush1.msra.mxu0 %v2325
        %2361 = vmatprep.subr.mxu0 %v2328
        %2362 = vmatpush1.msra.mxu0 %v2327
        %2363 = vmatprep.subr.mxu0 %v2330
        %2364 = vmatpush1.msra.mxu0 %v2329
        %2365 = vmatprep.subr.mxu0 %v2332
        %2366 = vmatpush1.msra.mxu0 %v2331
        %2367 = vmatprep.subr.mxu0 %v2334
        %2368 = vmatpush1.msra.mxu0 %v2333
        %2369 = vmatprep.subr.mxu0 %v2336
        %2370 = vmatpush1.msra.mxu0 %v2335
        %2371 = vmatprep.subr.mxu0 %v2338
        %2372 = vmatpush1.msra.mxu0 %v2337
        %2373 = vmatprep.subr.mxu0 %v2351
        %2374 = vmatpush1.msra.mxu0 %v2348
        %2375 = vmatprep.subr.mxu0 0.0
        %2376 = vmatpush1.msra.mxu0 0.0
        %2377 = vmatprep.subr.mxu0 0.0
        %2378 = vmatpush1.msra.mxu0 0.0
        %2379 = vmatprep.subr.mxu0 0.0
        %2380 = vmatpush1.msra.mxu0 0.0
        %2381 = vmatprep.subr.mxu0 0.0
        %2382 = vmatpush1.msra.mxu0 0.0
        %2383 = vmatprep.subr.mxu0 0.0
        %2384 = vmatpush1.msra.mxu0 0.0
        %2385 = vmatprep.subr.mxu0 0.0
        %2386 = vmatpush1.msra.mxu0 0.0
        %2387 = vmatprep.subr.mxu0 0.0
        %2388 = vmatpush1.msra.mxu0 0.0
        %2389 = vmatprep.subr.mxu0 0.0
        %2390 = vmatpush1.msra.mxu0 0.0
        %2391 = vmatprep.subr.mxu0 0.0
        %2392 = vmatpush1.msra.mxu0 0.0
        %2393 = vmatprep.subr.mxu0 0.0
        %2394 = vmatpush1.msra.mxu0 0.0
        %2395 = vmatprep.subr.mxu0 0.0
        %2396 = vmatpush1.msra.mxu0 0.0
        %2397 = vmatprep.subr.mxu0 0.0
        %2398 = vmatpush1.msra.mxu0 0.0
        %2399 = vmatprep.subr.mxu0 0.0
        %2400 = vmatpush1.msra.mxu0 0.0
        %2401 = vmatprep.subr.mxu0 0.0
        %2402 = vmatpush1.msra.mxu0 0.0
        %2403 = vmatprep.subr.mxu0 0.0
        %2404 = vmatpush1.msra.mxu0 0.0
        %2405 = vmatprep.subr.mxu0 0.0
        %2406 = vmatpush1.msra.mxu0 0.0
        %2407 = vmatprep.subr.mxu0 0.0
        %2408 = vmatpush1.msra.mxu0 0.0
        %2409 = vmatprep.subr.mxu0 0.0
        %2410 = vmatpush1.msra.mxu0 0.0
        %2411 = vmatprep.subr.mxu0 0.0
        %2412 = vmatpush1.msra.mxu0 0.0
        %2413 = vmatprep.subr.mxu0 0.0
        %2414 = vmatpush1.msra.mxu0 0.0
        %2415 = vmatprep.subr.mxu0 0.0
        %2416 = vmatpush1.msra.mxu0 0.0
        %2417 = vmatprep.mubr.f32.mxu0 0.0
        %2418 = vmatmul.mubr.f32.gmra.mrb[0].mxu0 %v2342
        %v2419 = vpop.f32.mrb[0].mxu0
        %v2420 = vadd.f32 0.0, %v2419
        %v2421 = vpop.f32.mrb[0].mxu0
        %v2422 = vadd.f32 0.0, %v2421
        %2423 = vmatprep.mubr.f32.mxu0 0.0
        %2424 = vmatmul.mubr.f32.gmra.mrb[0].mxu0 %v2345
        %v2425 = vpop.f32.mrb[0].mxu0
        %v2426 = vadd.f32 0.0, %v2425
        %v2427 = vpop.f32.mrb[0].mxu0
        %v2428 = vadd.f32 0.0, %v2427
        %2429 = vdwg.mxu0
        %v2430 = vadd.f32 %v2230, %v2420
        %v2431 = vadd.f32 %v2231, %v2422
        %v2432 = vadd.f32 %v2232, %v2426
        %v2433 = vadd.f32 %v2233, %v2428
        %s2434 = scalar_lea.vmem %s4, 64
        %v2435 = vld [vmem:[%s2434] sm:$0xff]
        %v2436 = vld [vmem:[%s2434 + $0x8] sm:$0x3]
        %v2438 = vsel %vm1639, %v2435, 0
        %v2441 = vsel %vm1639, %v2436, 0
        %2443 = vmatprep.subr.mxu0 0.0
        %2444 = vmatpush1.msra.mxu0 %v1635
        %2445 = vmatprep.subr.mxu0 0.0
        %2446 = vmatpush1.msra.mxu0 %v1648
        %2447 = vmatprep.subr.mxu0 0.0
        %2448 = vmatpush1.msra.mxu0 0.0
        %2449 = vmatprep.subr.mxu0 0.0
        %2450 = vmatpush1.msra.mxu0 0.0
        %2451 = vmatprep.subr.mxu0 0.0
        %2452 = vmatpush1.msra.mxu0 0.0
        %2453 = vmatprep.subr.mxu0 0.0
        %2454 = vmatpush1.msra.mxu0 0.0
        %2455 = vmatprep.subr.mxu0 0.0
        %2456 = vmatpush1.msra.mxu0 0.0
        %2457 = vmatprep.subr.mxu0 0.0
        %2458 = vmatpush1.msra.mxu0 0.0
        %2459 = vmatprep.subr.mxu0 0.0
        %2460 = vmatpush1.msra.mxu0 0.0
        %2461 = vmatprep.subr.mxu0 0.0
        %2462 = vmatpush1.msra.mxu0 0.0
        %2463 = vmatprep.subr.mxu0 0.0
        %2464 = vmatpush1.msra.mxu0 0.0
        %2465 = vmatprep.subr.mxu0 0.0
        %2466 = vmatpush1.msra.mxu0 0.0
        %2467 = vmatprep.subr.mxu0 0.0
        %2468 = vmatpush1.msra.mxu0 0.0
        %2469 = vmatprep.subr.mxu0 0.0
        %2470 = vmatpush1.msra.mxu0 0.0
        %2471 = vmatprep.subr.mxu0 0.0
        %2472 = vmatpush1.msra.mxu0 0.0
        %2473 = vmatprep.subr.mxu0 0.0
        %2474 = vmatpush1.msra.mxu0 0.0
        %2475 = vmatprep.subr.mxu0 0.0
        %2476 = vmatpush1.msra.mxu0 0.0
        %2477 = vmatprep.subr.mxu0 0.0
        %2478 = vmatpush1.msra.mxu0 0.0
        %2479 = vmatprep.subr.mxu0 0.0
        %2480 = vmatpush1.msra.mxu0 0.0
        %2481 = vmatprep.subr.mxu0 0.0
        %2482 = vmatpush1.msra.mxu0 0.0
        %2483 = vmatprep.subr.mxu0 0.0
        %2484 = vmatpush1.msra.mxu0 0.0
        %2485 = vmatprep.subr.mxu0 0.0
        %2486 = vmatpush1.msra.mxu0 0.0
        %2487 = vmatprep.subr.mxu0 0.0
        %2488 = vmatpush1.msra.mxu0 0.0
        %2489 = vmatprep.subr.mxu0 0.0
        %2490 = vmatpush1.msra.mxu0 0.0
        %2491 = vmatprep.subr.mxu0 0.0
        %2492 = vmatpush1.msra.mxu0 0.0
        %2493 = vmatprep.subr.mxu0 0.0
        %2494 = vmatpush1.msra.mxu0 0.0
        %2495 = vmatprep.subr.mxu0 0.0
        %2496 = vmatpush1.msra.mxu0 0.0
        %2497 = vmatprep.subr.mxu0 0.0
        %2498 = vmatpush1.msra.mxu0 0.0
        %2499 = vmatprep.subr.mxu0 0.0
        %2500 = vmatpush1.msra.mxu0 0.0
        %2501 = vmatprep.subr.mxu0 0.0
        %2502 = vmatpush1.msra.mxu0 0.0
        %2503 = vmatprep.subr.mxu0 0.0
        %2504 = vmatpush1.msra.mxu0 0.0
        %2505 = vmatprep.subr.mxu0 0.0
        %2506 = vmatpush1.msra.mxu0 0.0
        %2507 = vmatprep.mubr.f32.mxu0 0.0
        %2508 = vmatmul.mubr.f32.gmra.mrb[0].mxu0 %v2438
        %v2509 = vpop.f32.mrb[0].mxu0
        %v2510 = vadd.f32 0.0, %v2509
        %v2511 = vpop.f32.mrb[0].mxu0
        %2512 = vmatprep.mubr.f32.mxu0 0.0
        %2513 = vmatmul.mubr.f32.gmra.mrb[0].mxu0 %v2441
        %v2514 = vpop.f32.mrb[0].mxu0
        %v2515 = vadd.f32 0.0, %v2514
        %v2516 = vpop.f32.mrb[0].mxu0
        %2517 = vdwg.mxu0
        %s2518 = scalar_lea.vmem %s5, 704
        %v2519 = vld [vmem:[%s2518] sm:$0xff]
        %v2520 = vld [vmem:[%s2518 + $0x8] sm:$0xff]
        %v2521 = vld [vmem:[%s2518 + $0x10] sm:$0xff]
        %v2522 = vld [vmem:[%s2518 + $0x18] sm:$0xff]
        %v2523 = vld [vmem:[%s2518 + $0x20] sm:$0xff]
        %v2524 = vld [vmem:[%s2518 + $0x28] sm:$0xff]
        %v2525 = vld [vmem:[%s2518 + $0x30] sm:$0xff]
        %v2526 = vld [vmem:[%s2518 + $0x38] sm:$0xff]
        %v2527 = vld [vmem:[%s2518 + $0x40] sm:$0xff]
        %v2528 = vld [vmem:[%s2518 + $0x48] sm:$0xff]
        %v2529 = vld [vmem:[%s2518 + $0x50] sm:$0xff]
        %v2530 = vld [vmem:[%s2518 + $0x58] sm:$0xff]
        %v2531 = vld [vmem:[%s2518 + $0x60] sm:$0xff]
        %v2532 = vld [vmem:[%s2518 + $0x68] sm:$0xff]
        %v2533 = vld [vmem:[%s2518 + $0x70] sm:$0xff]
        %v2534 = vld [vmem:[%s2518 + $0x78] sm:$0xff]
        %v2535 = vld [vmem:[%s2518 + $0x80] sm:$0xff]
        %v2536 = vld [vmem:[%s2518 + $0x88] sm:$0xff]
        %v2537 = vld [vmem:[%s2518 + $0x90] sm:$0xff]
        %v2538 = vld [vmem:[%s2518 + $0x98] sm:$0xff]
        %v2539 = vld [vmem:[%s2518 + $0xa0] sm:$0xf]
        %v2540 = vld [vmem:[%s2518 + $0xa8] sm:$0xf]
        %v2542 = vsel %vm1854, %v2510, 0
        %v2545 = vsel %vm1854, %v2515, 0
        %v2548 = vsel %vm1861, %v2539, 0
        %v2551 = vsel %vm1861, %v2540, 0
        %2553 = vmatprep.subr.mxu0 %v2520
        %2554 = vmatpush1.msra.mxu0 %v2519
        %2555 = vmatprep.subr.mxu0 %v2522
        %2556 = vmatpush1.msra.mxu0 %v2521
        %2557 = vmatprep.subr.mxu0 %v2524
        %2558 = vmatpush1.msra.mxu0 %v2523
        %2559 = vmatprep.subr.mxu0 %v2526
        %2560 = vmatpush1.msra.mxu0 %v2525
        %2561 = vmatprep.subr.mxu0 %v2528
        %2562 = vmatpush1.msra.mxu0 %v2527
        %2563 = vmatprep.subr.mxu0 %v2530
        %2564 = vmatpush1.msra.mxu0 %v2529
        %2565 = vmatprep.subr.mxu0 %v2532
        %2566 = vmatpush1.msra.mxu0 %v2531
        %2567 = vmatprep.subr.mxu0 %v2534
        %2568 = vmatpush1.msra.mxu0 %v2533
        %2569 = vmatprep.subr.mxu0 %v2536
        %2570 = vmatpush1.msra.mxu0 %v2535
        %2571 = vmatprep.subr.mxu0 %v2538
        %2572 = vmatpush1.msra.mxu0 %v2537
        %2573 = vmatprep.subr.mxu0 %v2551
        %2574 = vmatpush1.msra.mxu0 %v2548
        %2575 = vmatprep.subr.mxu0 0.0
        %2576 = vmatpush1.msra.mxu0 0.0
        %2577 = vmatprep.subr.mxu0 0.0
        %2578 = vmatpush1.msra.mxu0 0.0
        %2579 = vmatprep.subr.mxu0 0.0
        %2580 = vmatpush1.msra.mxu0 0.0
        %2581 = vmatprep.subr.mxu0 0.0
        %2582 = vmatpush1.msra.mxu0 0.0
        %2583 = vmatprep.subr.mxu0 0.0
        %2584 = vmatpush1.msra.mxu0 0.0
        %2585 = vmatprep.subr.mxu0 0.0
        %2586 = vmatpush1.msra.mxu0 0.0
        %2587 = vmatprep.subr.mxu0 0.0
        %2588 = vmatpush1.msra.mxu0 0.0
        %2589 = vmatprep.subr.mxu0 0.0
        %2590 = vmatpush1.msra.mxu0 0.0
        %2591 = vmatprep.subr.mxu0 0.0
        %2592 = vmatpush1.msra.mxu0 0.0
        %2593 = vmatprep.subr.mxu0 0.0
        %2594 = vmatpush1.msra.mxu0 0.0
        %2595 = vmatprep.subr.mxu0 0.0
        %2596 = vmatpush1.msra.mxu0 0.0
        %2597 = vmatprep.subr.mxu0 0.0
        %2598 = vmatpush1.msra.mxu0 0.0
        %2599 = vmatprep.subr.mxu0 0.0
        %2600 = vmatpush1.msra.mxu0 0.0
        %2601 = vmatprep.subr.mxu0 0.0
        %2602 = vmatpush1.msra.mxu0 0.0
        %2603 = vmatprep.subr.mxu0 0.0
        %2604 = vmatpush1.msra.mxu0 0.0
        %2605 = vmatprep.subr.mxu0 0.0
        %2606 = vmatpush1.msra.mxu0 0.0
        %2607 = vmatprep.subr.mxu0 0.0
        %2608 = vmatpush1.msra.mxu0 0.0
        %2609 = vmatprep.subr.mxu0 0.0
        %2610 = vmatpush1.msra.mxu0 0.0
        %2611 = vmatprep.subr.mxu0 0.0
        %2612 = vmatpush1.msra.mxu0 0.0
        %2613 = vmatprep.subr.mxu0 0.0
        %2614 = vmatpush1.msra.mxu0 0.0
        %2615 = vmatprep.subr.mxu0 0.0
        %2616 = vmatpush1.msra.mxu0 0.0
        %2617 = vmatprep.mubr.f32.mxu0 0.0
        %2618 = vmatmul.mubr.f32.gmra.mrb[0].mxu0 %v2542
        %v2619 = vpop.f32.mrb[0].mxu0
        %v2620 = vadd.f32 0.0, %v2619
        %v2621 = vpop.f32.mrb[0].mxu0
        %v2622 = vadd.f32 0.0, %v2621
        %2623 = vmatprep.mubr.f32.mxu0 0.0
        %2624 = vmatmul.mubr.f32.gmra.mrb[0].mxu0 %v2545
        %v2625 = vpop.f32.mrb[0].mxu0
        %v2626 = vadd.f32 0.0, %v2625
        %v2627 = vpop.f32.mrb[0].mxu0
        %v2628 = vadd.f32 0.0, %v2627
        %2629 = vdwg.mxu0
        %v2630 = vadd.f32 %v2430, %v2620
        %v2631 = vadd.f32 %v2431, %v2622
        %v2632 = vadd.f32 %v2432, %v2626
        %v2633 = vadd.f32 %v2433, %v2628
        %v2634 = vld [vmem:[%s6] sm:$0x3]
        %v2636 = vlaneseq
        %v2637 = vshrl.u32 %v2636, 7
        %v2638 = vsub.s32 0, %v2637
        %v2639 = vrot.slane %v2634, %v2638
        %v2640 = vlaneseq
        %v2641 = vshrl.u32 %v2640, 7
        %v2642 = vsub.s32 1, %v2641
        %v2643 = vrot.slane %v2634, %v2642
        %v2646 = vadd.f32 %v2630, %v2639
        %v2647 = vadd.f32 %v2631, %v2643
        %v2648 = vadd.f32 %v2632, %v2639
        %v2649 = vadd.f32 %v2633, %v2643
        %v2650 = vsub.f32 0.0, %v2646
        %v2651 = vsub.f32 0.0, %v2647
        %v2652 = vsub.f32 0.0, %v2648
        %v2653 = vsub.f32 0.0, %v2649
        %v2654 = vmul.f32 %v2650, 1.442695
        %v2655 = vpow.pop %v2654
        %v2656 = vmul.f32 %v2651, 1.442695
        %v2657 = vpow.pop %v2656
        %v2658 = vmul.f32 %v2652, 1.442695
        %v2659 = vpow.pop %v2658
        %v2660 = vmul.f32 %v2653, 1.442695
        %v2661 = vpow.pop %v2660
        %v2662 = vadd.f32 %v2655, 1.0
        %v2663 = vadd.f32 %v2657, 1.0
        %v2664 = vadd.f32 %v2659, 1.0
        %v2665 = vadd.f32 %v2661, 1.0
        %v2666 = vrcp.pop %v2662
        %v2667 = vmul.f32 1.0, %v2666
        %v2668 = vrcp.pop %v2663
        %v2669 = vmul.f32 1.0, %v2668
        %v2670 = vrcp.pop %v2664
        %v2671 = vmul.f32 1.0, %v2670
        %v2672 = vrcp.pop %v2665
        %v2673 = vmul.f32 1.0, %v2672
        %vm2678 = vcmask 1042432
        %v2679 = vrot.slane %v2667, 5
        %v2680 = vrot.slane %v2671, 5
        %v2681 = vsel %vm2678, %v2679, %v2680
        %v2682 = vrot.slane %v2669, 5
        %v2683 = vrot.slane %v2673, 5
        %v2684 = vsel %vm2678, %v2682, %v2683
        %v2687 = vmax.f32 %v2667, %v2681
        %v2688 = vmax.f32 %v2669, %v2684
        %2691 = vrot.lane.b32.xlu0 %v2687, 48
        %v2692 = vpop.permute.xlu0 %2691
        %2693 = vrot.lane.b32.xlu0 %v2688, 48
        %v2694 = vpop.permute.xlu0 %2693
        %vm2695 = vcmask 392192
        %v2696 = vsel %vm2695, %v2692, %v2694
        %v2698 = vmax.f32 %v2687, %v2696
        %v2699 = vld [vmem:[%s7] sm:$0xff]
        %v2700 = vld [vmem:[%s7 + $0x8] sm:$0xff]
        %v2701 = vld [vmem:[%s7 + $0x10] sm:$0xff]
        %v2702 = vld [vmem:[%s7 + $0x18] sm:$0xff]
        %v2703 = vld [vmem:[%s7 + $0x20] sm:$0xff]
        %v2704 = vld [vmem:[%s7 + $0x28] sm:$0xff]
        %v2705 = vld [vmem:[%s7 + $0x30] sm:$0xff]
        %v2706 = vld [vmem:[%s7 + $0x38] sm:$0xff]
        %v2707 = vld [vmem:[%s7 + $0x40] sm:$0xff]
        %v2708 = vld [vmem:[%s7 + $0x48] sm:$0xff]
        %v2709 = vld [vmem:[%s7 + $0x50] sm:$0xff]
        %v2710 = vld [vmem:[%s7 + $0x58] sm:$0xff]
        %v2711 = vld [vmem:[%s7 + $0x60] sm:$0xff]
        %v2712 = vld [vmem:[%s7 + $0x68] sm:$0xff]
        %v2713 = vld [vmem:[%s7 + $0x70] sm:$0xff]
        %v2714 = vld [vmem:[%s7 + $0x78] sm:$0xff]
        %v2715 = vld [vmem:[%s7 + $0x80] sm:$0xff]
        %v2716 = vld [vmem:[%s7 + $0x88] sm:$0xff]
        %v2717 = vld [vmem:[%s7 + $0x90] sm:$0xff]
        %v2718 = vld [vmem:[%s7 + $0x98] sm:$0xff]
        %v2719 = vld [vmem:[%s7 + $0xa0] sm:$0xff]
        %v2720 = vld [vmem:[%s7 + $0xa8] sm:$0xff]
        %v2721 = vld [vmem:[%s7 + $0xb0] sm:$0xff]
        %v2722 = vld [vmem:[%s7 + $0xb8] sm:$0xff]
        %v2723 = vld [vmem:[%s7 + $0xc0] sm:$0xff]
        %v2724 = vld [vmem:[%s7 + $0xc8] sm:$0xff]
        %v2725 = vld [vmem:[%s7 + $0xd0] sm:$0xff]
        %v2726 = vld [vmem:[%s7 + $0xd8] sm:$0xff]
        %v2727 = vld [vmem:[%s7 + $0xe0] sm:$0xff]
        %v2728 = vld [vmem:[%s7 + $0xe8] sm:$0xff]
        %v2729 = vld [vmem:[%s7 + $0xf0] sm:$0xff]
        %v2730 = vld [vmem:[%s7 + $0xf8] sm:$0xff]
        %v2731 = vld [vmem:[%s7 + $0x100] sm:$0xff]
        %v2732 = vld [vmem:[%s7 + $0x108] sm:$0xff]
        %v2733 = vld [vmem:[%s7 + $0x110] sm:$0xff]
        %v2734 = vld [vmem:[%s7 + $0x118] sm:$0xff]
        %v2735 = vld [vmem:[%s7 + $0x120] sm:$0xff]
        %v2736 = vld [vmem:[%s7 + $0x128] sm:$0xff]
        %v2737 = vld [vmem:[%s7 + $0x130] sm:$0xff]
        %v2738 = vld [vmem:[%s7 + $0x138] sm:$0xff]
        %v2739 = vld [vmem:[%s7 + $0x140] sm:$0xff]
        %v2740 = vld [vmem:[%s7 + $0x148] sm:$0xff]
        %v2741 = vld [vmem:[%s7 + $0x150] sm:$0xff]
        %v2742 = vld [vmem:[%s7 + $0x158] sm:$0xff]
        %v2743 = vld [vmem:[%s7 + $0x160] sm:$0xff]
        %v2744 = vld [vmem:[%s7 + $0x168] sm:$0xff]
        %v2745 = vld [vmem:[%s7 + $0x170] sm:$0xff]
        %v2746 = vld [vmem:[%s7 + $0x178] sm:$0xff]
        %v2747 = vld [vmem:[%s7 + $0x180] sm:$0xff]
        %v2748 = vld [vmem:[%s7 + $0x188] sm:$0xff]
        %v2749 = vld [vmem:[%s8] sm:$0x1]
        %vm2750 = vcmask 654336
        %v2752 = vsel %vm2750, %v2698, 0
        %2754 = vmatprep.subr.mxu0 0.0
        %2755 = vmatpush1.msra.mxu0 %v2699
        %2756 = vmatprep.subr.mxu0 0.0
        %2757 = vmatpush1.msra.mxu0 %v2700
        %2758 = vmatprep.subr.mxu0 0.0
        %2759 = vmatpush1.msra.mxu0 %v2701
        %2760 = vmatprep.subr.mxu0 0.0
        %2761 = vmatpush1.msra.mxu0 %v2702
        %2762 = vmatprep.subr.mxu0 0.0
        %2763 = vmatpush1.msra.mxu0 %v2703
        %2764 = vmatprep.subr.mxu0 0.0
        %2765 = vmatpush1.msra.mxu0 %v2704
        %2766 = vmatprep.subr.mxu0 0.0
        %2767 = vmatpush1.msra.mxu0 %v2705
        %2768 = vmatprep.subr.mxu0 0.0
        %2769 = vmatpush1.msra.mxu0 %v2706
        %2770 = vmatprep.subr.mxu0 0.0
        %2771 = vmatpush1.msra.mxu0 %v2707
        %2772 = vmatprep.subr.mxu0 0.0
        %2773 = vmatpush1.msra.mxu0 %v2708
        %2774 = vmatprep.subr.mxu0 0.0
        %2775 = vmatpush1.msra.mxu0 0.0
        %2776 = vmatprep.subr.mxu0 0.0
        %2777 = vmatpush1.msra.mxu0 0.0
        %2778 = vmatprep.subr.mxu0 0.0
        %2779 = vmatpush1.msra.mxu0 0.0
        %2780 = vmatprep.subr.mxu0 0.0
        %2781 = vmatpush1.msra.mxu0 0.0
        %2782 = vmatprep.subr.mxu0 0.0
        %2783 = vmatpush1.msra.mxu0 0.0
        %2784 = vmatprep.subr.mxu0 0.0
        %2785 = vmatpush1.msra.mxu0 0.0
        %2786 = vmatprep.subr.mxu0 0.0
        %2787 = vmatpush1.msra.mxu0 0.0
        %2788 = vmatprep.subr.mxu0 0.0
        %2789 = vmatpush1.msra.mxu0 0.0
        %2790 = vmatprep.subr.mxu0 0.0
        %2791 = vmatpush1.msra.mxu0 0.0
        %2792 = vmatprep.subr.mxu0 0.0
        %2793 = vmatpush1.msra.mxu0 0.0
        %2794 = vmatprep.subr.mxu0 0.0
        %2795 = vmatpush1.msra.mxu0 0.0
        %2796 = vmatprep.subr.mxu0 0.0
        %2797 = vmatpush1.msra.mxu0 0.0
        %2798 = vmatprep.subr.mxu0 0.0
        %2799 = vmatpush1.msra.mxu0 0.0
        %2800 = vmatprep.subr.mxu0 0.0
        %2801 = vmatpush1.msra.mxu0 0.0
        %2802 = vmatprep.subr.mxu0 0.0
        %2803 = vmatpush1.msra.mxu0 0.0
        %2804 = vmatprep.subr.mxu0 0.0
        %2805 = vmatpush1.msra.mxu0 0.0
        %2806 = vmatprep.subr.mxu0 0.0
        %2807 = vmatpush1.msra.mxu0 0.0
        %2808 = vmatprep.subr.mxu0 0.0
        %2809 = vmatpush1.msra.mxu0 0.0
        %2810 = vmatprep.subr.mxu0 0.0
        %2811 = vmatpush1.msra.mxu0 0.0
        %2812 = vmatprep.subr.mxu0 0.0
        %2813 = vmatpush1.msra.mxu0 0.0
        %2814 = vmatprep.subr.mxu0 0.0
        %2815 = vmatpush1.msra.mxu0 0.0
        %2816 = vmatprep.subr.mxu0 0.0
        %2817 = vmatpush1.msra.mxu0 0.0
        %2818 = vmatprep.mubr.f32.mxu0 0.0
        %2819 = vmatmul.mubr.f32.gmra.mrb[0].mxu0 %v2752
        %v2820 = vpop.f32.mrb[0].mxu0
        %v2821 = vadd.f32 0.0, %v2820
        %v2822 = vpop.f32.mrb[0].mxu0
        %2823 = vdwg.mxu0
        %v2824 = vadd.f32 %v2749, %v2821
        %v2825 = vrot.slane %v2698, 1
        %v2826 = vsel %vm2750, %v2825, 0
        %2828 = vmatprep.subr.mxu0 0.0
        %2829 = vmatpush1.msra.mxu0 %v2709
        %2830 = vmatprep.subr.mxu0 0.0
        %2831 = vmatpush1.msra.mxu0 %v2710
        %2832 = vmatprep.subr.mxu0 0.0
        %2833 = vmatpush1.msra.mxu0 %v2711
        %2834 = vmatprep.subr.mxu0 0.0
        %2835 = vmatpush1.msra.mxu0 %v2712
        %2836 = vmatprep.subr.mxu0 0.0
        %2837 = vmatpush1.msra.mxu0 %v2713
        %2838 = vmatprep.subr.mxu0 0.0
        %2839 = vmatpush1.msra.mxu0 %v2714
        %2840 = vmatprep.subr.mxu0 0.0
        %2841 = vmatpush1.msra.mxu0 %v2715
        %2842 = vmatprep.subr.mxu0 0.0
        %2843 = vmatpush1.msra.mxu0 %v2716
        %2844 = vmatprep.subr.mxu0 0.0
        %2845 = vmatpush1.msra.mxu0 %v2717
        %2846 = vmatprep.subr.mxu0 0.0
        %2847 = vmatpush1.msra.mxu0 %v2718
        %2848 = vmatprep.subr.mxu0 0.0
        %2849 = vmatpush1.msra.mxu0 0.0
        %2850 = vmatprep.subr.mxu0 0.0
        %2851 = vmatpush1.msra.mxu0 0.0
        %2852 = vmatprep.subr.mxu0 0.0
        %2853 = vmatpush1.msra.mxu0 0.0
        %2854 = vmatprep.subr.mxu0 0.0
        %2855 = vmatpush1.msra.mxu0 0.0
        %2856 = vmatprep.subr.mxu0 0.0
        %2857 = vmatpush1.msra.mxu0 0.0
        %2858 = vmatprep.subr.mxu0 0.0
        %2859 = vmatpush1.msra.mxu0 0.0
        %2860 = vmatprep.subr.mxu0 0.0
        %2861 = vmatpush1.msra.mxu0 0.0
        %2862 = vmatprep.subr.mxu0 0.0
        %2863 = vmatpush1.msra.mxu0 0.0
        %2864 = vmatprep.subr.mxu0 0.0
        %2865 = vmatpush1.msra.mxu0 0.0
        %2866 = vmatprep.subr.mxu0 0.0
        %2867 = vmatpush1.msra.mxu0 0.0
        %2868 = vmatprep.subr.mxu0 0.0
        %2869 = vmatpush1.msra.mxu0 0.0
        %2870 = vmatprep.subr.mxu0 0.0
        %2871 = vmatpush1.msra.mxu0 0.0
        %2872 = vmatprep.subr.mxu0 0.0
        %2873 = vmatpush1.msra.mxu0 0.0
        %2874 = vmatprep.subr.mxu0 0.0
        %2875 = vmatpush1.msra.mxu0 0.0
        %2876 = vmatprep.subr.mxu0 0.0
        %2877 = vmatpush1.msra.mxu0 0.0
        %2878 = vmatprep.subr.mxu0 0.0
        %2879 = vmatpush1.msra.mxu0 0.0
        %2880 = vmatprep.subr.mxu0 0.0
        %2881 = vmatpush1.msra.mxu0 0.0
        %2882 = vmatprep.subr.mxu0 0.0
        %2883 = vmatpush1.msra.mxu0 0.0
        %2884 = vmatprep.subr.mxu0 0.0
        %2885 = vmatpush1.msra.mxu0 0.0
        %2886 = vmatprep.subr.mxu0 0.0
        %2887 = vmatpush1.msra.mxu0 0.0
        %2888 = vmatprep.subr.mxu0 0.0
        %2889 = vmatpush1.msra.mxu0 0.0
        %2890 = vmatprep.subr.mxu0 0.0
        %2891 = vmatpush1.msra.mxu0 0.0
        %2892 = vmatprep.mubr.f32.mxu0 0.0
        %2893 = vmatmul.mubr.f32.gmra.mrb[0].mxu0 %v2826
        %v2894 = vpop.f32.mrb[0].mxu0
        %v2895 = vadd.f32 0.0, %v2894
        %v2896 = vpop.f32.mrb[0].mxu0
        %2897 = vdwg.mxu0
        %v2898 = vadd.f32 %v2824, %v2895
        %v2899 = vrot.slane %v2698, 2
        %v2900 = vsel %vm2750, %v2899, 0
        %2902 = vmatprep.subr.mxu0 0.0
        %2903 = vmatpush1.msra.mxu0 %v2719
        %2904 = vmatprep.subr.mxu0 0.0
        %2905 = vmatpush1.msra.mxu0 %v2720
        %2906 = vmatprep.subr.mxu0 0.0
        %2907 = vmatpush1.msra.mxu0 %v2721
        %2908 = vmatprep.subr.mxu0 0.0
        %2909 = vmatpush1.msra.mxu0 %v2722
        %2910 = vmatprep.subr.mxu0 0.0
        %2911 = vmatpush1.msra.mxu0 %v2723
        %2912 = vmatprep.subr.mxu0 0.0
        %2913 = vmatpush1.msra.mxu0 %v2724
        %2914 = vmatprep.subr.mxu0 0.0
        %2915 = vmatpush1.msra.mxu0 %v2725
        %2916 = vmatprep.subr.mxu0 0.0
        %2917 = vmatpush1.msra.mxu0 %v2726
        %2918 = vmatprep.subr.mxu0 0.0
        %2919 = vmatpush1.msra.mxu0 %v2727
        %2920 = vmatprep.subr.mxu0 0.0
        %2921 = vmatpush1.msra.mxu0 %v2728
        %2922 = vmatprep.subr.mxu0 0.0
        %2923 = vmatpush1.msra.mxu0 0.0
        %2924 = vmatprep.subr.mxu0 0.0
        %2925 = vmatpush1.msra.mxu0 0.0
        %2926 = vmatprep.subr.mxu0 0.0
        %2927 = vmatpush1.msra.mxu0 0.0
        %2928 = vmatprep.subr.mxu0 0.0
        %2929 = vmatpush1.msra.mxu0 0.0
        %2930 = vmatprep.subr.mxu0 0.0
        %2931 = vmatpush1.msra.mxu0 0.0
        %2932 = vmatprep.subr.mxu0 0.0
        %2933 = vmatpush1.msra.mxu0 0.0
        %2934 = vmatprep.subr.mxu0 0.0
        %2935 = vmatpush1.msra.mxu0 0.0
        %2936 = vmatprep.subr.mxu0 0.0
        %2937 = vmatpush1.msra.mxu0 0.0
        %2938 = vmatprep.subr.mxu0 0.0
        %2939 = vmatpush1.msra.mxu0 0.0
        %2940 = vmatprep.subr.mxu0 0.0
        %2941 = vmatpush1.msra.mxu0 0.0
        %2942 = vmatprep.subr.mxu0 0.0
        %2943 = vmatpush1.msra.mxu0 0.0
        %2944 = vmatprep.subr.mxu0 0.0
        %2945 = vmatpush1.msra.mxu0 0.0
        %2946 = vmatprep.subr.mxu0 0.0
        %2947 = vmatpush1.msra.mxu0 0.0
        %2948 = vmatprep.subr.mxu0 0.0
        %2949 = vmatpush1.msra.mxu0 0.0
        %2950 = vmatprep.subr.mxu0 0.0
        %2951 = vmatpush1.msra.mxu0 0.0
        %2952 = vmatprep.subr.mxu0 0.0
        %2953 = vmatpush1.msra.mxu0 0.0
        %2954 = vmatprep.subr.mxu0 0.0
        %2955 = vmatpush1.msra.mxu0 0.0
        %2956 = vmatprep.subr.mxu0 0.0
        %2957 = vmatpush1.msra.mxu0 0.0
        %2958 = vmatprep.subr.mxu0 0.0
        %2959 = vmatpush1.msra.mxu0 0.0
        %2960 = vmatprep.subr.mxu0 0.0
        %2961 = vmatpush1.msra.mxu0 0.0
        %2962 = vmatprep.subr.mxu0 0.0
        %2963 = vmatpush1.msra.mxu0 0.0
        %2964 = vmatprep.subr.mxu0 0.0
        %2965 = vmatpush1.msra.mxu0 0.0
        %2966 = vmatprep.mubr.f32.mxu0 0.0
        %2967 = vmatmul.mubr.f32.gmra.mrb[0].mxu0 %v2900
        %v2968 = vpop.f32.mrb[0].mxu0
        %v2969 = vadd.f32 0.0, %v2968
        %v2970 = vpop.f32.mrb[0].mxu0
        %2971 = vdwg.mxu0
        %v2972 = vadd.f32 %v2898, %v2969
        %v2973 = vrot.slane %v2698, 3
        %v2974 = vsel %vm2750, %v2973, 0
        %2976 = vmatprep.subr.mxu0 0.0
        %2977 = vmatpush1.msra.mxu0 %v2729
        %2978 = vmatprep.subr.mxu0 0.0
        %2979 = vmatpush1.msra.mxu0 %v2730
        %2980 = vmatprep.subr.mxu0 0.0
        %2981 = vmatpush1.msra.mxu0 %v2731
        %2982 = vmatprep.subr.mxu0 0.0
        %2983 = vmatpush1.msra.mxu0 %v2732
        %2984 = vmatprep.subr.mxu0 0.0
        %2985 = vmatpush1.msra.mxu0 %v2733
        %2986 = vmatprep.subr.mxu0 0.0
        %2987 = vmatpush1.msra.mxu0 %v2734
        %2988 = vmatprep.subr.mxu0 0.0
        %2989 = vmatpush1.msra.mxu0 %v2735
        %2990 = vmatprep.subr.mxu0 0.0
        %2991 = vmatpush1.msra.mxu0 %v2736
        %2992 = vmatprep.subr.mxu0 0.0
        %2993 = vmatpush1.msra.mxu0 %v2737
        %2994 = vmatprep.subr.mxu0 0.0
        %2995 = vmatpush1.msra.mxu0 %v2738
        %2996 = vmatprep.subr.mxu0 0.0
        %2997 = vmatpush1.msra.mxu0 0.0
        %2998 = vmatprep.subr.mxu0 0.0
        %2999 = vmatpush1.msra.mxu0 0.0
        %3000 = vmatprep.subr.mxu0 0.0
        %3001 = vmatpush1.msra.mxu0 0.0
        %3002 = vmatprep.subr.mxu0 0.0
        %3003 = vmatpush1.msra.mxu0 0.0
        %3004 = vmatprep.subr.mxu0 0.0
        %3005 = vmatpush1.msra.mxu0 0.0
        %3006 = vmatprep.subr.mxu0 0.0
        %3007 = vmatpush1.msra.mxu0 0.0
        %3008 = vmatprep.subr.mxu0 0.0
        %3009 = vmatpush1.msra.mxu0 0.0
        %3010 = vmatprep.subr.mxu0 0.0
        %3011 = vmatpush1.msra.mxu0 0.0
        %3012 = vmatprep.subr.mxu0 0.0
        %3013 = vmatpush1.msra.mxu0 0.0
        %3014 = vmatprep.subr.mxu0 0.0
        %3015 = vmatpush1.msra.mxu0 0.0
        %3016 = vmatprep.subr.mxu0 0.0
        %3017 = vmatpush1.msra.mxu0 0.0
        %3018 = vmatprep.subr.mxu0 0.0
        %3019 = vmatpush1.msra.mxu0 0.0
        %3020 = vmatprep.subr.mxu0 0.0
        %3021 = vmatpush1.msra.mxu0 0.0
        %3022 = vmatprep.subr.mxu0 0.0
        %3023 = vmatpush1.msra.mxu0 0.0
        %3024 = vmatprep.subr.mxu0 0.0
        %3025 = vmatpush1.msra.mxu0 0.0
        %3026 = vmatprep.subr.mxu0 0.0
        %3027 = vmatpush1.msra.mxu0 0.0
        %3028 = vmatprep.subr.mxu0 0.0
        %3029 = vmatpush1.msra.mxu0 0.0
        %3030 = vmatprep.subr.mxu0 0.0
        %3031 = vmatpush1.msra.mxu0 0.0
        %3032 = vmatprep.subr.mxu0 0.0
        %3033 = vmatpush1.msra.mxu0 0.0
        %3034 = vmatprep.subr.mxu0 0.0
        %3035 = vmatpush1.msra.mxu0 0.0
        %3036 = vmatprep.subr.mxu0 0.0
        %3037 = vmatpush1.msra.mxu0 0.0
        %3038 = vmatprep.subr.mxu0 0.0
        %3039 = vmatpush1.msra.mxu0 0.0
        %3040 = vmatprep.mubr.f32.mxu0 0.0
        %3041 = vmatmul.mubr.f32.gmra.mrb[0].mxu0 %v2974
        %v3042 = vpop.f32.mrb[0].mxu0
        %v3043 = vadd.f32 0.0, %v3042
        %v3044 = vpop.f32.mrb[0].mxu0
        %3045 = vdwg.mxu0
        %v3046 = vadd.f32 %v2972, %v3043
        %v3047 = vrot.slane %v2698, 4
        %v3048 = vsel %vm2750, %v3047, 0
        %3050 = vmatprep.subr.mxu0 0.0
        %3051 = vmatpush1.msra.mxu0 %v2739
        %3052 = vmatprep.subr.mxu0 0.0
        %3053 = vmatpush1.msra.mxu0 %v2740
        %3054 = vmatprep.subr.mxu0 0.0
        %3055 = vmatpush1.msra.mxu0 %v2741
        %3056 = vmatprep.subr.mxu0 0.0
        %3057 = vmatpush1.msra.mxu0 %v2742
        %3058 = vmatprep.subr.mxu0 0.0
        %3059 = vmatpush1.msra.mxu0 %v2743
        %3060 = vmatprep.subr.mxu0 0.0
        %3061 = vmatpush1.msra.mxu0 %v2744
        %3062 = vmatprep.subr.mxu0 0.0
        %3063 = vmatpush1.msra.mxu0 %v2745
        %3064 = vmatprep.subr.mxu0 0.0
        %3065 = vmatpush1.msra.mxu0 %v2746
        %3066 = vmatprep.subr.mxu0 0.0
        %3067 = vmatpush1.msra.mxu0 %v2747
        %3068 = vmatprep.subr.mxu0 0.0
        %3069 = vmatpush1.msra.mxu0 %v2748
        %3070 = vmatprep.subr.mxu0 0.0
        %3071 = vmatpush1.msra.mxu0 0.0
        %3072 = vmatprep.subr.mxu0 0.0
        %3073 = vmatpush1.msra.mxu0 0.0
        %3074 = vmatprep.subr.mxu0 0.0
        %3075 = vmatpush1.msra.mxu0 0.0
        %3076 = vmatprep.subr.mxu0 0.0
        %3077 = vmatpush1.msra.mxu0 0.0
        %3078 = vmatprep.subr.mxu0 0.0
        %3079 = vmatpush1.msra.mxu0 0.0
        %3080 = vmatprep.subr.mxu0 0.0
        %3081 = vmatpush1.msra.mxu0 0.0
        %3082 = vmatprep.subr.mxu0 0.0
        %3083 = vmatpush1.msra.mxu0 0.0
        %3084 = vmatprep.subr.mxu0 0.0
        %3085 = vmatpush1.msra.mxu0 0.0
        %3086 = vmatprep.subr.mxu0 0.0
        %3087 = vmatpush1.msra.mxu0 0.0
        %3088 = vmatprep.subr.mxu0 0.0
        %3089 = vmatpush1.msra.mxu0 0.0
        %3090 = vmatprep.subr.mxu0 0.0
        %3091 = vmatpush1.msra.mxu0 0.0
        %3092 = vmatprep.subr.mxu0 0.0
        %3093 = vmatpush1.msra.mxu0 0.0
        %3094 = vmatprep.subr.mxu0 0.0
        %3095 = vmatpush1.msra.mxu0 0.0
        %3096 = vmatprep.subr.mxu0 0.0
        %3097 = vmatpush1.msra.mxu0 0.0
        %3098 = vmatprep.subr.mxu0 0.0
        %3099 = vmatpush1.msra.mxu0 0.0
        %3100 = vmatprep.subr.mxu0 0.0
        %3101 = vmatpush1.msra.mxu0 0.0
        %3102 = vmatprep.subr.mxu0 0.0
        %3103 = vmatpush1.msra.mxu0 0.0
        %3104 = vmatprep.subr.mxu0 0.0
        %3105 = vmatpush1.msra.mxu0 0.0
        %3106 = vmatprep.subr.mxu0 0.0
        %3107 = vmatpush1.msra.mxu0 0.0
        %3108 = vmatprep.subr.mxu0 0.0
        %3109 = vmatpush1.msra.mxu0 0.0
        %3110 = vmatprep.subr.mxu0 0.0
        %3111 = vmatpush1.msra.mxu0 0.0
        %3112 = vmatprep.subr.mxu0 0.0
        %3113 = vmatpush1.msra.mxu0 0.0
        %3114 = vmatprep.mubr.f32.mxu0 0.0
        %3115 = vmatmul.mubr.f32.gmra.mrb[0].mxu0 %v3048
        %v3116 = vpop.f32.mrb[0].mxu0
        %v3117 = vadd.f32 0.0, %v3116
        %v3118 = vpop.f32.mrb[0].mxu0
        %3119 = vdwg.mxu0
        %v3120 = vadd.f32 %v3046, %v3117
        %v3121 = vsub.f32 0.0, %v3120
        %v3122 = vmul.f32 %v3121, 1.442695
        %v3123 = vpow.pop %v3122
        %v3124 = vadd.f32 %v3123, 1.0
        %v3125 = vrcp.pop %v3124
        %v3126 = vmul.f32 1.0, %v3125
        %v3127 = vld [vmem:[%s9] sm:$0xff]
        %v3128 = vld [vmem:[%s9 + $0x8] sm:$0xff]
        %v3129 = vld [vmem:[%s9 + $0x10] sm:$0xff]
        %v3130 = vld [vmem:[%s9 + $0x18] sm:$0xff]
        %v3131 = vld [vmem:[%s9 + $0x20] sm:$0xff]
        %v3132 = vld [vmem:[%s9 + $0x28] sm:$0xff]
        %v3133 = vld [vmem:[%s9 + $0x30] sm:$0xff]
        %v3134 = vld [vmem:[%s9 + $0x38] sm:$0xff]
        %v3135 = vld [vmem:[%s9 + $0x40] sm:$0xff]
        %v3136 = vld [vmem:[%s9 + $0x48] sm:$0xff]
        %v3137 = vld [vmem:[%s9 + $0x50] sm:$0xff]
        %v3138 = vld [vmem:[%s9 + $0x58] sm:$0xff]
        %v3139 = vld [vmem:[%s9 + $0x60] sm:$0xff]
        %v3140 = vld [vmem:[%s9 + $0x68] sm:$0xff]
        %v3141 = vld [vmem:[%s9 + $0x70] sm:$0xff]
        %v3142 = vld [vmem:[%s10] sm:$0x1]
        %vm3143 = vcmask 982016
        %v3145 = vsel %vm3143, %v3126, 0
        %3147 = vmatprep.subr.mxu0 0.0
        %3148 = vmatpush1.msra.mxu0 %v3127
        %3149 = vmatprep.subr.mxu0 0.0
        %3150 = vmatpush1.msra.mxu0 %v3128
        %3151 = vmatprep.subr.mxu0 0.0
        %3152 = vmatpush1.msra.mxu0 %v3129
        %3153 = vmatprep.subr.mxu0 0.0
        %3154 = vmatpush1.msra.mxu0 %v3130
        %3155 = vmatprep.subr.mxu0 0.0
        %3156 = vmatpush1.msra.mxu0 %v3131
        %3157 = vmatprep.subr.mxu0 0.0
        %3158 = vmatpush1.msra.mxu0 %v3132
        %3159 = vmatprep.subr.mxu0 0.0
        %3160 = vmatpush1.msra.mxu0 %v3133
        %3161 = vmatprep.subr.mxu0 0.0
        %3162 = vmatpush1.msra.mxu0 %v3134
        %3163 = vmatprep.subr.mxu0 0.0
        %3164 = vmatpush1.msra.mxu0 %v3135
        %3165 = vmatprep.subr.mxu0 0.0
        %3166 = vmatpush1.msra.mxu0 %v3136
        %3167 = vmatprep.subr.mxu0 0.0
        %3168 = vmatpush1.msra.mxu0 %v3137
        %3169 = vmatprep.subr.mxu0 0.0
        %3170 = vmatpush1.msra.mxu0 %v3138
        %3171 = vmatprep.subr.mxu0 0.0
        %3172 = vmatpush1.msra.mxu0 %v3139
        %3173 = vmatprep.subr.mxu0 0.0
        %3174 = vmatpush1.msra.mxu0 %v3140
        %3175 = vmatprep.subr.mxu0 0.0
        %3176 = vmatpush1.msra.mxu0 %v3141
        %3177 = vmatprep.subr.mxu0 0.0
        %3178 = vmatpush1.msra.mxu0 0.0
        %3179 = vmatprep.subr.mxu0 0.0
        %3180 = vmatpush1.msra.mxu0 0.0
        %3181 = vmatprep.subr.mxu0 0.0
        %3182 = vmatpush1.msra.mxu0 0.0
        %3183 = vmatprep.subr.mxu0 0.0
        %3184 = vmatpush1.msra.mxu0 0.0
        %3185 = vmatprep.subr.mxu0 0.0
        %3186 = vmatpush1.msra.mxu0 0.0
        %3187 = vmatprep.subr.mxu0 0.0
        %3188 = vmatpush1.msra.mxu0 0.0
        %3189 = vmatprep.subr.mxu0 0.0
        %3190 = vmatpush1.msra.mxu0 0.0
        %3191 = vmatprep.subr.mxu0 0.0
        %3192 = vmatpush1.msra.mxu0 0.0
        %3193 = vmatprep.subr.mxu0 0.0
        %3194 = vmatpush1.msra.mxu0 0.0
        %3195 = vmatprep.subr.mxu0 0.0
        %3196 = vmatpush1.msra.mxu0 0.0
        %3197 = vmatprep.subr.mxu0 0.0
        %3198 = vmatpush1.msra.mxu0 0.0
        %3199 = vmatprep.subr.mxu0 0.0
        %3200 = vmatpush1.msra.mxu0 0.0
        %3201 = vmatprep.subr.mxu0 0.0
        %3202 = vmatpush1.msra.mxu0 0.0
        %3203 = vmatprep.subr.mxu0 0.0
        %3204 = vmatpush1.msra.mxu0 0.0
        %3205 = vmatprep.subr.mxu0 0.0
        %3206 = vmatpush1.msra.mxu0 0.0
        %3207 = vmatprep.subr.mxu0 0.0
        %3208 = vmatpush1.msra.mxu0 0.0
        %3209 = vmatprep.subr.mxu0 0.0
        %3210 = vmatpush1.msra.mxu0 0.0
        %3211 = vmatprep.mubr.f32.mxu0 0.0
        %3212 = vmatmul.mubr.f32.gmra.mrb[0].mxu0 %v3145
        %v3213 = vpop.f32.mrb[0].mxu0
        %v3214 = vadd.f32 %v3142, %v3213
        %v3215 = vpop.f32.mrb[0].mxu0
        %3216 = vdwg.mxu0
        %v3217 = vsub.f32 0.0, %v3214
        %v3218 = vmul.f32 %v3217, 1.442695
        %v3219 = vpow.pop %v3218
        %v3220 = vadd.f32 %v3219, 1.0
        %v3221 = vrcp.pop %v3220
        %v3222 = vmul.f32 1.0, %v3221
        %v3223 = vld [vmem:[%s11] sm:$0xff]
        %v3224 = vld [vmem:[%s11 + $0x8] sm:$0xff]
        %v3225 = vld [vmem:[%s11 + $0x10] sm:$0xff]
        %v3226 = vld [vmem:[%s11 + $0x18] sm:$0xff]
        %v3227 = vld [vmem:[%s11 + $0x20] sm:$0xff]
        %v3228 = vld [vmem:[%s11 + $0x28] sm:$0xff]
        %v3229 = vld [vmem:[%s11 + $0x30] sm:$0xff]
        %v3230 = vld [vmem:[%s11 + $0x38] sm:$0xff]
        %v3231 = vld [vmem:[%s11 + $0x40] sm:$0xff]
        %v3232 = vld [vmem:[%s11 + $0x48] sm:$0xff]
        %v3233 = vld [vmem:[%s11 + $0x50] sm:$0xf]
        %v3234 = vld [vmem:[%s12] sm:$0x1]
        %v3236 = vsel %vm1854, %v3222, 0
        %v3239 = vsel %vm1861, %v3233, 0
        %3241 = vmatprep.subr.mxu0 0.0
        %3242 = vmatpush1.msra.mxu0 %v3223
        %3243 = vmatprep.subr.mxu0 0.0
        %3244 = vmatpush1.msra.mxu0 %v3224
        %3245 = vmatprep.subr.mxu0 0.0
        %3246 = vmatpush1.msra.mxu0 %v3225
        %3247 = vmatprep.subr.mxu0 0.0
        %3248 = vmatpush1.msra.mxu0 %v3226
        %3249 = vmatprep.subr.mxu0 0.0
        %3250 = vmatpush1.msra.mxu0 %v3227
        %3251 = vmatprep.subr.mxu0 0.0
        %3252 = vmatpush1.msra.mxu0 %v3228
        %3253 = vmatprep.subr.mxu0 0.0
        %3254 = vmatpush1.msra.mxu0 %v3229
        %3255 = vmatprep.subr.mxu0 0.0
        %3256 = vmatpush1.msra.mxu0 %v3230
        %3257 = vmatprep.subr.mxu0 0.0
        %3258 = vmatpush1.msra.mxu0 %v3231
        %3259 = vmatprep.subr.mxu0 0.0
        %3260 = vmatpush1.msra.mxu0 %v3232
        %3261 = vmatprep.subr.mxu0 0.0
        %3262 = vmatpush1.msra.mxu0 %v3239
        %3263 = vmatprep.subr.mxu0 0.0
        %3264 = vmatpush1.msra.mxu0 0.0
        %3265 = vmatprep.subr.mxu0 0.0
        %3266 = vmatpush1.msra.mxu0 0.0
        %3267 = vmatprep.subr.mxu0 0.0
        %3268 = vmatpush1.msra.mxu0 0.0
        %3269 = vmatprep.subr.mxu0 0.0
        %3270 = vmatpush1.msra.mxu0 0.0
        %3271 = vmatprep.subr.mxu0 0.0
        %3272 = vmatpush1.msra.mxu0 0.0
        %3273 = vmatprep.subr.mxu0 0.0
        %3274 = vmatpush1.msra.mxu0 0.0
        %3275 = vmatprep.subr.mxu0 0.0
        %3276 = vmatpush1.msra.mxu0 0.0
        %3277 = vmatprep.subr.mxu0 0.0
        %3278 = vmatpush1.msra.mxu0 0.0
        %3279 = vmatprep.subr.mxu0 0.0
        %3280 = vmatpush1.msra.mxu0 0.0
        %3281 = vmatprep.subr.mxu0 0.0
        %3282 = vmatpush1.msra.mxu0 0.0
        %3283 = vmatprep.subr.mxu0 0.0
        %3284 = vmatpush1.msra.mxu0 0.0
        %3285 = vmatprep.subr.mxu0 0.0
        %3286 = vmatpush1.msra.mxu0 0.0
        %3287 = vmatprep.subr.mxu0 0.0
        %3288 = vmatpush1.msra.mxu0 0.0
        %3289 = vmatprep.subr.mxu0 0.0
        %3290 = vmatpush1.msra.mxu0 0.0
        %3291 = vmatprep.subr.mxu0 0.0
        %3292 = vmatpush1.msra.mxu0 0.0
        %3293 = vmatprep.subr.mxu0 0.0
        %3294 = vmatpush1.msra.mxu0 0.0
        %3295 = vmatprep.subr.mxu0 0.0
        %3296 = vmatpush1.msra.mxu0 0.0
        %3297 = vmatprep.subr.mxu0 0.0
        %3298 = vmatpush1.msra.mxu0 0.0
        %3299 = vmatprep.subr.mxu0 0.0
        %3300 = vmatpush1.msra.mxu0 0.0
        %3301 = vmatprep.subr.mxu0 0.0
        %3302 = vmatpush1.msra.mxu0 0.0
        %3303 = vmatprep.subr.mxu0 0.0
        %3304 = vmatpush1.msra.mxu0 0.0
        %3305 = vmatprep.mubr.f32.mxu0 0.0
        %3306 = vmatmul.mubr.f32.gmra.mrb[0].mxu0 %v3236
        %v3307 = vpop.f32.mrb[0].mxu0
        %v3308 = vadd.f32 %v3234, %v3307
        %v3309 = vpop.f32.mrb[0].mxu0
        %3310 = vdwg.mxu0
        %vm3311 = vcmask 73728
        %3312 = vst.msk [vmem:[%s432] sm:$0x1] %vm3311, %v3308
        %s3313 = sand.u32 %s313, 1
        %s3314 = scalar_lea.sflag [#allocation3], %s3313
        %s3315 = sand.u32 %s313, 1
        %s3316 = scalar_lea.vmem [#allocation2], %s3315
        // Predicated region
        $region73: #{lenet_forward.1} parent=71 // pred_check
          %p3317 = pneg %p323
        $region74: #{lenet_forward.1} parent=71 // pred_check_branch
          %3319 = sbr.rel (%p3317) target = $region76
        $region75: #{lenet_forward.1} parent=71 // pred_region
          %s3321 = ssub.s32 16, 16
          %3322 = vsyncadd %s3314, %s3321
          %s3323 = smul.addr %s27, 16
          %s3324 = scalar_lea.hbm %s13, %s3323
          %s3326 = sshll.u32 %s3316, 4
          %s3327 = int_to_ptr.vmem [resolvable:$true] %s3326
          %3329 = dma.vmem_to_hbm [thread:$0]  %s3327, 16, %s3324, %s3314
        $region76: #{lenet_forward.1} parent=71 // pred_fallthru
          _
      $region72: #{lenet_forward.1} parent=5 // pred_fallthru
        _
      %p3330 = scmp.le.s32.totalorder 2, %s22
      // Predicated region
      $region77: #{lenet_forward.1} parent=5 // pred_check
        %p3331 = pneg %p3330
      $region78: #{lenet_forward.1} parent=5 // pred_check_branch
        %3333 = sbr.rel (%p3331) target = $region80
      $region79: #{lenet_forward.1} parent=5 // pred_region
        %s3334 = ssub.s32 %s22, 2
        // Predicated region
        $region81: #{lenet_forward.1} parent=79 // pred_check
          %p3335 = pneg %p329
        $region82: #{lenet_forward.1} parent=79 // pred_check_branch
          %3337 = sbr.rel (%p3335) target = $region84
        $region83: #{lenet_forward.1} parent=79 // pred_region
          %s3338 = sand.u32 %s314, 1
          %s3339 = scalar_lea.sflag [#allocation3], %s3338
          %s3340 = sand.u32 %s314, 1
          %s3341 = scalar_lea.vmem [#allocation2], %s3340
          %3342 = dma.done %s3339, 16
        $region84: #{lenet_forward.1} parent=79 // pred_fallthru
          _
      $region80: #{lenet_forward.1} parent=5 // pred_fallthru
        _
    $region6: #{lenet_forward.1} parent=1 // loop_footer
      %s26 = sadd.s32 1, %s22
    $region7: #{lenet_forward.1} parent=1 // loop_footer_branch
      %21 = sbr.rel target = $region3
    $region8: #{lenet_forward.1} parent=1 // loop_exit
      _
    %3343 = vsyncpa [#allocation3], 1
    %s3344 = scalar_lea.sflag [#allocation3], 1
    %3345 = vsyncpa %s3344, 1

</llo_original>
